<compile_context>
chip_gen: v7x
topology: tpu7x:2x2x1
jax: 0.10.0
libtpu: 0.0.40
codegen_flags: <defaults>
</compile_context>

<pallas_src>
import functools

import jax
import jax.numpy as jnp
from jax.experimental import pallas as pl
from jax.experimental.pallas import tpu as pltpu

EPS = 1e-5


def _round_up(x, m):
    return (x + m - 1) // m * m


def _const_spec(shape):
    nd = len(shape)
    return pl.BlockSpec(shape, lambda i, _nd=nd: (0,) * _nd)


def _pick_row_chunk(ho, wo_pad, target=512):
    """Largest divisor of ho whose chunk is <= ~target output pixels."""
    rc = 1
    for cand in range(1, ho + 1):
        if ho % cand == 0 and cand * wo_pad <= target:
            rc = cand
    return rc


# ---------------- Pallas kernel ----------------

def downblock_kernel(x_ref, mask_ref,
                     w1_ref, s1_ref, b1_ref,
                     w2_ref, s2_ref, b2_ref,
                     w3_ref, s3_ref, b3_ref,
                     w4_ref, s4_ref, b4_ref,
                     w5_ref, s5_ref, b5_ref,
                     o_ref, a_ref, *, rc):
    """Fully fused DownBlock for one image.

    x_ref:    (4, Hp, Wp, Cin) space-to-depth parity phase slabs of the
              zero-padded NHWC input; slab s = 2*(row parity) + (col parity).
    mask_ref: (4, Hp, Wp, 1)   1.0 at real pixels, 0.0 on the pad ring /
              width padding (conv4's zero padding must be applied AFTER
              bn3+relu).
    a_ref:    (4, Hp, Wp, midp) VMEM scratch for relu(bn3(conv3(x))) slabs
              (channel dim zero-padded to a 128-lane multiple).
    o_ref:    (1, Ho*Wo_pad, 2*midp)  lanes [0:midp)=branch1, [midp:)=branch2.
    """
    _, hp, wp, cin = x_ref.shape
    midp = w3_ref.shape[1]
    ho = hp - 1
    wo_pad = wp - 8          # slab width carries 8 extra halo/pad columns
    mc = rc * wo_pad         # output pixels per row chunk
    n_chunks = ho // rc

    # ---- branch 2, stage A: conv3(1x1)+bn3+relu over the whole padded slab
    # as ONE MXU matmul; masked back to zero on the pad ring; one VMEM store.
    a = jnp.dot(x_ref[...].reshape(4 * hp * wp, cin), w3_ref[...],
                preferred_element_type=jnp.float32)
    a = jnp.maximum(a * s3_ref[...] + b3_ref[...], 0.0)
    a_ref[...] = a.reshape(4, hp, wp, midp) * mask_ref[...]

    def tap(ref, kh, kw, r0, rows):
        s = 2 * (kh % 2) + (kw % 2)
        return ref[s, pl.ds(r0 + kh // 2, rows), kw // 2:kw // 2 + wo_pad, :]

    def chunk(ci, carry):
        r0 = ci * rc
        m0 = ci * mc
        if not isinstance(ci, int):
            m0 = pl.multiple_of(m0, mc)

        # ---- branch 1: dw-conv1(3x3,s2)+bn1 -> conv2(1x1)+bn2+relu ----
        acc1 = tap(x_ref, 0, 0, r0, rc) * w1_ref[0]
        for kh in range(3):
            for kw in range(3):
                if kh == 0 and kw == 0:
                    continue
                acc1 = acc1 + tap(x_ref, kh, kw, r0, rc) * w1_ref[3 * kh + kw]
        acc1 = acc1.reshape(mc, cin) * s1_ref[...] + b1_ref[...]          # bn1
        y1 = jnp.dot(acc1, w2_ref[...], preferred_element_type=jnp.float32)
        y1 = jnp.maximum(y1 * s2_ref[...] + b2_ref[...], 0.0)            # bn2+relu

        # ---- branch 2, stage B: dw-conv4(3x3,s2)+bn4 -> conv5(1x1)+bn5+relu
        acc2 = tap(a_ref, 0, 0, r0, rc) * w4_ref[0]
        for kh in range(3):
            for kw in range(3):
                if kh == 0 and kw == 0:
                    continue
                acc2 = acc2 + tap(a_ref, kh, kw, r0, rc) * w4_ref[3 * kh + kw]
        acc2 = acc2.reshape(mc, midp) * s4_ref[...] + b4_ref[...]         # bn4
        y2 = jnp.dot(acc2, w5_ref[...], preferred_element_type=jnp.float32)
        y2 = jnp.maximum(y2 * s5_ref[...] + b5_ref[...], 0.0)            # bn5+relu

        # Lane-dense, unmasked stores: lane offsets/widths are multiples of
        # 128, sublane offset/extent are multiples of wo_pad (a multiple of 8).
        o_ref[0, pl.ds(m0, mc), 0:midp] = y1
        o_ref[0, pl.ds(m0, mc), midp:2 * midp] = y2
        return carry

    if n_chunks == 1:
        chunk(0, 0)
    else:
        jax.lax.fori_loop(0, n_chunks, chunk, 0)


# ---------------- wrapper / glue ----------------

def downblock_forward(x_nchw, p, mid):
    n, cin, h, w = x_nchw.shape
    # Odd H/W would need ceil(H/2) handling in the slab layout; ShuffleNetV2
    # (CIFAR/ImageNet) always downsamples even spatial sizes.
    assert h % 2 == 0 and w % 2 == 0, "odd spatial sizes unsupported"
    midp = p["w2"].shape[1]          # branch channel dim padded to 128 lanes
    ho, wo = h // 2, w // 2
    hp = ho + 1
    wo_pad = _round_up(wo, 8)
    wp = wo_pad + 8
    m_pad = ho * wo_pad
    co = 2 * midp
    rc = _pick_row_chunk(ho, wo_pad)

    # glue: zero-pad NCHW, then ONE fused transpose into the 4 parity phase
    # slabs (channels minor).
    xf = x_nchw.astype(jnp.float32)
    xp = jnp.pad(xf, ((0, 0), (0, 0), (1, 1), (1, 2 * wp - w - 1)))
    slabs = xp.reshape(n, cin, hp, 2, wp, 2)
    slabs = jnp.transpose(slabs, (0, 3, 5, 2, 4, 1)).reshape(n * 4, hp, wp, cin)

    # validity mask: 1 at real pixels, 0 on the zero-pad ring / width padding.
    # (Tiny, resident in VMEM; could be generated in-kernel from iota.)
    phs = jnp.array([0, 0, 1, 1], jnp.int32)
    pws = jnp.array([0, 1, 0, 1], jnp.int32)
    prow = 2 * jnp.arange(hp, dtype=jnp.int32)[None, :] + phs[:, None]   # (4,hp)
    pcol = 2 * jnp.arange(wp, dtype=jnp.int32)[None, :] + pws[:, None]   # (4,wp)
    rvalid = (prow >= 1) & (prow <= h)
    cvalid = (pcol >= 1) & (pcol <= w)
    mask = (rvalid[:, :, None] & cvalid[:, None, :]).astype(jnp.float32)[..., None]

    in_specs = [
        pl.BlockSpec((4, hp, wp, cin), lambda i: (i, 0, 0, 0)),
        _const_spec((4, hp, wp, 1)),
    ]
    for name in ("w1", "s1", "b1", "w2", "s2", "b2", "w3", "s3", "b3",
                 "w4", "s4", "b4", "w5", "s5", "b5"):
        in_specs.append(_const_spec(p[name].shape))

    # VMEM budget estimate (double-buffered x/mask/out + scratch + headroom),
    # clamped to <=48 MiB so v7x (64 MiB physical) keeps Mosaic headroom.
    lane = lambda c: _round_up(max(c, 1), 128)
    slab_bytes = 4 * hp * wp * lane(cin) * 4
    mask_bytes = 4 * hp * wp * 128 * 4
    out_bytes = m_pad * co * 4
    a_bytes = 4 * hp * wp * midp * 4
    vmem_est = 2 * (slab_bytes + mask_bytes + out_bytes) + a_bytes + (4 << 20)
    vmem_limit = int(min(max(vmem_est, 16 << 20), 48 << 20))

    kernel = functools.partial(downblock_kernel, rc=rc)

    out = pl.pallas_call(
        kernel,
        out_shape=jax.ShapeDtypeStruct((n, m_pad, co), jnp.float32),
        grid=(n,),
        in_specs=in_specs,
        out_specs=pl.BlockSpec((1, m_pad, co), lambda i: (i, 0, 0)),
        scratch_shapes=[pltpu.VMEM((4, hp, wp, midp), jnp.float32)],
        compiler_params=pltpu.CompilerParams(
            dimension_semantics=("parallel",),
            vmem_limit_bytes=vmem_limit),
    )(slabs, mask, p["w1"], p["s1"], p["b1"], p["w2"], p["s2"], p["b2"],
      p["w3"], p["s3"], p["b3"], p["w4"], p["s4"], p["b4"],
      p["w5"], p["s5"], p["b5"])

    # glue: drop width/channel padding, then channel shuffle (groups=2) +
    # NHWC->NCHW in one fused transpose.  Output channel 2j+k = branch_{k+1}
    # channel j.
    out = out.reshape(n, ho, wo_pad, 2, midp)[:, :, :wo, :, :mid]
    out = jnp.transpose(out, (0, 4, 3, 1, 2)).reshape(n, 2 * mid, ho, wo)
    return out


# ---------------- parameters ----------------

def fold_bn(gamma, beta, mean, var):
    s = gamma / jnp.sqrt(var + EPS)
    b = beta - mean * s
    return s.reshape(1, -1), b.reshape(1, -1)


def _pad_cols(a, cols):
    return jnp.pad(a, ((0, 0), (0, cols - a.shape[1])))


def init_params(key, in_channels, out_channels):
    mid = out_channels // 2
    midp = _round_up(mid, 128)       # branch channel dim -> 128-lane multiple
    keys = jax.random.split(key, 25)
    ki = iter(keys)

    def bn_params(c):
        gamma = 1.0 + 0.1 * jax.random.normal(next(ki), (c,), jnp.float32)
        beta = 0.05 * jax.random.normal(next(ki), (c,), jnp.float32)
        mean = 0.02 * jax.random.normal(next(ki), (c,), jnp.float32)
        var = 1.0 + 0.1 * jnp.abs(jax.random.normal(next(ki), (c,), jnp.float32))
        return gamma, beta, mean, var

    w1_pt = 0.2 * jax.random.normal(next(ki), (in_channels, 1, 3, 3), jnp.float32)
    bn1 = bn_params(in_channels)
    w2_pt = 0.2 * jax.random.normal(next(ki), (mid, in_channels, 1, 1), jnp.float32)
    bn2 = bn_params(mid)
    w3_pt = 0.2 * jax.random.normal(next(ki), (mid, in_channels, 1, 1), jnp.float32)
    bn3 = bn_params(mid)
    w4_pt = 0.2 * jax.random.normal(next(ki), (mid, 1, 3, 3), jnp.float32)
    bn4 = bn_params(mid)
    w5_pt = 0.2 * jax.random.normal(next(ki), (mid, mid, 1, 1), jnp.float32)
    bn5 = bn_params(mid)

    torch_params = dict(w1=w1_pt, bn1=bn1, w2=w2_pt, bn2=bn2, w3=w3_pt, bn3=bn3,
                        w4=w4_pt, bn4=bn4, w5=w5_pt, bn5=bn5)

    s1, b1 = fold_bn(*bn1)
    s2, b2 = fold_bn(*bn2)
    s3, b3 = fold_bn(*bn3)
    s4, b4 = fold_bn(*bn4)
    s5, b5 = fold_bn(*bn5)

    # Kernel layout: depthwise weights as (9, 1, C) (tap-major, channels on
    # lanes); 1x1 conv weights as (K, N).  All branch channel (N) dims are
    # zero-padded to `midp` so every MXU N dim and every store is lane-dense.
    kparams = dict(
        w1=w1_pt.reshape(in_channels, 9).T.reshape(9, 1, in_channels),
        s1=s1, b1=b1,
        w2=_pad_cols(w2_pt[:, :, 0, 0].T, midp),
        s2=_pad_cols(s2, midp), b2=_pad_cols(b2, midp),
        w3=_pad_cols(w3_pt[:, :, 0, 0].T, midp),
        s3=_pad_cols(s3, midp), b3=_pad_cols(b3, midp),
        w4=jnp.pad(w4_pt.reshape(mid, 9).T.reshape(9, 1, mid),
                   ((0, 0), (0, 0), (0, midp - mid))),
        s4=_pad_cols(s4, midp), b4=_pad_cols(b4, midp),
        w5=jnp.pad(w5_pt[:, :, 0, 0].T, ((0, midp - mid), (0, midp - mid))),
        s5=_pad_cols(s5, midp), b5=_pad_cols(b5, midp),
    )
    return kparams, torch_params


# ---------------- pure-JAX reference (validation only) ----------------

def ref_forward(x, tp):
    def conv(x, w, stride=1, pad=0, groups=1):
        return jax.lax.conv_general_dilated(
            x, w, window_strides=(stride, stride), padding=((pad, pad), (pad, pad)),
            dimension_numbers=("NCHW", "OIHW", "NCHW"), feature_group_count=groups)

    def bn(x, bnp):
        gamma, beta, mean, var = bnp
        s = gamma / jnp.sqrt(var + EPS)
        return x * s[None, :, None, None] + (beta - mean * s)[None, :, None, None]

    relu = lambda z: jnp.maximum(z, 0.0)
    cin = x.shape[1]
    mid = tp["w2"].shape[0]
    out1 = bn(conv(x, tp["w1"], stride=2, pad=1, groups=cin), tp["bn1"])
    out1 = relu(bn(conv(out1, tp["w2"]), tp["bn2"]))
    out2 = relu(bn(conv(x, tp["w3"]), tp["bn3"]))
    out2 = bn(conv(out2, tp["w4"], stride=2, pad=1, groups=mid), tp["bn4"])
    out2 = relu(bn(conv(out2, tp["w5"]), tp["bn5"]))
    out = jnp.concatenate([out1, out2], axis=1)
    n, c, h, w = out.shape
    g = 2
    return out.reshape(n, g, c // g, h, w).transpose(0, 2, 1, 3, 4).reshape(n, c, h, w)


if __name__ == "__main__":
    key = jax.random.PRNGKey(0)
    in_channels, out_channels = 4, 8
    n, h, w = 2, 16, 16
    mid = out_channels // 2

    kx, kp = jax.random.split(key)
    x = jax.random.normal(kx, (n, in_channels, h, w), jnp.float32)
    kparams, torch_params = init_params(kp, in_channels, out_channels)

    fwd = jax.jit(functools.partial(downblock_forward, mid=mid))
    out = jax.block_until_ready(fwd(x, kparams))

    assert out.shape == (n, out_channels, h // 2, w // 2), out.shape

    ref = ref_forward(x, torch_params)
    err = float(jnp.max(jnp.abs(out - ref)))
    assert err < 1e-4, f"max abs err {err}"

    print("KERNEL_OK")
</pallas_src>

<mosaic_0001>
module attributes {stable_mosaic.version = 11 : i64} {
  func.func @downblock_kernel(%arg0: i32, %arg1: memref<4x9x16x4xf32, #tpu.memory_space<vmem>>, %arg2: memref<4x9x16x1xf32, #tpu.memory_space<vmem>>, %arg3: memref<9x1x4xf32, #tpu.memory_space<vmem>>, %arg4: memref<1x4xf32, #tpu.memory_space<vmem>>, %arg5: memref<1x4xf32, #tpu.memory_space<vmem>>, %arg6: memref<4x128xf32, #tpu.memory_space<vmem>>, %arg7: memref<1x128xf32, #tpu.memory_space<vmem>>, %arg8: memref<1x128xf32, #tpu.memory_space<vmem>>, %arg9: memref<4x128xf32, #tpu.memory_space<vmem>>, %arg10: memref<1x128xf32, #tpu.memory_space<vmem>>, %arg11: memref<1x128xf32, #tpu.memory_space<vmem>>, %arg12: memref<9x1x128xf32, #tpu.memory_space<vmem>>, %arg13: memref<1x128xf32, #tpu.memory_space<vmem>>, %arg14: memref<1x128xf32, #tpu.memory_space<vmem>>, %arg15: memref<128x128xf32, #tpu.memory_space<vmem>>, %arg16: memref<1x128xf32, #tpu.memory_space<vmem>>, %arg17: memref<1x128xf32, #tpu.memory_space<vmem>>, %arg18: memref<1x64x256xf32, #tpu.memory_space<vmem>>, %arg19: memref<4x9x16x128xf32, #tpu.memory_space<vmem>>) attributes {dimension_semantics = [#tpu.dimension_semantics<parallel>], iteration_bounds = array<i64: 2>, scalar_prefetch = 0 : i64, scratch_operands = 1 : i64, tpu.core_type = #tpu.core_type<tc>, window_params = [{transform_indices = @transform_0, window_bounds = array<i64: 4, 9, 16, 4>}, {pipeline_mode = #tpu.pipeline_mode<synchronous>, transform_indices = @transform_1, window_bounds = array<i64: 4, 9, 16, 1>}, {pipeline_mode = #tpu.pipeline_mode<synchronous>, transform_indices = @transform_2, window_bounds = array<i64: 9, 1, 4>}, {pipeline_mode = #tpu.pipeline_mode<synchronous>, transform_indices = @transform_3, window_bounds = array<i64: 1, 4>}, {pipeline_mode = #tpu.pipeline_mode<synchronous>, transform_indices = @transform_4, window_bounds = array<i64: 1, 4>}, {pipeline_mode = #tpu.pipeline_mode<synchronous>, transform_indices = @transform_5, window_bounds = array<i64: 4, 128>}, {pipeline_mode = #tpu.pipeline_mode<synchronous>, transform_indices = @transform_6, window_bounds = array<i64: 1, 128>}, {pipeline_mode = #tpu.pipeline_mode<synchronous>, transform_indices = @transform_7, window_bounds = array<i64: 1, 128>}, {pipeline_mode = #tpu.pipeline_mode<synchronous>, transform_indices = @transform_8, window_bounds = array<i64: 4, 128>}, {pipeline_mode = #tpu.pipeline_mode<synchronous>, transform_indices = @transform_9, window_bounds = array<i64: 1, 128>}, {pipeline_mode = #tpu.pipeline_mode<synchronous>, transform_indices = @transform_10, window_bounds = array<i64: 1, 128>}, {pipeline_mode = #tpu.pipeline_mode<synchronous>, transform_indices = @transform_11, window_bounds = array<i64: 9, 1, 128>}, {pipeline_mode = #tpu.pipeline_mode<synchronous>, transform_indices = @transform_12, window_bounds = array<i64: 1, 128>}, {pipeline_mode = #tpu.pipeline_mode<synchronous>, transform_indices = @transform_13, window_bounds = array<i64: 1, 128>}, {pipeline_mode = #tpu.pipeline_mode<synchronous>, transform_indices = @transform_14, window_bounds = array<i64: 128, 128>}, {pipeline_mode = #tpu.pipeline_mode<synchronous>, transform_indices = @transform_15, window_bounds = array<i64: 1, 128>}, {pipeline_mode = #tpu.pipeline_mode<synchronous>, transform_indices = @transform_16, window_bounds = array<i64: 1, 128>}, {transform_indices = @transform_17, window_bounds = array<i64: 1, 64, 256>}]} {
    %c0 = arith.constant 0 : index
    %c0_0 = arith.constant 0 : index
    %c0_1 = arith.constant 0 : index
    %c0_2 = arith.constant 0 : index
    %0 = vector.load %arg1[%c0, %c0_0, %c0_1, %c0_2] : memref<4x9x16x4xf32, #tpu.memory_space<vmem>>, vector<4x9x16x4xf32>
    %1 = vector.shape_cast %0 : vector<4x9x16x4xf32> to vector<576x4xf32>
    %c0_3 = arith.constant 0 : index
    %c0_4 = arith.constant 0 : index
    %2 = vector.load %arg9[%c0_3, %c0_4] : memref<4x128xf32, #tpu.memory_space<vmem>>, vector<4x128xf32>
    %cst = arith.constant dense<0.000000e+00> : vector<576x128xf32>
    %3 = tpu.matmul %1, %2, %cst {dimension_numbers = #tpu.dot_dimension_numbers<[1], [0], [0], [1], [0, 0, 1, 1], [], []>} : vector<576x4xf32>, vector<4x128xf32>, vector<576x128xf32> -> vector<576x128xf32>
    %c0_5 = arith.constant 0 : index
    %c0_6 = arith.constant 0 : index
    %4 = vector.load %arg10[%c0_5, %c0_6] : memref<1x128xf32, #tpu.memory_space<vmem>>, vector<1x128xf32>
    %5 = vector.broadcast %4 : vector<1x128xf32> to vector<576x128xf32>
    %6 = arith.mulf %3, %5 : vector<576x128xf32>
    %c0_7 = arith.constant 0 : index
    %c0_8 = arith.constant 0 : index
    %7 = vector.load %arg11[%c0_7, %c0_8] : memref<1x128xf32, #tpu.memory_space<vmem>>, vector<1x128xf32>
    %8 = vector.broadcast %7 : vector<1x128xf32> to vector<576x128xf32>
    %9 = arith.addf %6, %8 : vector<576x128xf32>
    %cst_9 = arith.constant 0.000000e+00 : f32
    %10 = vector.broadcast %cst_9 : f32 to vector<576x128xf32>
    %11 = arith.maximumf %9, %10 : vector<576x128xf32>
    %12 = vector.shape_cast %11 : vector<576x128xf32> to vector<4x9x16x128xf32>
    %c0_10 = arith.constant 0 : index
    %c0_11 = arith.constant 0 : index
    %c0_12 = arith.constant 0 : index
    %c0_13 = arith.constant 0 : index
    %13 = vector.load %arg2[%c0_10, %c0_11, %c0_12, %c0_13] : memref<4x9x16x1xf32, #tpu.memory_space<vmem>>, vector<4x9x16x1xf32>
    %14 = vector.broadcast %13 : vector<4x9x16x1xf32> to vector<4x9x16x128xf32>
    %15 = arith.mulf %12, %14 : vector<4x9x16x128xf32>
    %c0_14 = arith.constant 0 : index
    %c0_15 = arith.constant 0 : index
    %c0_16 = arith.constant 0 : index
    %c0_17 = arith.constant 0 : index
    %16 = vector.load %arg19[%c0_14, %c0_15, %c0_16, %c0_17] : memref<4x9x16x128xf32, #tpu.memory_space<vmem>>, vector<4x9x16x128xf32>
    tpu.vector_store %arg19[%c0_14, %c0_15, %c0_16, %c0_17], %15 {strides = array<i32>} : memref<4x9x16x128xf32, #tpu.memory_space<vmem>>, vector<4x9x16x128xf32>,
    %c0_18 = arith.constant 0 : index
    %c0_19 = arith.constant 0 : index
    %c0_20 = arith.constant 0 : index
    %c0_21 = arith.constant 0 : index
    %17 = vector.load %arg1[%c0_18, %c0_19, %c0_20, %c0_21] : memref<4x9x16x4xf32, #tpu.memory_space<vmem>>, vector<1x8x8x4xf32>
    %18 = vector.shape_cast %17 : vector<1x8x8x4xf32> to vector<8x8x4xf32>
    %c0_22 = arith.constant 0 : index
    %c0_23 = arith.constant 0 : index
    %c0_24 = arith.constant 0 : index
    %19 = vector.load %arg3[%c0_22, %c0_23, %c0_24] : memref<9x1x4xf32, #tpu.memory_space<vmem>>, vector<1x1x4xf32>
    %20 = vector.shape_cast %19 : vector<1x1x4xf32> to vector<1x4xf32>
    %21 = vector.shape_cast %20 : vector<1x4xf32> to vector<1x1x4xf32>
    %22 = vector.broadcast %21 : vector<1x1x4xf32> to vector<8x8x4xf32>
    %23 = arith.mulf %18, %22 : vector<8x8x4xf32>
    %c1 = arith.constant 1 : index
    %c0_25 = arith.constant 0 : index
    %c0_26 = arith.constant 0 : index
    %c0_27 = arith.constant 0 : index
    %24 = vector.load %arg1[%c1, %c0_25, %c0_26, %c0_27] : memref<4x9x16x4xf32, #tpu.memory_space<vmem>>, vector<1x8x8x4xf32>
    %25 = vector.shape_cast %24 : vector<1x8x8x4xf32> to vector<8x8x4xf32>
    %c1_28 = arith.constant 1 : index
    %c0_29 = arith.constant 0 : index
    %c0_30 = arith.constant 0 : index
    %26 = vector.load %arg3[%c1_28, %c0_29, %c0_30] : memref<9x1x4xf32, #tpu.memory_space<vmem>>, vector<1x1x4xf32>
    %27 = vector.shape_cast %26 : vector<1x1x4xf32> to vector<1x4xf32>
    %28 = vector.shape_cast %27 : vector<1x4xf32> to vector<1x1x4xf32>
    %29 = vector.broadcast %28 : vector<1x1x4xf32> to vector<8x8x4xf32>
    %30 = arith.mulf %25, %29 : vector<8x8x4xf32>
    %31 = arith.addf %23, %30 : vector<8x8x4xf32>
    %c0_31 = arith.constant 0 : index
    %c0_32 = arith.constant 0 : index
    %c1_33 = arith.constant 1 : index
    %c0_34 = arith.constant 0 : index
    %32 = vector.load %arg1[%c0_31, %c0_32, %c1_33, %c0_34] : memref<4x9x16x4xf32, #tpu.memory_space<vmem>>, vector<1x8x8x4xf32>
    %33 = vector.shape_cast %32 : vector<1x8x8x4xf32> to vector<8x8x4xf32>
    %c2 = arith.constant 2 : index
    %c0_35 = arith.constant 0 : index
    %c0_36 = arith.constant 0 : index
    %34 = vector.load %arg3[%c2, %c0_35, %c0_36] : memref<9x1x4xf32, #tpu.memory_space<vmem>>, vector<1x1x4xf32>
    %35 = vector.shape_cast %34 : vector<1x1x4xf32> to vector<1x4xf32>
    %36 = vector.shape_cast %35 : vector<1x4xf32> to vector<1x1x4xf32>
    %37 = vector.broadcast %36 : vector<1x1x4xf32> to vector<8x8x4xf32>
    %38 = arith.mulf %33, %37 : vector<8x8x4xf32>
    %39 = arith.addf %31, %38 : vector<8x8x4xf32>
    %c2_37 = arith.constant 2 : index
    %c0_38 = arith.constant 0 : index
    %c0_39 = arith.constant 0 : index
    %c0_40 = arith.constant 0 : index
    %40 = vector.load %arg1[%c2_37, %c0_38, %c0_39, %c0_40] : memref<4x9x16x4xf32, #tpu.memory_space<vmem>>, vector<1x8x8x4xf32>
    %41 = vector.shape_cast %40 : vector<1x8x8x4xf32> to vector<8x8x4xf32>
    %c3 = arith.constant 3 : index
    %c0_41 = arith.constant 0 : index
    %c0_42 = arith.constant 0 : index
    %42 = vector.load %arg3[%c3, %c0_41, %c0_42] : memref<9x1x4xf32, #tpu.memory_space<vmem>>, vector<1x1x4xf32>
    %43 = vector.shape_cast %42 : vector<1x1x4xf32> to vector<1x4xf32>
    %44 = vector.shape_cast %43 : vector<1x4xf32> to vector<1x1x4xf32>
    %45 = vector.broadcast %44 : vector<1x1x4xf32> to vector<8x8x4xf32>
    %46 = arith.mulf %41, %45 : vector<8x8x4xf32>
    %47 = arith.addf %39, %46 : vector<8x8x4xf32>
    %c3_43 = arith.constant 3 : index
    %c0_44 = arith.constant 0 : index
    %c0_45 = arith.constant 0 : index
    %c0_46 = arith.constant 0 : index
    %48 = vector.load %arg1[%c3_43, %c0_44, %c0_45, %c0_46] : memref<4x9x16x4xf32, #tpu.memory_space<vmem>>, vector<1x8x8x4xf32>
    %49 = vector.shape_cast %48 : vector<1x8x8x4xf32> to vector<8x8x4xf32>
    %c4 = arith.constant 4 : index
    %c0_47 = arith.constant 0 : index
    %c0_48 = arith.constant 0 : index
    %50 = vector.load %arg3[%c4, %c0_47, %c0_48] : memref<9x1x4xf32, #tpu.memory_space<vmem>>, vector<1x1x4xf32>
    %51 = vector.shape_cast %50 : vector<1x1x4xf32> to vector<1x4xf32>
    %52 = vector.shape_cast %51 : vector<1x4xf32> to vector<1x1x4xf32>
    %53 = vector.broadcast %52 : vector<1x1x4xf32> to vector<8x8x4xf32>
    %54 = arith.mulf %49, %53 : vector<8x8x4xf32>
    %55 = arith.addf %47, %54 : vector<8x8x4xf32>
    %c2_49 = arith.constant 2 : index
    %c0_50 = arith.constant 0 : index
    %c1_51 = arith.constant 1 : index
    %c0_52 = arith.constant 0 : index
    %56 = vector.load %arg1[%c2_49, %c0_50, %c1_51, %c0_52] : memref<4x9x16x4xf32, #tpu.memory_space<vmem>>, vector<1x8x8x4xf32>
    %57 = vector.shape_cast %56 : vector<1x8x8x4xf32> to vector<8x8x4xf32>
    %c5 = arith.constant 5 : index
    %c0_53 = arith.constant 0 : index
    %c0_54 = arith.constant 0 : index
    %58 = vector.load %arg3[%c5, %c0_53, %c0_54] : memref<9x1x4xf32, #tpu.memory_space<vmem>>, vector<1x1x4xf32>
    %59 = vector.shape_cast %58 : vector<1x1x4xf32> to vector<1x4xf32>
    %60 = vector.shape_cast %59 : vector<1x4xf32> to vector<1x1x4xf32>
    %61 = vector.broadcast %60 : vector<1x1x4xf32> to vector<8x8x4xf32>
    %62 = arith.mulf %57, %61 : vector<8x8x4xf32>
    %63 = arith.addf %55, %62 : vector<8x8x4xf32>
    %c0_55 = arith.constant 0 : index
    %c1_56 = arith.constant 1 : index
    %c0_57 = arith.constant 0 : index
    %c0_58 = arith.constant 0 : index
    %64 = vector.load %arg1[%c0_55, %c1_56, %c0_57, %c0_58] : memref<4x9x16x4xf32, #tpu.memory_space<vmem>>, vector<1x8x8x4xf32>
    %65 = vector.shape_cast %64 : vector<1x8x8x4xf32> to vector<8x8x4xf32>
    %c6 = arith.constant 6 : index
    %c0_59 = arith.constant 0 : index
    %c0_60 = arith.constant 0 : index
    %66 = vector.load %arg3[%c6, %c0_59, %c0_60] : memref<9x1x4xf32, #tpu.memory_space<vmem>>, vector<1x1x4xf32>
    %67 = vector.shape_cast %66 : vector<1x1x4xf32> to vector<1x4xf32>
    %68 = vector.shape_cast %67 : vector<1x4xf32> to vector<1x1x4xf32>
    %69 = vector.broadcast %68 : vector<1x1x4xf32> to vector<8x8x4xf32>
    %70 = arith.mulf %65, %69 : vector<8x8x4xf32>
    %71 = arith.addf %63, %70 : vector<8x8x4xf32>
    %c1_61 = arith.constant 1 : index
    %c1_62 = arith.constant 1 : index
    %c0_63 = arith.constant 0 : index
    %c0_64 = arith.constant 0 : index
    %72 = vector.load %arg1[%c1_61, %c1_62, %c0_63, %c0_64] : memref<4x9x16x4xf32, #tpu.memory_space<vmem>>, vector<1x8x8x4xf32>
    %73 = vector.shape_cast %72 : vector<1x8x8x4xf32> to vector<8x8x4xf32>
    %c7 = arith.constant 7 : index
    %c0_65 = arith.constant 0 : index
    %c0_66 = arith.constant 0 : index
    %74 = vector.load %arg3[%c7, %c0_65, %c0_66] : memref<9x1x4xf32, #tpu.memory_space<vmem>>, vector<1x1x4xf32>
    %75 = vector.shape_cast %74 : vector<1x1x4xf32> to vector<1x4xf32>
    %76 = vector.shape_cast %75 : vector<1x4xf32> to vector<1x1x4xf32>
    %77 = vector.broadcast %76 : vector<1x1x4xf32> to vector<8x8x4xf32>
    %78 = arith.mulf %73, %77 : vector<8x8x4xf32>
    %79 = arith.addf %71, %78 : vector<8x8x4xf32>
    %c0_67 = arith.constant 0 : index
    %c1_68 = arith.constant 1 : index
    %c1_69 = arith.constant 1 : index
    %c0_70 = arith.constant 0 : index
    %80 = vector.load %arg1[%c0_67, %c1_68, %c1_69, %c0_70] : memref<4x9x16x4xf32, #tpu.memory_space<vmem>>, vector<1x8x8x4xf32>
    %81 = vector.shape_cast %80 : vector<1x8x8x4xf32> to vector<8x8x4xf32>
    %c8 = arith.constant 8 : index
    %c0_71 = arith.constant 0 : index
    %c0_72 = arith.constant 0 : index
    %82 = vector.load %arg3[%c8, %c0_71, %c0_72] : memref<9x1x4xf32, #tpu.memory_space<vmem>>, vector<1x1x4xf32>
    %83 = vector.shape_cast %82 : vector<1x1x4xf32> to vector<1x4xf32>
    %84 = vector.shape_cast %83 : vector<1x4xf32> to vector<1x1x4xf32>
    %85 = vector.broadcast %84 : vector<1x1x4xf32> to vector<8x8x4xf32>
    %86 = arith.mulf %81, %85 : vector<8x8x4xf32>
    %87 = arith.addf %79, %86 : vector<8x8x4xf32>
    %88 = vector.shape_cast %87 : vector<8x8x4xf32> to vector<64x4xf32>
    %c0_73 = arith.constant 0 : index
    %c0_74 = arith.constant 0 : index
    %89 = vector.load %arg4[%c0_73, %c0_74] : memref<1x4xf32, #tpu.memory_space<vmem>>, vector<1x4xf32>
    %90 = vector.broadcast %89 : vector<1x4xf32> to vector<64x4xf32>
    %91 = arith.mulf %88, %90 : vector<64x4xf32>
    %c0_75 = arith.constant 0 : index
    %c0_76 = arith.constant 0 : index
    %92 = vector.load %arg5[%c0_75, %c0_76] : memref<1x4xf32, #tpu.memory_space<vmem>>, vector<1x4xf32>
    %93 = vector.broadcast %92 : vector<1x4xf32> to vector<64x4xf32>
    %94 = arith.addf %91, %93 : vector<64x4xf32>
    %c0_77 = arith.constant 0 : index
    %c0_78 = arith.constant 0 : index
    %95 = vector.load %arg6[%c0_77, %c0_78] : memref<4x128xf32, #tpu.memory_space<vmem>>, vector<4x128xf32>
    %cst_79 = arith.constant dense<0.000000e+00> : vector<64x128xf32>
    %96 = tpu.matmul %94, %95, %cst_79 {dimension_numbers = #tpu.dot_dimension_numbers<[1], [0], [0], [1], [0, 0, 1, 1], [], []>} : vector<64x4xf32>, vector<4x128xf32>, vector<64x128xf32> -> vector<64x128xf32>
    %c0_80 = arith.constant 0 : index
    %c0_81 = arith.constant 0 : index
    %97 = vector.load %arg7[%c0_80, %c0_81] : memref<1x128xf32, #tpu.memory_space<vmem>>, vector<1x128xf32>
    %98 = vector.broadcast %97 : vector<1x128xf32> to vector<64x128xf32>
    %99 = arith.mulf %96, %98 : vector<64x128xf32>
    %c0_82 = arith.constant 0 : index
    %c0_83 = arith.constant 0 : index
    %100 = vector.load %arg8[%c0_82, %c0_83] : memref<1x128xf32, #tpu.memory_space<vmem>>, vector<1x128xf32>
    %101 = vector.broadcast %100 : vector<1x128xf32> to vector<64x128xf32>
    %102 = arith.addf %99, %101 : vector<64x128xf32>
    %cst_84 = arith.constant 0.000000e+00 : f32
    %103 = vector.broadcast %cst_84 : f32 to vector<64x128xf32>
    %104 = arith.maximumf %102, %103 : vector<64x128xf32>
    %c0_85 = arith.constant 0 : index
    %c0_86 = arith.constant 0 : index
    %c0_87 = arith.constant 0 : index
    %c0_88 = arith.constant 0 : index
    %105 = vector.load %arg19[%c0_85, %c0_86, %c0_87, %c0_88] : memref<4x9x16x128xf32, #tpu.memory_space<vmem>>, vector<1x8x8x128xf32>
    %106 = vector.shape_cast %105 : vector<1x8x8x128xf32> to vector<8x8x128xf32>
    %c0_89 = arith.constant 0 : index
    %c0_90 = arith.constant 0 : index
    %c0_91 = arith.constant 0 : index
    %107 = vector.load %arg12[%c0_89, %c0_90, %c0_91] : memref<9x1x128xf32, #tpu.memory_space<vmem>>, vector<1x1x128xf32>
    %108 = vector.shape_cast %107 : vector<1x1x128xf32> to vector<1x128xf32>
    %109 = vector.shape_cast %108 : vector<1x128xf32> to vector<1x1x128xf32>
    %110 = vector.broadcast %109 : vector<1x1x128xf32> to vector<8x8x128xf32>
    %111 = arith.mulf %106, %110 : vector<8x8x128xf32>
    %c1_92 = arith.constant 1 : index
    %c0_93 = arith.constant 0 : index
    %c0_94 = arith.constant 0 : index
    %c0_95 = arith.constant 0 : index
    %112 = vector.load %arg19[%c1_92, %c0_93, %c0_94, %c0_95] : memref<4x9x16x128xf32, #tpu.memory_space<vmem>>, vector<1x8x8x128xf32>
    %113 = vector.shape_cast %112 : vector<1x8x8x128xf32> to vector<8x8x128xf32>
    %c1_96 = arith.constant 1 : index
    %c0_97 = arith.constant 0 : index
    %c0_98 = arith.constant 0 : index
    %114 = vector.load %arg12[%c1_96, %c0_97, %c0_98] : memref<9x1x128xf32, #tpu.memory_space<vmem>>, vector<1x1x128xf32>
    %115 = vector.shape_cast %114 : vector<1x1x128xf32> to vector<1x128xf32>
    %116 = vector.shape_cast %115 : vector<1x128xf32> to vector<1x1x128xf32>
    %117 = vector.broadcast %116 : vector<1x1x128xf32> to vector<8x8x128xf32>
    %118 = arith.mulf %113, %117 : vector<8x8x128xf32>
    %119 = arith.addf %111, %118 : vector<8x8x128xf32>
    %c0_99 = arith.constant 0 : index
    %c0_100 = arith.constant 0 : index
    %c1_101 = arith.constant 1 : index
    %c0_102 = arith.constant 0 : index
    %120 = vector.load %arg19[%c0_99, %c0_100, %c1_101, %c0_102] : memref<4x9x16x128xf32, #tpu.memory_space<vmem>>, vector<1x8x8x128xf32>
    %121 = vector.shape_cast %120 : vector<1x8x8x128xf32> to vector<8x8x128xf32>
    %c2_103 = arith.constant 2 : index
    %c0_104 = arith.constant 0 : index
    %c0_105 = arith.constant 0 : index
    %122 = vector.load %arg12[%c2_103, %c0_104, %c0_105] : memref<9x1x128xf32, #tpu.memory_space<vmem>>, vector<1x1x128xf32>
    %123 = vector.shape_cast %122 : vector<1x1x128xf32> to vector<1x128xf32>
    %124 = vector.shape_cast %123 : vector<1x128xf32> to vector<1x1x128xf32>
    %125 = vector.broadcast %124 : vector<1x1x128xf32> to vector<8x8x128xf32>
    %126 = arith.mulf %121, %125 : vector<8x8x128xf32>
    %127 = arith.addf %119, %126 : vector<8x8x128xf32>
    %c2_106 = arith.constant 2 : index
    %c0_107 = arith.constant 0 : index
    %c0_108 = arith.constant 0 : index
    %c0_109 = arith.constant 0 : index
    %128 = vector.load %arg19[%c2_106, %c0_107, %c0_108, %c0_109] : memref<4x9x16x128xf32, #tpu.memory_space<vmem>>, vector<1x8x8x128xf32>
    %129 = vector.shape_cast %128 : vector<1x8x8x128xf32> to vector<8x8x128xf32>
    %c3_110 = arith.constant 3 : index
    %c0_111 = arith.constant 0 : index
    %c0_112 = arith.constant 0 : index
    %130 = vector.load %arg12[%c3_110, %c0_111, %c0_112] : memref<9x1x128xf32, #tpu.memory_space<vmem>>, vector<1x1x128xf32>
    %131 = vector.shape_cast %130 : vector<1x1x128xf32> to vector<1x128xf32>
    %132 = vector.shape_cast %131 : vector<1x128xf32> to vector<1x1x128xf32>
    %133 = vector.broadcast %132 : vector<1x1x128xf32> to vector<8x8x128xf32>
    %134 = arith.mulf %129, %133 : vector<8x8x128xf32>
    %135 = arith.addf %127, %134 : vector<8x8x128xf32>
    %c3_113 = arith.constant 3 : index
    %c0_114 = arith.constant 0 : index
    %c0_115 = arith.constant 0 : index
    %c0_116 = arith.constant 0 : index
    %136 = vector.load %arg19[%c3_113, %c0_114, %c0_115, %c0_116] : memref<4x9x16x128xf32, #tpu.memory_space<vmem>>, vector<1x8x8x128xf32>
    %137 = vector.shape_cast %136 : vector<1x8x8x128xf32> to vector<8x8x128xf32>
    %c4_117 = arith.constant 4 : index
    %c0_118 = arith.constant 0 : index
    %c0_119 = arith.constant 0 : index
    %138 = vector.load %arg12[%c4_117, %c0_118, %c0_119] : memref<9x1x128xf32, #tpu.memory_space<vmem>>, vector<1x1x128xf32>
    %139 = vector.shape_cast %138 : vector<1x1x128xf32> to vector<1x128xf32>
    %140 = vector.shape_cast %139 : vector<1x128xf32> to vector<1x1x128xf32>
    %141 = vector.broadcast %140 : vector<1x1x128xf32> to vector<8x8x128xf32>
    %142 = arith.mulf %137, %141 : vector<8x8x128xf32>
    %143 = arith.addf %135, %142 : vector<8x8x128xf32>
    %c2_120 = arith.constant 2 : index
    %c0_121 = arith.constant 0 : index
    %c1_122 = arith.constant 1 : index
    %c0_123 = arith.constant 0 : index
    %144 = vector.load %arg19[%c2_120, %c0_121, %c1_122, %c0_123] : memref<4x9x16x128xf32, #tpu.memory_space<vmem>>, vector<1x8x8x128xf32>
    %145 = vector.shape_cast %144 : vector<1x8x8x128xf32> to vector<8x8x128xf32>
    %c5_124 = arith.constant 5 : index
    %c0_125 = arith.constant 0 : index
    %c0_126 = arith.constant 0 : index
    %146 = vector.load %arg12[%c5_124, %c0_125, %c0_126] : memref<9x1x128xf32, #tpu.memory_space<vmem>>, vector<1x1x128xf32>
    %147 = vector.shape_cast %146 : vector<1x1x128xf32> to vector<1x128xf32>
    %148 = vector.shape_cast %147 : vector<1x128xf32> to vector<1x1x128xf32>
    %149 = vector.broadcast %148 : vector<1x1x128xf32> to vector<8x8x128xf32>
    %150 = arith.mulf %145, %149 : vector<8x8x128xf32>
    %151 = arith.addf %143, %150 : vector<8x8x128xf32>
    %c0_127 = arith.constant 0 : index
    %c1_128 = arith.constant 1 : index
    %c0_129 = arith.constant 0 : index
    %c0_130 = arith.constant 0 : index
    %152 = vector.load %arg19[%c0_127, %c1_128, %c0_129, %c0_130] : memref<4x9x16x128xf32, #tpu.memory_space<vmem>>, vector<1x8x8x128xf32>
    %153 = vector.shape_cast %152 : vector<1x8x8x128xf32> to vector<8x8x128xf32>
    %c6_131 = arith.constant 6 : index
    %c0_132 = arith.constant 0 : index
    %c0_133 = arith.constant 0 : index
    %154 = vector.load %arg12[%c6_131, %c0_132, %c0_133] : memref<9x1x128xf32, #tpu.memory_space<vmem>>, vector<1x1x128xf32>
    %155 = vector.shape_cast %154 : vector<1x1x128xf32> to vector<1x128xf32>
    %156 = vector.shape_cast %155 : vector<1x128xf32> to vector<1x1x128xf32>
    %157 = vector.broadcast %156 : vector<1x1x128xf32> to vector<8x8x128xf32>
    %158 = arith.mulf %153, %157 : vector<8x8x128xf32>
    %159 = arith.addf %151, %158 : vector<8x8x128xf32>
    %c1_134 = arith.constant 1 : index
    %c1_135 = arith.constant 1 : index
    %c0_136 = arith.constant 0 : index
    %c0_137 = arith.constant 0 : index
    %160 = vector.load %arg19[%c1_134, %c1_135, %c0_136, %c0_137] : memref<4x9x16x128xf32, #tpu.memory_space<vmem>>, vector<1x8x8x128xf32>
    %161 = vector.shape_cast %160 : vector<1x8x8x128xf32> to vector<8x8x128xf32>
    %c7_138 = arith.constant 7 : index
    %c0_139 = arith.constant 0 : index
    %c0_140 = arith.constant 0 : index
    %162 = vector.load %arg12[%c7_138, %c0_139, %c0_140] : memref<9x1x128xf32, #tpu.memory_space<vmem>>, vector<1x1x128xf32>
    %163 = vector.shape_cast %162 : vector<1x1x128xf32> to vector<1x128xf32>
    %164 = vector.shape_cast %163 : vector<1x128xf32> to vector<1x1x128xf32>
    %165 = vector.broadcast %164 : vector<1x1x128xf32> to vector<8x8x128xf32>
    %166 = arith.mulf %161, %165 : vector<8x8x128xf32>
    %167 = arith.addf %159, %166 : vector<8x8x128xf32>
    %c0_141 = arith.constant 0 : index
    %c1_142 = arith.constant 1 : index
    %c1_143 = arith.constant 1 : index
    %c0_144 = arith.constant 0 : index
    %168 = vector.load %arg19[%c0_141, %c1_142, %c1_143, %c0_144] : memref<4x9x16x128xf32, #tpu.memory_space<vmem>>, vector<1x8x8x128xf32>
    %169 = vector.shape_cast %168 : vector<1x8x8x128xf32> to vector<8x8x128xf32>
    %c8_145 = arith.constant 8 : index
    %c0_146 = arith.constant 0 : index
    %c0_147 = arith.constant 0 : index
    %170 = vector.load %arg12[%c8_145, %c0_146, %c0_147] : memref<9x1x128xf32, #tpu.memory_space<vmem>>, vector<1x1x128xf32>
    %171 = vector.shape_cast %170 : vector<1x1x128xf32> to vector<1x128xf32>
    %172 = vector.shape_cast %171 : vector<1x128xf32> to vector<1x1x128xf32>
    %173 = vector.broadcast %172 : vector<1x1x128xf32> to vector<8x8x128xf32>
    %174 = arith.mulf %169, %173 : vector<8x8x128xf32>
    %175 = arith.addf %167, %174 : vector<8x8x128xf32>
    %176 = vector.shape_cast %175 : vector<8x8x128xf32> to vector<64x128xf32>
    %c0_148 = arith.constant 0 : index
    %c0_149 = arith.constant 0 : index
    %177 = vector.load %arg13[%c0_148, %c0_149] : memref<1x128xf32, #tpu.memory_space<vmem>>, vector<1x128xf32>
    %178 = vector.broadcast %177 : vector<1x128xf32> to vector<64x128xf32>
    %179 = arith.mulf %176, %178 : vector<64x128xf32>
    %c0_150 = arith.constant 0 : index
    %c0_151 = arith.constant 0 : index
    %180 = vector.load %arg14[%c0_150, %c0_151] : memref<1x128xf32, #tpu.memory_space<vmem>>, vector<1x128xf32>
    %181 = vector.broadcast %180 : vector<1x128xf32> to vector<64x128xf32>
    %182 = arith.addf %179, %181 : vector<64x128xf32>
    %c0_152 = arith.constant 0 : index
    %c0_153 = arith.constant 0 : index
    %183 = vector.load %arg15[%c0_152, %c0_153] : memref<128x128xf32, #tpu.memory_space<vmem>>, vector<128x128xf32>
    %cst_154 = arith.constant dense<0.000000e+00> : vector<64x128xf32>
    %184 = tpu.matmul %182, %183, %cst_154 {dimension_numbers = #tpu.dot_dimension_numbers<[1], [0], [0], [1], [0, 0, 1, 1], [], []>} : vector<64x128xf32>, vector<128x128xf32>, vector<64x128xf32> -> vector<64x128xf32>
    %c0_155 = arith.constant 0 : index
    %c0_156 = arith.constant 0 : index
    %185 = vector.load %arg16[%c0_155, %c0_156] : memref<1x128xf32, #tpu.memory_space<vmem>>, vector<1x128xf32>
    %186 = vector.broadcast %185 : vector<1x128xf32> to vector<64x128xf32>
    %187 = arith.mulf %184, %186 : vector<64x128xf32>
    %c0_157 = arith.constant 0 : index
    %c0_158 = arith.constant 0 : index
    %188 = vector.load %arg17[%c0_157, %c0_158] : memref<1x128xf32, #tpu.memory_space<vmem>>, vector<1x128xf32>
    %189 = vector.broadcast %188 : vector<1x128xf32> to vector<64x128xf32>
    %190 = arith.addf %187, %189 : vector<64x128xf32>
    %cst_159 = arith.constant 0.000000e+00 : f32
    %191 = vector.broadcast %cst_159 : f32 to vector<64x128xf32>
    %192 = arith.maximumf %190, %191 : vector<64x128xf32>
    %c0_160 = arith.constant 0 : index
    %c0_161 = arith.constant 0 : index
    %c0_162 = arith.constant 0 : index
    %193 = vector.load %arg18[%c0_160, %c0_161, %c0_162] : memref<1x64x256xf32, #tpu.memory_space<vmem>>, vector<1x64x128xf32>
    %194 = vector.shape_cast %193 : vector<1x64x128xf32> to vector<64x128xf32>
    %195 = vector.shape_cast %104 : vector<64x128xf32> to vector<1x64x128xf32>
    tpu.vector_store %arg18[%c0_160, %c0_161, %c0_162], %195 {strides = array<i32>} : memref<1x64x256xf32, #tpu.memory_space<vmem>>, vector<1x64x128xf32>,
    %c0_163 = arith.constant 0 : index
    %c0_164 = arith.constant 0 : index
    %c128 = arith.constant 128 : index
    %196 = vector.load %arg18[%c0_163, %c0_164, %c128] : memref<1x64x256xf32, #tpu.memory_space<vmem>>, vector<1x64x128xf32>
    %197 = vector.shape_cast %196 : vector<1x64x128xf32> to vector<64x128xf32>
    %198 = vector.shape_cast %192 : vector<64x128xf32> to vector<1x64x128xf32>
    tpu.vector_store %arg18[%c0_163, %c0_164, %c128], %198 {strides = array<i32>} : memref<1x64x256xf32, #tpu.memory_space<vmem>>, vector<1x64x128xf32>,
    return
  }
  func.func @transform_0(%arg0: i32) -> (i32, i32, i32, i32) {
    %c0_i32 = arith.constant 0 : i32
    %c0_i32_0 = arith.constant 0 : i32
    %c0_i32_1 = arith.constant 0 : i32
    %c0_i32_2 = arith.constant 0 : i32
    return %arg0, %c0_i32, %c0_i32_0, %c0_i32_1 : i32, i32, i32, i32
  }
  func.func @transform_1(%arg0: i32) -> (i32, i32, i32, i32) {
    %c0_i32 = arith.constant 0 : i32
    %c0_i32_0 = arith.constant 0 : i32
    %c0_i32_1 = arith.constant 0 : i32
    %c0_i32_2 = arith.constant 0 : i32
    %c0_i32_3 = arith.constant 0 : i32
    return %c0_i32, %c0_i32_0, %c0_i32_1, %c0_i32_2 : i32, i32, i32, i32
  }
  func.func @transform_2(%arg0: i32) -> (i32, i32, i32) {
    %c0_i32 = arith.constant 0 : i32
    %c0_i32_0 = arith.constant 0 : i32
    %c0_i32_1 = arith.constant 0 : i32
    %c0_i32_2 = arith.constant 0 : i32
    return %c0_i32, %c0_i32_0, %c0_i32_1 : i32, i32, i32
  }
  func.func @transform_3(%arg0: i32) -> (i32, i32) {
    %c0_i32 = arith.constant 0 : i32
    %c0_i32_0 = arith.constant 0 : i32
    %c0_i32_1 = arith.constant 0 : i32
    return %c0_i32, %c0_i32_0 : i32, i32
  }
  func.func @transform_4(%arg0: i32) -> (i32, i32) {
    %c0_i32 = arith.constant 0 : i32
    %c0_i32_0 = arith.constant 0 : i32
    %c0_i32_1 = arith.constant 0 : i32
    return %c0_i32, %c0_i32_0 : i32, i32
  }
  func.func @transform_5(%arg0: i32) -> (i32, i32) {
    %c0_i32 = arith.constant 0 : i32
    %c0_i32_0 = arith.constant 0 : i32
    %c0_i32_1 = arith.constant 0 : i32
    return %c0_i32, %c0_i32_0 : i32, i32
  }
  func.func @transform_6(%arg0: i32) -> (i32, i32) {
    %c0_i32 = arith.constant 0 : i32
    %c0_i32_0 = arith.constant 0 : i32
    %c0_i32_1 = arith.constant 0 : i32
    return %c0_i32, %c0_i32_0 : i32, i32
  }
  func.func @transform_7(%arg0: i32) -> (i32, i32) {
    %c0_i32 = arith.constant 0 : i32
    %c0_i32_0 = arith.constant 0 : i32
    %c0_i32_1 = arith.constant 0 : i32
    return %c0_i32, %c0_i32_0 : i32, i32
  }
  func.func @transform_8(%arg0: i32) -> (i32, i32) {
    %c0_i32 = arith.constant 0 : i32
    %c0_i32_0 = arith.constant 0 : i32
    %c0_i32_1 = arith.constant 0 : i32
    return %c0_i32, %c0_i32_0 : i32, i32
  }
  func.func @transform_9(%arg0: i32) -> (i32, i32) {
    %c0_i32 = arith.constant 0 : i32
    %c0_i32_0 = arith.constant 0 : i32
    %c0_i32_1 = arith.constant 0 : i32
    return %c0_i32, %c0_i32_0 : i32, i32
  }
  func.func @transform_10(%arg0: i32) -> (i32, i32) {
    %c0_i32 = arith.constant 0 : i32
    %c0_i32_0 = arith.constant 0 : i32
    %c0_i32_1 = arith.constant 0 : i32
    return %c0_i32, %c0_i32_0 : i32, i32
  }
  func.func @transform_11(%arg0: i32) -> (i32, i32, i32) {
    %c0_i32 = arith.constant 0 : i32
    %c0_i32_0 = arith.constant 0 : i32
    %c0_i32_1 = arith.constant 0 : i32
    %c0_i32_2 = arith.constant 0 : i32
    return %c0_i32, %c0_i32_0, %c0_i32_1 : i32, i32, i32
  }
  func.func @transform_12(%arg0: i32) -> (i32, i32) {
    %c0_i32 = arith.constant 0 : i32
    %c0_i32_0 = arith.constant 0 : i32
    %c0_i32_1 = arith.constant 0 : i32
    return %c0_i32, %c0_i32_0 : i32, i32
  }
  func.func @transform_13(%arg0: i32) -> (i32, i32) {
    %c0_i32 = arith.constant 0 : i32
    %c0_i32_0 = arith.constant 0 : i32
    %c0_i32_1 = arith.constant 0 : i32
    return %c0_i32, %c0_i32_0 : i32, i32
  }
  func.func @transform_14(%arg0: i32) -> (i32, i32) {
    %c0_i32 = arith.constant 0 : i32
    %c0_i32_0 = arith.constant 0 : i32
    %c0_i32_1 = arith.constant 0 : i32
    return %c0_i32, %c0_i32_0 : i32, i32
  }
  func.func @transform_15(%arg0: i32) -> (i32, i32) {
    %c0_i32 = arith.constant 0 : i32
    %c0_i32_0 = arith.constant 0 : i32
    %c0_i32_1 = arith.constant 0 : i32
    return %c0_i32, %c0_i32_0 : i32, i32
  }
  func.func @transform_16(%arg0: i32) -> (i32, i32) {
    %c0_i32 = arith.constant 0 : i32
    %c0_i32_0 = arith.constant 0 : i32
    %c0_i32_1 = arith.constant 0 : i32
    return %c0_i32, %c0_i32_0 : i32, i32
  }
  func.func @transform_17(%arg0: i32) -> (i32, i32, i32) {
    %c0_i32 = arith.constant 0 : i32
    %c0_i32_0 = arith.constant 0 : i32
    %c0_i32_1 = arith.constant 0 : i32
    return %arg0, %c0_i32, %c0_i32_0 : i32, i32, i32
  }
}

</mosaic_0001>

<llo_original>
// kernel: downblock_forward.1
$region0: #{downblock_forward.1}
  #allocation0 [shape = 'u32[]', space=smem, size = 0x4, offset = 0x4, fixed_abs, tag = 'smem constant byte address 0x4 - core index']
  #allocation1 [shape = 'u32[144,128]{1,0:T(1,128)}', space=vmem, size = 0x12000, scoped, tag = 'internal scratch']
  #allocation2 [shape = 'f32[4,9,16,128]{3,2,1,0:T(8,128)}', space=vmem, size = 0x48000, scoped, tag = 'scratch operand']
  %s0 = inlined_call_operand.vmem [shape: f32[8,9,16,4], index: 0, kind: input, shape index: {}]
  %s1 = inlined_call_operand.vmem [shape: f32[4,9,16,1], index: 1, kind: input, shape index: {}]
  %s2 = inlined_call_operand.vmem [shape: f32[9,1,4], index: 2, kind: input, shape index: {}]
  %s3 = inlined_call_operand.vmem [shape: f32[1,4], index: 3, kind: input, shape index: {}]
  %s4 = inlined_call_operand.vmem [shape: f32[1,4], index: 4, kind: input, shape index: {}]
  %s5 = inlined_call_operand.vmem [shape: f32[4,128], index: 5, kind: input, shape index: {}]
  %s6 = inlined_call_operand.vmem [shape: f32[1,128], index: 6, kind: input, shape index: {}]
  %s7 = inlined_call_operand.vmem [shape: f32[1,128], index: 7, kind: input, shape index: {}]
  %s8 = inlined_call_operand.vmem [shape: f32[4,128], index: 8, kind: input, shape index: {}]
  %s9 = inlined_call_operand.vmem [shape: f32[1,128], index: 9, kind: input, shape index: {}]
  %s10 = inlined_call_operand.vmem [shape: f32[1,128], index: 10, kind: input, shape index: {}]
  %s11 = inlined_call_operand.vmem [shape: f32[9,1,128], index: 11, kind: input, shape index: {}]
  %s12 = inlined_call_operand.vmem [shape: f32[1,128], index: 12, kind: input, shape index: {}]
  %s13 = inlined_call_operand.vmem [shape: f32[1,128], index: 13, kind: input, shape index: {}]
  %s14 = inlined_call_operand.vmem [shape: f32[128,128], index: 14, kind: input, shape index: {}]
  %s15 = inlined_call_operand.vmem [shape: f32[1,128], index: 15, kind: input, shape index: {}]
  %s16 = inlined_call_operand.vmem [shape: f32[1,128], index: 16, kind: input, shape index: {}]
  %s17 = inlined_call_operand.vmem [shape: f32[2,64,256], index: 17, kind: output, shape index: {}]
  %s18 = sld [smem:[#allocation0]]
  $region101: #{downblock_forward.1} parent=0
    _
  %s20 = ssub.s32 1, %s18
  %s21 = scalar_select 0, %s20, %s18
  loop: start=0, step=1, limit=4
  $region2: #{downblock_forward.1} parent=0 // loop_pre_header
    _
  $region3: #{downblock_forward.1} parent=0 // loop_header
    %s23 = sphi 0, %s27
    %p24 = scmp.ge.s32.totalorder %s23, 4
    %s33 = sphi 0, %s35
    %s36 = sphi 0, %s33
    %s37 = sphi 0, %s36
    %s53 = sphi 0, %s37
    %s57 = sphi 0, %s57
    %s59 = sphi 0, %s57
    %s60 = sphi 0, %s59
    %s74 = sphi 0, %s60
    %s78 = sphi 0, %s78
    %s80 = sphi 0, %s78
    %s81 = sphi 0, %s80
    %s95 = sphi 0, %s81
    %s99 = sphi 0, %s99
    %s101 = sphi 0, %s99
    %s102 = sphi 0, %s101
    %s116 = sphi 0, %s102
    %s120 = sphi 0, %s120
    %s122 = sphi 0, %s120
    %s123 = sphi 0, %s122
    %s137 = sphi 0, %s123
    %s141 = sphi 0, %s141
    %s143 = sphi 0, %s141
    %s144 = sphi 0, %s143
    %s158 = sphi 0, %s144
    %s162 = sphi 0, %s162
    %s164 = sphi 0, %s162
    %s165 = sphi 0, %s164
    %s179 = sphi 0, %s165
    %s183 = sphi 0, %s183
    %s185 = sphi 0, %s183
    %s186 = sphi 0, %s185
    %s200 = sphi 0, %s186
    %s204 = sphi 0, %s204
    %s206 = sphi 0, %s204
    %s207 = sphi 0, %s206
    %s221 = sphi 0, %s207
    %s225 = sphi 0, %s225
    %s227 = sphi 0, %s225
    %s228 = sphi 0, %s227
    %s242 = sphi 0, %s228
    %s246 = sphi 0, %s246
    %s248 = sphi 0, %s246
    %s249 = sphi 0, %s248
    %s263 = sphi 0, %s249
    %s267 = sphi 0, %s267
    %s269 = sphi 0, %s267
    %s270 = sphi 0, %s269
    %s284 = sphi 0, %s270
    %s288 = sphi 0, %s288
    %s290 = sphi 0, %s288
    %s291 = sphi 0, %s290
    %s305 = sphi 0, %s291
    %s309 = sphi 0, %s309
    %s311 = sphi 0, %s309
    %s312 = sphi 0, %s311
    %s326 = sphi 0, %s312
    %s330 = sphi 0, %s330
    %s332 = sphi 0, %s330
    %s333 = sphi 0, %s332
    %s347 = sphi 0, %s333
    %s351 = sphi 0, %s351
    %s353 = sphi 0, %s351
    %s354 = sphi 0, %s353
    %s368 = sphi 0, %s354
    %s372 = sphi 0, %s372
    %s374 = sphi 0, %s372
    %s375 = sphi 0, %s374
    %s389 = sphi 0, %s375
    %s395 = sphi 0, %s397
    %s398 = sphi 0, %s395
    %s399 = sphi 0, %s398
    %s415 = sphi 0, %s399
  $region4: #{downblock_forward.1} parent=0 // loop_header_branch
    %26 = sbr.rel (%p24) target = $region8
  $region5: #{downblock_forward.1} parent=0 // loop_body
    %s28 = ssub.s32 %s23, 1
    %s29 = ssub.s32 %s23, 2
    %s30 = sadd.s32 %s23, 1
    %s31 = ssub.s32 %s23, %s30
    %p32 = scmp.eq.s32.totalorder %s31, 0
    %s34 = sadd.s32 %s33, 1
    %s35 = scalar_select %p32, %s33, %s34
    %p38 = pneg %p32
    %p39 = scmp.eq.s32.totalorder %s23, 1
    %p40 = por %p38, %p39
    %p41 = scmp.ne.s32.totalorder %s33, %s36
    %p42 = scmp.eq.s32.totalorder %s23, 0
    %p43 = por %p41, %p42
    %p44 = scmp.ne.s32.totalorder %s33, %s36
    %p45 = scmp.eq.s32.totalorder %s28, 1
    %p46 = por %p44, %p45
    %p47 = scmp.ne.s32.totalorder %s36, %s37
    %p48 = scmp.eq.s32.totalorder %s28, 0
    %p49 = por %p47, %p48
    %p50 = scmp.ne.s32.totalorder %s36, %s37
    %p51 = scmp.eq.s32.totalorder %s29, 1
    %p52 = por %p50, %p51
    %p54 = scmp.ne.s32.totalorder %s37, %s53
    %p55 = scmp.eq.s32.totalorder %s29, 0
    %p56 = por %p54, %p55
    %s58 = sadd.s32 %s57, 1
    %p61 = scmp.eq.s32.totalorder %s23, 1
    %p62 = scmp.ne.s32.totalorder %s57, %s59
    %p63 = scmp.eq.s32.totalorder %s23, 0
    %p64 = por %p62, %p63
    %p65 = scmp.ne.s32.totalorder %s57, %s59
    %p66 = scmp.eq.s32.totalorder %s28, 1
    %p67 = por %p65, %p66
    %p68 = scmp.ne.s32.totalorder %s59, %s60
    %p69 = scmp.eq.s32.totalorder %s28, 0
    %p70 = por %p68, %p69
    %p71 = scmp.ne.s32.totalorder %s59, %s60
    %p72 = scmp.eq.s32.totalorder %s29, 1
    %p73 = por %p71, %p72
    %p75 = scmp.ne.s32.totalorder %s60, %s74
    %p76 = scmp.eq.s32.totalorder %s29, 0
    %p77 = por %p75, %p76
    %s79 = sadd.s32 %s78, 1
    %p82 = scmp.eq.s32.totalorder %s23, 1
    %p83 = scmp.ne.s32.totalorder %s78, %s80
    %p84 = scmp.eq.s32.totalorder %s23, 0
    %p85 = por %p83, %p84
    %p86 = scmp.ne.s32.totalorder %s78, %s80
    %p87 = scmp.eq.s32.totalorder %s28, 1
    %p88 = por %p86, %p87
    %p89 = scmp.ne.s32.totalorder %s80, %s81
    %p90 = scmp.eq.s32.totalorder %s28, 0
    %p91 = por %p89, %p90
    %p92 = scmp.ne.s32.totalorder %s80, %s81
    %p93 = scmp.eq.s32.totalorder %s29, 1
    %p94 = por %p92, %p93
    %p96 = scmp.ne.s32.totalorder %s81, %s95
    %p97 = scmp.eq.s32.totalorder %s29, 0
    %p98 = por %p96, %p97
    %s100 = sadd.s32 %s99, 1
    %p103 = scmp.eq.s32.totalorder %s23, 1
    %p104 = scmp.ne.s32.totalorder %s99, %s101
    %p105 = scmp.eq.s32.totalorder %s23, 0
    %p106 = por %p104, %p105
    %p107 = scmp.ne.s32.totalorder %s99, %s101
    %p108 = scmp.eq.s32.totalorder %s28, 1
    %p109 = por %p107, %p108
    %p110 = scmp.ne.s32.totalorder %s101, %s102
    %p111 = scmp.eq.s32.totalorder %s28, 0
    %p112 = por %p110, %p111
    %p113 = scmp.ne.s32.totalorder %s101, %s102
    %p114 = scmp.eq.s32.totalorder %s29, 1
    %p115 = por %p113, %p114
    %p117 = scmp.ne.s32.totalorder %s102, %s116
    %p118 = scmp.eq.s32.totalorder %s29, 0
    %p119 = por %p117, %p118
    %s121 = sadd.s32 %s120, 1
    %p124 = scmp.eq.s32.totalorder %s23, 1
    %p125 = scmp.ne.s32.totalorder %s120, %s122
    %p126 = scmp.eq.s32.totalorder %s23, 0
    %p127 = por %p125, %p126
    %p128 = scmp.ne.s32.totalorder %s120, %s122
    %p129 = scmp.eq.s32.totalorder %s28, 1
    %p130 = por %p128, %p129
    %p131 = scmp.ne.s32.totalorder %s122, %s123
    %p132 = scmp.eq.s32.totalorder %s28, 0
    %p133 = por %p131, %p132
    %p134 = scmp.ne.s32.totalorder %s122, %s123
    %p135 = scmp.eq.s32.totalorder %s29, 1
    %p136 = por %p134, %p135
    %p138 = scmp.ne.s32.totalorder %s123, %s137
    %p139 = scmp.eq.s32.totalorder %s29, 0
    %p140 = por %p138, %p139
    %s142 = sadd.s32 %s141, 1
    %p145 = scmp.eq.s32.totalorder %s23, 1
    %p146 = scmp.ne.s32.totalorder %s141, %s143
    %p147 = scmp.eq.s32.totalorder %s23, 0
    %p148 = por %p146, %p147
    %p149 = scmp.ne.s32.totalorder %s141, %s143
    %p150 = scmp.eq.s32.totalorder %s28, 1
    %p151 = por %p149, %p150
    %p152 = scmp.ne.s32.totalorder %s143, %s144
    %p153 = scmp.eq.s32.totalorder %s28, 0
    %p154 = por %p152, %p153
    %p155 = scmp.ne.s32.totalorder %s143, %s144
    %p156 = scmp.eq.s32.totalorder %s29, 1
    %p157 = por %p155, %p156
    %p159 = scmp.ne.s32.totalorder %s144, %s158
    %p160 = scmp.eq.s32.totalorder %s29, 0
    %p161 = por %p159, %p160
    %s163 = sadd.s32 %s162, 1
    %p166 = scmp.eq.s32.totalorder %s23, 1
    %p167 = scmp.ne.s32.totalorder %s162, %s164
    %p168 = scmp.eq.s32.totalorder %s23, 0
    %p169 = por %p167, %p168
    %p170 = scmp.ne.s32.totalorder %s162, %s164
    %p171 = scmp.eq.s32.totalorder %s28, 1
    %p172 = por %p170, %p171
    %p173 = scmp.ne.s32.totalorder %s164, %s165
    %p174 = scmp.eq.s32.totalorder %s28, 0
    %p175 = por %p173, %p174
    %p176 = scmp.ne.s32.totalorder %s164, %s165
    %p177 = scmp.eq.s32.totalorder %s29, 1
    %p178 = por %p176, %p177
    %p180 = scmp.ne.s32.totalorder %s165, %s179
    %p181 = scmp.eq.s32.totalorder %s29, 0
    %p182 = por %p180, %p181
    %s184 = sadd.s32 %s183, 1
    %p187 = scmp.eq.s32.totalorder %s23, 1
    %p188 = scmp.ne.s32.totalorder %s183, %s185
    %p189 = scmp.eq.s32.totalorder %s23, 0
    %p190 = por %p188, %p189
    %p191 = scmp.ne.s32.totalorder %s183, %s185
    %p192 = scmp.eq.s32.totalorder %s28, 1
    %p193 = por %p191, %p192
    %p194 = scmp.ne.s32.totalorder %s185, %s186
    %p195 = scmp.eq.s32.totalorder %s28, 0
    %p196 = por %p194, %p195
    %p197 = scmp.ne.s32.totalorder %s185, %s186
    %p198 = scmp.eq.s32.totalorder %s29, 1
    %p199 = por %p197, %p198
    %p201 = scmp.ne.s32.totalorder %s186, %s200
    %p202 = scmp.eq.s32.totalorder %s29, 0
    %p203 = por %p201, %p202
    %s205 = sadd.s32 %s204, 1
    %p208 = scmp.eq.s32.totalorder %s23, 1
    %p209 = scmp.ne.s32.totalorder %s204, %s206
    %p210 = scmp.eq.s32.totalorder %s23, 0
    %p211 = por %p209, %p210
    %p212 = scmp.ne.s32.totalorder %s204, %s206
    %p213 = scmp.eq.s32.totalorder %s28, 1
    %p214 = por %p212, %p213
    %p215 = scmp.ne.s32.totalorder %s206, %s207
    %p216 = scmp.eq.s32.totalorder %s28, 0
    %p217 = por %p215, %p216
    %p218 = scmp.ne.s32.totalorder %s206, %s207
    %p219 = scmp.eq.s32.totalorder %s29, 1
    %p220 = por %p218, %p219
    %p222 = scmp.ne.s32.totalorder %s207, %s221
    %p223 = scmp.eq.s32.totalorder %s29, 0
    %p224 = por %p222, %p223
    %s226 = sadd.s32 %s225, 1
    %p229 = scmp.eq.s32.totalorder %s23, 1
    %p230 = scmp.ne.s32.totalorder %s225, %s227
    %p231 = scmp.eq.s32.totalorder %s23, 0
    %p232 = por %p230, %p231
    %p233 = scmp.ne.s32.totalorder %s225, %s227
    %p234 = scmp.eq.s32.totalorder %s28, 1
    %p235 = por %p233, %p234
    %p236 = scmp.ne.s32.totalorder %s227, %s228
    %p237 = scmp.eq.s32.totalorder %s28, 0
    %p238 = por %p236, %p237
    %p239 = scmp.ne.s32.totalorder %s227, %s228
    %p240 = scmp.eq.s32.totalorder %s29, 1
    %p241 = por %p239, %p240
    %p243 = scmp.ne.s32.totalorder %s228, %s242
    %p244 = scmp.eq.s32.totalorder %s29, 0
    %p245 = por %p243, %p244
    %s247 = sadd.s32 %s246, 1
    %p250 = scmp.eq.s32.totalorder %s23, 1
    %p251 = scmp.ne.s32.totalorder %s246, %s248
    %p252 = scmp.eq.s32.totalorder %s23, 0
    %p253 = por %p251, %p252
    %p254 = scmp.ne.s32.totalorder %s246, %s248
    %p255 = scmp.eq.s32.totalorder %s28, 1
    %p256 = por %p254, %p255
    %p257 = scmp.ne.s32.totalorder %s248, %s249
    %p258 = scmp.eq.s32.totalorder %s28, 0
    %p259 = por %p257, %p258
    %p260 = scmp.ne.s32.totalorder %s248, %s249
    %p261 = scmp.eq.s32.totalorder %s29, 1
    %p262 = por %p260, %p261
    %p264 = scmp.ne.s32.totalorder %s249, %s263
    %p265 = scmp.eq.s32.totalorder %s29, 0
    %p266 = por %p264, %p265
    %s268 = sadd.s32 %s267, 1
    %p271 = scmp.eq.s32.totalorder %s23, 1
    %p272 = scmp.ne.s32.totalorder %s267, %s269
    %p273 = scmp.eq.s32.totalorder %s23, 0
    %p274 = por %p272, %p273
    %p275 = scmp.ne.s32.totalorder %s267, %s269
    %p276 = scmp.eq.s32.totalorder %s28, 1
    %p277 = por %p275, %p276
    %p278 = scmp.ne.s32.totalorder %s269, %s270
    %p279 = scmp.eq.s32.totalorder %s28, 0
    %p280 = por %p278, %p279
    %p281 = scmp.ne.s32.totalorder %s269, %s270
    %p282 = scmp.eq.s32.totalorder %s29, 1
    %p283 = por %p281, %p282
    %p285 = scmp.ne.s32.totalorder %s270, %s284
    %p286 = scmp.eq.s32.totalorder %s29, 0
    %p287 = por %p285, %p286
    %s289 = sadd.s32 %s288, 1
    %p292 = scmp.eq.s32.totalorder %s23, 1
    %p293 = scmp.ne.s32.totalorder %s288, %s290
    %p294 = scmp.eq.s32.totalorder %s23, 0
    %p295 = por %p293, %p294
    %p296 = scmp.ne.s32.totalorder %s288, %s290
    %p297 = scmp.eq.s32.totalorder %s28, 1
    %p298 = por %p296, %p297
    %p299 = scmp.ne.s32.totalorder %s290, %s291
    %p300 = scmp.eq.s32.totalorder %s28, 0
    %p301 = por %p299, %p300
    %p302 = scmp.ne.s32.totalorder %s290, %s291
    %p303 = scmp.eq.s32.totalorder %s29, 1
    %p304 = por %p302, %p303
    %p306 = scmp.ne.s32.totalorder %s291, %s305
    %p307 = scmp.eq.s32.totalorder %s29, 0
    %p308 = por %p306, %p307
    %s310 = sadd.s32 %s309, 1
    %p313 = scmp.eq.s32.totalorder %s23, 1
    %p314 = scmp.ne.s32.totalorder %s309, %s311
    %p315 = scmp.eq.s32.totalorder %s23, 0
    %p316 = por %p314, %p315
    %p317 = scmp.ne.s32.totalorder %s309, %s311
    %p318 = scmp.eq.s32.totalorder %s28, 1
    %p319 = por %p317, %p318
    %p320 = scmp.ne.s32.totalorder %s311, %s312
    %p321 = scmp.eq.s32.totalorder %s28, 0
    %p322 = por %p320, %p321
    %p323 = scmp.ne.s32.totalorder %s311, %s312
    %p324 = scmp.eq.s32.totalorder %s29, 1
    %p325 = por %p323, %p324
    %p327 = scmp.ne.s32.totalorder %s312, %s326
    %p328 = scmp.eq.s32.totalorder %s29, 0
    %p329 = por %p327, %p328
    %s331 = sadd.s32 %s330, 1
    %p334 = scmp.eq.s32.totalorder %s23, 1
    %p335 = scmp.ne.s32.totalorder %s330, %s332
    %p336 = scmp.eq.s32.totalorder %s23, 0
    %p337 = por %p335, %p336
    %p338 = scmp.ne.s32.totalorder %s330, %s332
    %p339 = scmp.eq.s32.totalorder %s28, 1
    %p340 = por %p338, %p339
    %p341 = scmp.ne.s32.totalorder %s332, %s333
    %p342 = scmp.eq.s32.totalorder %s28, 0
    %p343 = por %p341, %p342
    %p344 = scmp.ne.s32.totalorder %s332, %s333
    %p345 = scmp.eq.s32.totalorder %s29, 1
    %p346 = por %p344, %p345
    %p348 = scmp.ne.s32.totalorder %s333, %s347
    %p349 = scmp.eq.s32.totalorder %s29, 0
    %p350 = por %p348, %p349
    %s352 = sadd.s32 %s351, 1
    %p355 = scmp.eq.s32.totalorder %s23, 1
    %p356 = scmp.ne.s32.totalorder %s351, %s353
    %p357 = scmp.eq.s32.totalorder %s23, 0
    %p358 = por %p356, %p357
    %p359 = scmp.ne.s32.totalorder %s351, %s353
    %p360 = scmp.eq.s32.totalorder %s28, 1
    %p361 = por %p359, %p360
    %p362 = scmp.ne.s32.totalorder %s353, %s354
    %p363 = scmp.eq.s32.totalorder %s28, 0
    %p364 = por %p362, %p363
    %p365 = scmp.ne.s32.totalorder %s353, %s354
    %p366 = scmp.eq.s32.totalorder %s29, 1
    %p367 = por %p365, %p366
    %p369 = scmp.ne.s32.totalorder %s354, %s368
    %p370 = scmp.eq.s32.totalorder %s29, 0
    %p371 = por %p369, %p370
    %s373 = sadd.s32 %s372, 1
    %p376 = scmp.eq.s32.totalorder %s23, 1
    %p377 = scmp.ne.s32.totalorder %s372, %s374
    %p378 = scmp.eq.s32.totalorder %s23, 0
    %p379 = por %p377, %p378
    %p380 = scmp.ne.s32.totalorder %s372, %s374
    %p381 = scmp.eq.s32.totalorder %s28, 1
    %p382 = por %p380, %p381
    %p383 = scmp.ne.s32.totalorder %s374, %s375
    %p384 = scmp.eq.s32.totalorder %s28, 0
    %p385 = por %p383, %p384
    %p386 = scmp.ne.s32.totalorder %s374, %s375
    %p387 = scmp.eq.s32.totalorder %s29, 1
    %p388 = por %p386, %p387
    %p390 = scmp.ne.s32.totalorder %s375, %s389
    %p391 = scmp.eq.s32.totalorder %s29, 0
    %p392 = por %p390, %p391
    %s393 = ssub.s32 %s23, %s30
    %p394 = scmp.eq.s32.totalorder %s393, 0
    %s396 = sadd.s32 %s395, 1
    %s397 = scalar_select %p394, %s395, %s396
    %p400 = pneg %p394
    %p401 = scmp.eq.s32.totalorder %s23, 1
    %p402 = por %p400, %p401
    %p403 = scmp.ne.s32.totalorder %s395, %s398
    %p404 = scmp.eq.s32.totalorder %s23, 0
    %p405 = por %p403, %p404
    %p406 = scmp.ne.s32.totalorder %s395, %s398
    %p407 = scmp.eq.s32.totalorder %s28, 1
    %p408 = por %p406, %p407
    %p409 = scmp.ne.s32.totalorder %s398, %s399
    %p410 = scmp.eq.s32.totalorder %s28, 0
    %p411 = por %p409, %p410
    %p412 = scmp.ne.s32.totalorder %s398, %s399
    %p413 = scmp.eq.s32.totalorder %s29, 1
    %p414 = por %p412, %p413
    %p416 = scmp.ne.s32.totalorder %s399, %s415
    %p417 = scmp.eq.s32.totalorder %s29, 0
    %p418 = por %p416, %p417
    %p419 = scmp.le.s32.totalorder 1, %s23
    %p420 = scmp.lt.s32.totalorder %s23, 3
    %p421 = pnand %p419, %p420
    %p422 = pneg %p421
    // Predicated region
    $region9: #{downblock_forward.1} parent=5 // pred_check
      _
    $region10: #{downblock_forward.1} parent=5 // pred_check_branch
      %424 = sbr.rel (%p421) target = $region12
    $region11: #{downblock_forward.1} parent=5 // pred_region
      %s425 = ssub.s32 %s23, 1
      // Predicated region
      $region13: #{downblock_forward.1} parent=11 // pred_check
        %p426 = pneg %p70
      $region14: #{downblock_forward.1} parent=11 // pred_check_branch
        %428 = sbr.rel (%p426) target = $region16
      $region15: #{downblock_forward.1} parent=11 // pred_region
        _
      $region16: #{downblock_forward.1} parent=11 // pred_fallthru
        _
      // Predicated region
      $region17: #{downblock_forward.1} parent=11 // pred_check
        %p429 = pneg %p91
      $region18: #{downblock_forward.1} parent=11 // pred_check_branch
        %431 = sbr.rel (%p429) target = $region20
      $region19: #{downblock_forward.1} parent=11 // pred_region
        _
      $region20: #{downblock_forward.1} parent=11 // pred_fallthru
        _
      // Predicated region
      $region21: #{downblock_forward.1} parent=11 // pred_check
        %p432 = pneg %p112
      $region22: #{downblock_forward.1} parent=11 // pred_check_branch
        %434 = sbr.rel (%p432) target = $region24
      $region23: #{downblock_forward.1} parent=11 // pred_region
        _
      $region24: #{downblock_forward.1} parent=11 // pred_fallthru
        _
      // Predicated region
      $region25: #{downblock_forward.1} parent=11 // pred_check
        %p435 = pneg %p133
      $region26: #{downblock_forward.1} parent=11 // pred_check_branch
        %437 = sbr.rel (%p435) target = $region28
      $region27: #{downblock_forward.1} parent=11 // pred_region
        _
      $region28: #{downblock_forward.1} parent=11 // pred_fallthru
        _
      // Predicated region
      $region29: #{downblock_forward.1} parent=11 // pred_check
        %p438 = pneg %p154
      $region30: #{downblock_forward.1} parent=11 // pred_check_branch
        %440 = sbr.rel (%p438) target = $region32
      $region31: #{downblock_forward.1} parent=11 // pred_region
        _
      $region32: #{downblock_forward.1} parent=11 // pred_fallthru
        _
      // Predicated region
      $region33: #{downblock_forward.1} parent=11 // pred_check
        %p441 = pneg %p175
      $region34: #{downblock_forward.1} parent=11 // pred_check_branch
        %443 = sbr.rel (%p441) target = $region36
      $region35: #{downblock_forward.1} parent=11 // pred_region
        _
      $region36: #{downblock_forward.1} parent=11 // pred_fallthru
        _
      // Predicated region
      $region37: #{downblock_forward.1} parent=11 // pred_check
        %p444 = pneg %p196
      $region38: #{downblock_forward.1} parent=11 // pred_check_branch
        %446 = sbr.rel (%p444) target = $region40
      $region39: #{downblock_forward.1} parent=11 // pred_region
        _
      $region40: #{downblock_forward.1} parent=11 // pred_fallthru
        _
      // Predicated region
      $region41: #{downblock_forward.1} parent=11 // pred_check
        %p447 = pneg %p217
      $region42: #{downblock_forward.1} parent=11 // pred_check_branch
        %449 = sbr.rel (%p447) target = $region44
      $region43: #{downblock_forward.1} parent=11 // pred_region
        _
      $region44: #{downblock_forward.1} parent=11 // pred_fallthru
        _
      // Predicated region
      $region45: #{downblock_forward.1} parent=11 // pred_check
        %p450 = pneg %p238
      $region46: #{downblock_forward.1} parent=11 // pred_check_branch
        %452 = sbr.rel (%p450) target = $region48
      $region47: #{downblock_forward.1} parent=11 // pred_region
        _
      $region48: #{downblock_forward.1} parent=11 // pred_fallthru
        _
      // Predicated region
      $region49: #{downblock_forward.1} parent=11 // pred_check
        %p453 = pneg %p259
      $region50: #{downblock_forward.1} parent=11 // pred_check_branch
        %455 = sbr.rel (%p453) target = $region52
      $region51: #{downblock_forward.1} parent=11 // pred_region
        _
      $region52: #{downblock_forward.1} parent=11 // pred_fallthru
        _
      // Predicated region
      $region53: #{downblock_forward.1} parent=11 // pred_check
        %p456 = pneg %p280
      $region54: #{downblock_forward.1} parent=11 // pred_check_branch
        %458 = sbr.rel (%p456) target = $region56
      $region55: #{downblock_forward.1} parent=11 // pred_region
        _
      $region56: #{downblock_forward.1} parent=11 // pred_fallthru
        _
      // Predicated region
      $region57: #{downblock_forward.1} parent=11 // pred_check
        %p459 = pneg %p301
      $region58: #{downblock_forward.1} parent=11 // pred_check_branch
        %461 = sbr.rel (%p459) target = $region60
      $region59: #{downblock_forward.1} parent=11 // pred_region
        _
      $region60: #{downblock_forward.1} parent=11 // pred_fallthru
        _
      // Predicated region
      $region61: #{downblock_forward.1} parent=11 // pred_check
        %p462 = pneg %p322
      $region62: #{downblock_forward.1} parent=11 // pred_check_branch
        %464 = sbr.rel (%p462) target = $region64
      $region63: #{downblock_forward.1} parent=11 // pred_region
        _
      $region64: #{downblock_forward.1} parent=11 // pred_fallthru
        _
      // Predicated region
      $region65: #{downblock_forward.1} parent=11 // pred_check
        %p465 = pneg %p343
      $region66: #{downblock_forward.1} parent=11 // pred_check_branch
        %467 = sbr.rel (%p465) target = $region68
      $region67: #{downblock_forward.1} parent=11 // pred_region
        _
      $region68: #{downblock_forward.1} parent=11 // pred_fallthru
        _
      // Predicated region
      $region69: #{downblock_forward.1} parent=11 // pred_check
        %p468 = pneg %p364
      $region70: #{downblock_forward.1} parent=11 // pred_check_branch
        %470 = sbr.rel (%p468) target = $region72
      $region71: #{downblock_forward.1} parent=11 // pred_region
        _
      $region72: #{downblock_forward.1} parent=11 // pred_fallthru
        _
      // Predicated region
      $region73: #{downblock_forward.1} parent=11 // pred_check
        %p471 = pneg %p385
      $region74: #{downblock_forward.1} parent=11 // pred_check_branch
        %473 = sbr.rel (%p471) target = $region76
      $region75: #{downblock_forward.1} parent=11 // pred_region
        _
      $region76: #{downblock_forward.1} parent=11 // pred_fallthru
        _
    $region12: #{downblock_forward.1} parent=5 // pred_fallthru
      _
    %p474 = scmp.lt.s32.totalorder %s23, 2
    // Predicated region
    $region77: #{downblock_forward.1} parent=5 // pred_check
      %p475 = pneg %p474
    $region78: #{downblock_forward.1} parent=5 // pred_check_branch
      %477 = sbr.rel (%p475) target = $region80
    $region79: #{downblock_forward.1} parent=5 // pred_region
      // Predicated region
      $region81: #{downblock_forward.1} parent=79 // pred_check
        %p478 = pneg %p43
      $region82: #{downblock_forward.1} parent=79 // pred_check_branch
        %480 = sbr.rel (%p478) target = $region84
      $region83: #{downblock_forward.1} parent=79 // pred_region
        %s481 = smul.u32 4, %s23
        %p482 = scmp.lt.s32.totalorder %s481, 7
        %s483 = scalar_select %p482, %s481, 7
        %s484 = smul.addr %s483, 18
        %s485 = smul.addr %s484, 8
        %s486 = scalar_lea.vmem %s0, %s485
        %s487 = smul.u32 4, %s23
      $region84: #{downblock_forward.1} parent=79 // pred_fallthru
        _
    $region80: #{downblock_forward.1} parent=5 // pred_fallthru
      _
    %p488 = scmp.le.s32.totalorder 1, %s23
    %p489 = scmp.lt.s32.totalorder %s23, 3
    %p490 = pnand %p488, %p489
    %p491 = pneg %p490
    // Predicated region
    $region85: #{downblock_forward.1} parent=5 // pred_check
      _
    $region86: #{downblock_forward.1} parent=5 // pred_check_branch
      %493 = sbr.rel (%p490) target = $region88
    $region87: #{downblock_forward.1} parent=5 // pred_region
      %s494 = ssub.s32 %s23, 1
      %s495 = smul.u32 4, %s28
      %p496 = scmp.lt.s32.totalorder %s495, 7
      %s497 = scalar_select %p496, %s495, 7
      %s498 = smul.addr %s497, 18
      %s499 = smul.addr %s498, 8
      %s500 = scalar_lea.vmem %s0, %s499
      %p501 = pneg %p49
      %p502 = pneg %p46
      %p503 = pneg %p70
      %p504 = pneg %p67
      %p505 = pneg %p91
      %p506 = pneg %p88
      %p507 = pneg %p112
      %p508 = pneg %p109
      %p509 = pneg %p133
      %p510 = pneg %p130
      %p511 = pneg %p154
      %p512 = pneg %p151
      %p513 = pneg %p175
      %p514 = pneg %p172
      %p515 = pneg %p196
      %p516 = pneg %p193
      %p517 = pneg %p217
      %p518 = pneg %p214
      %p519 = pneg %p238
      %p520 = pneg %p235
      %p521 = pneg %p259
      %p522 = pneg %p256
      %p523 = pneg %p280
      %p524 = pneg %p277
      %p525 = pneg %p301
      %p526 = pneg %p298
      %p527 = pneg %p322
      %p528 = pneg %p319
      %p529 = pneg %p343
      %p530 = pneg %p340
      %p531 = pneg %p364
      %p532 = pneg %p361
      %p533 = pneg %p385
      %p534 = pneg %p382
      %p535 = pneg %p411
      %p536 = pneg %p408
      %p537 = scmp.lt.s32.totalorder %s28, 1
      %s538 = scalar_select %p537, %s28, 1
      %s539 = smul.addr %s538, 16
      %s540 = smul.addr %s539, 8
      %s541 = scalar_lea.vmem %s17, %s540
      %s542 = smul.u32 4, %s28
      %p543 = scmp.lt.s32.totalorder %s542, 7
      %s544 = scalar_select %p543, %s542, 7
      %s545 = smul.addr %s544, 18
      %s546 = smul.addr %s545, 8
      %s547 = scalar_lea.vmem %s0, %s546
      %s548 = smul.u32 4, %s28
      %p549 = scmp.lt.s32.totalorder %s28, 1
      %s550 = scalar_select %p549, %s28, 1
      %s551 = smul.addr %s550, 16
      %s552 = smul.addr %s551, 8
      %s553 = scalar_lea.vmem %s17, %s552
      %v554 = vld [vmem:[%s547] sm:$0xff]
      %v555 = vld [vmem:[%s547 + $0x8] sm:$0xff]
      %v556 = vld [vmem:[%s547 + $0x10] sm:$0xff]
      %v557 = vld [vmem:[%s547 + $0x18] sm:$0xff]
      %v558 = vld [vmem:[%s547 + $0x20] sm:$0xff]
      %v559 = vld [vmem:[%s547 + $0x28] sm:$0xff]
      %v560 = vld [vmem:[%s547 + $0x30] sm:$0xff]
      %v561 = vld [vmem:[%s547 + $0x38] sm:$0xff]
      %v562 = vld [vmem:[%s547 + $0x40] sm:$0xff]
      %v563 = vld [vmem:[%s547 + $0x48] sm:$0xff]
      %v564 = vld [vmem:[%s547 + $0x50] sm:$0xff]
      %v565 = vld [vmem:[%s547 + $0x58] sm:$0xff]
      %v566 = vld [vmem:[%s547 + $0x60] sm:$0xff]
      %v567 = vld [vmem:[%s547 + $0x68] sm:$0xff]
      %v568 = vld [vmem:[%s547 + $0x70] sm:$0xff]
      %v569 = vld [vmem:[%s547 + $0x78] sm:$0xff]
      %v570 = vld [vmem:[%s547 + $0x80] sm:$0xff]
      %v571 = vld [vmem:[%s547 + $0x88] sm:$0xff]
      %v572 = vld [vmem:[%s547 + $0x90] sm:$0xff]
      %v573 = vld [vmem:[%s547 + $0x98] sm:$0xff]
      %v574 = vld [vmem:[%s547 + $0xa0] sm:$0xff]
      %v575 = vld [vmem:[%s547 + $0xa8] sm:$0xff]
      %v576 = vld [vmem:[%s547 + $0xb0] sm:$0xff]
      %v577 = vld [vmem:[%s547 + $0xb8] sm:$0xff]
      %v578 = vld [vmem:[%s547 + $0xc0] sm:$0xff]
      %v579 = vld [vmem:[%s547 + $0xc8] sm:$0xff]
      %v580 = vld [vmem:[%s547 + $0xd0] sm:$0xff]
      %v581 = vld [vmem:[%s547 + $0xd8] sm:$0xff]
      %v582 = vld [vmem:[%s547 + $0xe0] sm:$0xff]
      %v583 = vld [vmem:[%s547 + $0xe8] sm:$0xff]
      %v584 = vld [vmem:[%s547 + $0xf0] sm:$0xff]
      %v585 = vld [vmem:[%s547 + $0xf8] sm:$0xff]
      %v586 = vld [vmem:[%s547 + $0x100] sm:$0xff]
      %v587 = vld [vmem:[%s547 + $0x108] sm:$0xff]
      %v588 = vld [vmem:[%s547 + $0x110] sm:$0xff]
      %v589 = vld [vmem:[%s547 + $0x118] sm:$0xff]
      %v590 = vld [vmem:[%s547 + $0x120] sm:$0xff]
      %v591 = vld [vmem:[%s547 + $0x128] sm:$0xff]
      %v592 = vld [vmem:[%s547 + $0x130] sm:$0xff]
      %v593 = vld [vmem:[%s547 + $0x138] sm:$0xff]
      %v594 = vld [vmem:[%s547 + $0x140] sm:$0xff]
      %v595 = vld [vmem:[%s547 + $0x148] sm:$0xff]
      %v596 = vld [vmem:[%s547 + $0x150] sm:$0xff]
      %v597 = vld [vmem:[%s547 + $0x158] sm:$0xff]
      %v598 = vld [vmem:[%s547 + $0x160] sm:$0xff]
      %v599 = vld [vmem:[%s547 + $0x168] sm:$0xff]
      %v600 = vld [vmem:[%s547 + $0x170] sm:$0xff]
      %v601 = vld [vmem:[%s547 + $0x178] sm:$0xff]
      %v602 = vld [vmem:[%s547 + $0x180] sm:$0xff]
      %v603 = vld [vmem:[%s547 + $0x188] sm:$0xff]
      %v604 = vld [vmem:[%s547 + $0x190] sm:$0xff]
      %v605 = vld [vmem:[%s547 + $0x198] sm:$0xff]
      %v606 = vld [vmem:[%s547 + $0x1a0] sm:$0xff]
      %v607 = vld [vmem:[%s547 + $0x1a8] sm:$0xff]
      %v608 = vld [vmem:[%s547 + $0x1b0] sm:$0xff]
      %v609 = vld [vmem:[%s547 + $0x1b8] sm:$0xff]
      %v610 = vld [vmem:[%s547 + $0x1c0] sm:$0xff]
      %v611 = vld [vmem:[%s547 + $0x1c8] sm:$0xff]
      %v612 = vld [vmem:[%s547 + $0x1d0] sm:$0xff]
      %v613 = vld [vmem:[%s547 + $0x1d8] sm:$0xff]
      %v614 = vld [vmem:[%s547 + $0x1e0] sm:$0xff]
      %v615 = vld [vmem:[%s547 + $0x1e8] sm:$0xff]
      %v616 = vld [vmem:[%s547 + $0x1f0] sm:$0xff]
      %v617 = vld [vmem:[%s547 + $0x1f8] sm:$0xff]
      %v618 = vld [vmem:[%s547 + $0x200] sm:$0xff]
      %v619 = vld [vmem:[%s547 + $0x208] sm:$0xff]
      %v620 = vld [vmem:[%s547 + $0x210] sm:$0xff]
      %v621 = vld [vmem:[%s547 + $0x218] sm:$0xff]
      %v622 = vld [vmem:[%s547 + $0x220] sm:$0xff]
      %v623 = vld [vmem:[%s547 + $0x228] sm:$0xff]
      %v624 = vld [vmem:[%s547 + $0x230] sm:$0xff]
      %v625 = vld [vmem:[%s547 + $0x238] sm:$0xff]
      %v626 = vld [vmem:[%s8] sm:$0xf]
      %vm627 = vcmask 31744
      %v629 = vsel %vm627, %v554, 0
      %v632 = vsel %vm627, %v555, 0
      %v635 = vsel %vm627, %v556, 0
      %v638 = vsel %vm627, %v557, 0
      %v641 = vsel %vm627, %v558, 0
      %v644 = vsel %vm627, %v559, 0
      %v647 = vsel %vm627, %v560, 0
      %v650 = vsel %vm627, %v561, 0
      %v653 = vsel %vm627, %v562, 0
      %v656 = vsel %vm627, %v563, 0
      %v659 = vsel %vm627, %v564, 0
      %v662 = vsel %vm627, %v565, 0
      %v665 = vsel %vm627, %v566, 0
      %v668 = vsel %vm627, %v567, 0
      %v671 = vsel %vm627, %v568, 0
      %v674 = vsel %vm627, %v569, 0
      %v677 = vsel %vm627, %v570, 0
      %v680 = vsel %vm627, %v571, 0
      %v683 = vsel %vm627, %v572, 0
      %v686 = vsel %vm627, %v573, 0
      %v689 = vsel %vm627, %v574, 0
      %v692 = vsel %vm627, %v575, 0
      %v695 = vsel %vm627, %v576, 0
      %v698 = vsel %vm627, %v577, 0
      %v701 = vsel %vm627, %v578, 0
      %v704 = vsel %vm627, %v579, 0
      %v707 = vsel %vm627, %v580, 0
      %v710 = vsel %vm627, %v581, 0
      %v713 = vsel %vm627, %v582, 0
      %v716 = vsel %vm627, %v583, 0
      %v719 = vsel %vm627, %v584, 0
      %v722 = vsel %vm627, %v585, 0
      %v725 = vsel %vm627, %v586, 0
      %v728 = vsel %vm627, %v587, 0
      %v731 = vsel %vm627, %v588, 0
      %v734 = vsel %vm627, %v589, 0
      %v737 = vsel %vm627, %v590, 0
      %v740 = vsel %vm627, %v591, 0
      %v743 = vsel %vm627, %v592, 0
      %v746 = vsel %vm627, %v593, 0
      %v749 = vsel %vm627, %v594, 0
      %v752 = vsel %vm627, %v595, 0
      %v755 = vsel %vm627, %v596, 0
      %v758 = vsel %vm627, %v597, 0
      %v761 = vsel %vm627, %v598, 0
      %v764 = vsel %vm627, %v599, 0
      %v767 = vsel %vm627, %v600, 0
      %v770 = vsel %vm627, %v601, 0
      %v773 = vsel %vm627, %v602, 0
      %v776 = vsel %vm627, %v603, 0
      %v779 = vsel %vm627, %v604, 0
      %v782 = vsel %vm627, %v605, 0
      %v785 = vsel %vm627, %v606, 0
      %v788 = vsel %vm627, %v607, 0
      %v791 = vsel %vm627, %v608, 0
      %v794 = vsel %vm627, %v609, 0
      %v797 = vsel %vm627, %v610, 0
      %v800 = vsel %vm627, %v611, 0
      %v803 = vsel %vm627, %v612, 0
      %v806 = vsel %vm627, %v613, 0
      %v809 = vsel %vm627, %v614, 0
      %v812 = vsel %vm627, %v615, 0
      %v815 = vsel %vm627, %v616, 0
      %v818 = vsel %vm627, %v617, 0
      %v821 = vsel %vm627, %v618, 0
      %v824 = vsel %vm627, %v619, 0
      %v827 = vsel %vm627, %v620, 0
      %v830 = vsel %vm627, %v621, 0
      %v833 = vsel %vm627, %v622, 0
      %v836 = vsel %vm627, %v623, 0
      %v839 = vsel %vm627, %v624, 0
      %v842 = vsel %vm627, %v625, 0
      %vm844 = vcmask 1043456
      %v846 = vsel %vm844, %v626, 0
      %848 = vmatprep.subr.mxu0 0.0
      %849 = vmatpush1.msra.mxu0 %v846
      %850 = vmatprep.subr.mxu0 0.0
      %851 = vmatpush1.msra.mxu0 0.0
      %852 = vmatprep.subr.mxu0 0.0
      %853 = vmatpush1.msra.mxu0 0.0
      %854 = vmatprep.subr.mxu0 0.0
      %855 = vmatpush1.msra.mxu0 0.0
      %856 = vmatprep.subr.mxu0 0.0
      %857 = vmatpush1.msra.mxu0 0.0
      %858 = vmatprep.subr.mxu0 0.0
      %859 = vmatpush1.msra.mxu0 0.0
      %860 = vmatprep.subr.mxu0 0.0
      %861 = vmatpush1.msra.mxu0 0.0
      %862 = vmatprep.subr.mxu0 0.0
      %863 = vmatpush1.msra.mxu0 0.0
      %864 = vmatprep.subr.mxu0 0.0
      %865 = vmatpush1.msra.mxu0 0.0
      %866 = vmatprep.subr.mxu0 0.0
      %867 = vmatpush1.msra.mxu0 0.0
      %868 = vmatprep.subr.mxu0 0.0
      %869 = vmatpush1.msra.mxu0 0.0
      %870 = vmatprep.subr.mxu0 0.0
      %871 = vmatpush1.msra.mxu0 0.0
      %872 = vmatprep.subr.mxu0 0.0
      %873 = vmatpush1.msra.mxu0 0.0
      %874 = vmatprep.subr.mxu0 0.0
      %875 = vmatpush1.msra.mxu0 0.0
      %876 = vmatprep.subr.mxu0 0.0
      %877 = vmatpush1.msra.mxu0 0.0
      %878 = vmatprep.subr.mxu0 0.0
      %879 = vmatpush1.msra.mxu0 0.0
      %880 = vmatprep.subr.mxu0 0.0
      %881 = vmatpush1.msra.mxu0 0.0
      %882 = vmatprep.subr.mxu0 0.0
      %883 = vmatpush1.msra.mxu0 0.0
      %884 = vmatprep.subr.mxu0 0.0
      %885 = vmatpush1.msra.mxu0 0.0
      %886 = vmatprep.subr.mxu0 0.0
      %887 = vmatpush1.msra.mxu0 0.0
      %888 = vmatprep.subr.mxu0 0.0
      %889 = vmatpush1.msra.mxu0 0.0
      %890 = vmatprep.subr.mxu0 0.0
      %891 = vmatpush1.msra.mxu0 0.0
      %892 = vmatprep.subr.mxu0 0.0
      %893 = vmatpush1.msra.mxu0 0.0
      %894 = vmatprep.subr.mxu0 0.0
      %895 = vmatpush1.msra.mxu0 0.0
      %896 = vmatprep.subr.mxu0 0.0
      %897 = vmatpush1.msra.mxu0 0.0
      %898 = vmatprep.subr.mxu0 0.0
      %899 = vmatpush1.msra.mxu0 0.0
      %900 = vmatprep.subr.mxu0 0.0
      %901 = vmatpush1.msra.mxu0 0.0
      %902 = vmatprep.subr.mxu0 0.0
      %903 = vmatpush1.msra.mxu0 0.0
      %904 = vmatprep.subr.mxu0 0.0
      %905 = vmatpush1.msra.mxu0 0.0
      %906 = vmatprep.subr.mxu0 0.0
      %907 = vmatpush1.msra.mxu0 0.0
      %908 = vmatprep.subr.mxu0 0.0
      %909 = vmatpush1.msra.mxu0 0.0
      %910 = vmatprep.subr.mxu0 0.0
      %911 = vmatpush1.msra.mxu0 0.0
      %912 = vmatprep.mubr.f32.mxu0 0.0
      %913 = vmatmul.mubr.f32.gmra.mrb[0].mxu0 %v629
      %v914 = vpop.f32.mrb[0].mxu0
      %v915 = vadd.f32 0.0, %v914
      %v916 = vpop.f32.mrb[0].mxu0
      %917 = vmatprep.mubr.f32.mxu0 0.0
      %918 = vmatmul.mubr.f32.gmra.mrb[0].mxu0 %v632
      %v919 = vpop.f32.mrb[0].mxu0
      %v920 = vadd.f32 0.0, %v919
      %v921 = vpop.f32.mrb[0].mxu0
      %922 = vmatprep.mubr.f32.mxu0 0.0
      %923 = vmatmul.mubr.f32.gmra.mrb[0].mxu0 %v635
      %v924 = vpop.f32.mrb[0].mxu0
      %v925 = vadd.f32 0.0, %v924
      %v926 = vpop.f32.mrb[0].mxu0
      %927 = vmatprep.mubr.f32.mxu0 0.0
      %928 = vmatmul.mubr.f32.gmra.mrb[0].mxu0 %v638
      %v929 = vpop.f32.mrb[0].mxu0
      %v930 = vadd.f32 0.0, %v929
      %v931 = vpop.f32.mrb[0].mxu0
      %932 = vmatprep.mubr.f32.mxu0 0.0
      %933 = vmatmul.mubr.f32.gmra.mrb[0].mxu0 %v641
      %v934 = vpop.f32.mrb[0].mxu0
      %v935 = vadd.f32 0.0, %v934
      %v936 = vpop.f32.mrb[0].mxu0
      %937 = vmatprep.mubr.f32.mxu0 0.0
      %938 = vmatmul.mubr.f32.gmra.mrb[0].mxu0 %v644
      %v939 = vpop.f32.mrb[0].mxu0
      %v940 = vadd.f32 0.0, %v939
      %v941 = vpop.f32.mrb[0].mxu0
      %942 = vmatprep.mubr.f32.mxu0 0.0
      %943 = vmatmul.mubr.f32.gmra.mrb[0].mxu0 %v647
      %v944 = vpop.f32.mrb[0].mxu0
      %v945 = vadd.f32 0.0, %v944
      %v946 = vpop.f32.mrb[0].mxu0
      %947 = vmatprep.mubr.f32.mxu0 0.0
      %948 = vmatmul.mubr.f32.gmra.mrb[0].mxu0 %v650
      %v949 = vpop.f32.mrb[0].mxu0
      %v950 = vadd.f32 0.0, %v949
      %v951 = vpop.f32.mrb[0].mxu0
      %952 = vmatprep.mubr.f32.mxu0 0.0
      %953 = vmatmul.mubr.f32.gmra.mrb[0].mxu0 %v653
      %v954 = vpop.f32.mrb[0].mxu0
      %v955 = vadd.f32 0.0, %v954
      %v956 = vpop.f32.mrb[0].mxu0
      %957 = vmatprep.mubr.f32.mxu0 0.0
      %958 = vmatmul.mubr.f32.gmra.mrb[0].mxu0 %v656
      %v959 = vpop.f32.mrb[0].mxu0
      %v960 = vadd.f32 0.0, %v959
      %v961 = vpop.f32.mrb[0].mxu0
      %962 = vmatprep.mubr.f32.mxu0 0.0
      %963 = vmatmul.mubr.f32.gmra.mrb[0].mxu0 %v659
      %v964 = vpop.f32.mrb[0].mxu0
      %v965 = vadd.f32 0.0, %v964
      %v966 = vpop.f32.mrb[0].mxu0
      %967 = vmatprep.mubr.f32.mxu0 0.0
      %968 = vmatmul.mubr.f32.gmra.mrb[0].mxu0 %v662
      %v969 = vpop.f32.mrb[0].mxu0
      %v970 = vadd.f32 0.0, %v969
      %v971 = vpop.f32.mrb[0].mxu0
      %972 = vmatprep.mubr.f32.mxu0 0.0
      %973 = vmatmul.mubr.f32.gmra.mrb[0].mxu0 %v665
      %v974 = vpop.f32.mrb[0].mxu0
      %v975 = vadd.f32 0.0, %v974
      %v976 = vpop.f32.mrb[0].mxu0
      %977 = vmatprep.mubr.f32.mxu0 0.0
      %978 = vmatmul.mubr.f32.gmra.mrb[0].mxu0 %v668
      %v979 = vpop.f32.mrb[0].mxu0
      %v980 = vadd.f32 0.0, %v979
      %v981 = vpop.f32.mrb[0].mxu0
      %982 = vmatprep.mubr.f32.mxu0 0.0
      %983 = vmatmul.mubr.f32.gmra.mrb[0].mxu0 %v671
      %v984 = vpop.f32.mrb[0].mxu0
      %v985 = vadd.f32 0.0, %v984
      %v986 = vpop.f32.mrb[0].mxu0
      %987 = vmatprep.mubr.f32.mxu0 0.0
      %988 = vmatmul.mubr.f32.gmra.mrb[0].mxu0 %v674
      %v989 = vpop.f32.mrb[0].mxu0
      %v990 = vadd.f32 0.0, %v989
      %v991 = vpop.f32.mrb[0].mxu0
      %992 = vmatprep.mubr.f32.mxu0 0.0
      %993 = vmatmul.mubr.f32.gmra.mrb[0].mxu0 %v677
      %v994 = vpop.f32.mrb[0].mxu0
      %v995 = vadd.f32 0.0, %v994
      %v996 = vpop.f32.mrb[0].mxu0
      %997 = vmatprep.mubr.f32.mxu0 0.0
      %998 = vmatmul.mubr.f32.gmra.mrb[0].mxu0 %v680
      %v999 = vpop.f32.mrb[0].mxu0
      %v1000 = vadd.f32 0.0, %v999
      %v1001 = vpop.f32.mrb[0].mxu0
      %1002 = vmatprep.mubr.f32.mxu0 0.0
      %1003 = vmatmul.mubr.f32.gmra.mrb[0].mxu0 %v683
      %v1004 = vpop.f32.mrb[0].mxu0
      %v1005 = vadd.f32 0.0, %v1004
      %v1006 = vpop.f32.mrb[0].mxu0
      %1007 = vmatprep.mubr.f32.mxu0 0.0
      %1008 = vmatmul.mubr.f32.gmra.mrb[0].mxu0 %v686
      %v1009 = vpop.f32.mrb[0].mxu0
      %v1010 = vadd.f32 0.0, %v1009
      %v1011 = vpop.f32.mrb[0].mxu0
      %1012 = vmatprep.mubr.f32.mxu0 0.0
      %1013 = vmatmul.mubr.f32.gmra.mrb[0].mxu0 %v689
      %v1014 = vpop.f32.mrb[0].mxu0
      %v1015 = vadd.f32 0.0, %v1014
      %v1016 = vpop.f32.mrb[0].mxu0
      %1017 = vmatprep.mubr.f32.mxu0 0.0
      %1018 = vmatmul.mubr.f32.gmra.mrb[0].mxu0 %v692
      %v1019 = vpop.f32.mrb[0].mxu0
      %v1020 = vadd.f32 0.0, %v1019
      %v1021 = vpop.f32.mrb[0].mxu0
      %1022 = vmatprep.mubr.f32.mxu0 0.0
      %1023 = vmatmul.mubr.f32.gmra.mrb[0].mxu0 %v695
      %v1024 = vpop.f32.mrb[0].mxu0
      %v1025 = vadd.f32 0.0, %v1024
      %v1026 = vpop.f32.mrb[0].mxu0
      %1027 = vmatprep.mubr.f32.mxu0 0.0
      %1028 = vmatmul.mubr.f32.gmra.mrb[0].mxu0 %v698
      %v1029 = vpop.f32.mrb[0].mxu0
      %v1030 = vadd.f32 0.0, %v1029
      %v1031 = vpop.f32.mrb[0].mxu0
      %1032 = vmatprep.mubr.f32.mxu0 0.0
      %1033 = vmatmul.mubr.f32.gmra.mrb[0].mxu0 %v701
      %v1034 = vpop.f32.mrb[0].mxu0
      %v1035 = vadd.f32 0.0, %v1034
      %v1036 = vpop.f32.mrb[0].mxu0
      %1037 = vmatprep.mubr.f32.mxu0 0.0
      %1038 = vmatmul.mubr.f32.gmra.mrb[0].mxu0 %v704
      %v1039 = vpop.f32.mrb[0].mxu0
      %v1040 = vadd.f32 0.0, %v1039
      %v1041 = vpop.f32.mrb[0].mxu0
      %1042 = vmatprep.mubr.f32.mxu0 0.0
      %1043 = vmatmul.mubr.f32.gmra.mrb[0].mxu0 %v707
      %v1044 = vpop.f32.mrb[0].mxu0
      %v1045 = vadd.f32 0.0, %v1044
      %v1046 = vpop.f32.mrb[0].mxu0
      %1047 = vmatprep.mubr.f32.mxu0 0.0
      %1048 = vmatmul.mubr.f32.gmra.mrb[0].mxu0 %v710
      %v1049 = vpop.f32.mrb[0].mxu0
      %v1050 = vadd.f32 0.0, %v1049
      %v1051 = vpop.f32.mrb[0].mxu0
      %1052 = vmatprep.mubr.f32.mxu0 0.0
      %1053 = vmatmul.mubr.f32.gmra.mrb[0].mxu0 %v713
      %v1054 = vpop.f32.mrb[0].mxu0
      %v1055 = vadd.f32 0.0, %v1054
      %v1056 = vpop.f32.mrb[0].mxu0
      %1057 = vmatprep.mubr.f32.mxu0 0.0
      %1058 = vmatmul.mubr.f32.gmra.mrb[0].mxu0 %v716
      %v1059 = vpop.f32.mrb[0].mxu0
      %v1060 = vadd.f32 0.0, %v1059
      %v1061 = vpop.f32.mrb[0].mxu0
      %1062 = vmatprep.mubr.f32.mxu0 0.0
      %1063 = vmatmul.mubr.f32.gmra.mrb[0].mxu0 %v719
      %v1064 = vpop.f32.mrb[0].mxu0
      %v1065 = vadd.f32 0.0, %v1064
      %v1066 = vpop.f32.mrb[0].mxu0
      %1067 = vmatprep.mubr.f32.mxu0 0.0
      %1068 = vmatmul.mubr.f32.gmra.mrb[0].mxu0 %v722
      %v1069 = vpop.f32.mrb[0].mxu0
      %v1070 = vadd.f32 0.0, %v1069
      %v1071 = vpop.f32.mrb[0].mxu0
      %1072 = vmatprep.mubr.f32.mxu0 0.0
      %1073 = vmatmul.mubr.f32.gmra.mrb[0].mxu0 %v725
      %v1074 = vpop.f32.mrb[0].mxu0
      %v1075 = vadd.f32 0.0, %v1074
      %v1076 = vpop.f32.mrb[0].mxu0
      %1077 = vmatprep.mubr.f32.mxu0 0.0
      %1078 = vmatmul.mubr.f32.gmra.mrb[0].mxu0 %v728
      %v1079 = vpop.f32.mrb[0].mxu0
      %v1080 = vadd.f32 0.0, %v1079
      %v1081 = vpop.f32.mrb[0].mxu0
      %1082 = vmatprep.mubr.f32.mxu0 0.0
      %1083 = vmatmul.mubr.f32.gmra.mrb[0].mxu0 %v731
      %v1084 = vpop.f32.mrb[0].mxu0
      %v1085 = vadd.f32 0.0, %v1084
      %v1086 = vpop.f32.mrb[0].mxu0
      %1087 = vmatprep.mubr.f32.mxu0 0.0
      %1088 = vmatmul.mubr.f32.gmra.mrb[0].mxu0 %v734
      %v1089 = vpop.f32.mrb[0].mxu0
      %v1090 = vadd.f32 0.0, %v1089
      %v1091 = vpop.f32.mrb[0].mxu0
      %1092 = vmatprep.mubr.f32.mxu0 0.0
      %1093 = vmatmul.mubr.f32.gmra.mrb[0].mxu0 %v737
      %v1094 = vpop.f32.mrb[0].mxu0
      %v1095 = vadd.f32 0.0, %v1094
      %v1096 = vpop.f32.mrb[0].mxu0
      %1097 = vmatprep.mubr.f32.mxu0 0.0
      %1098 = vmatmul.mubr.f32.gmra.mrb[0].mxu0 %v740
      %v1099 = vpop.f32.mrb[0].mxu0
      %v1100 = vadd.f32 0.0, %v1099
      %v1101 = vpop.f32.mrb[0].mxu0
      %1102 = vmatprep.mubr.f32.mxu0 0.0
      %1103 = vmatmul.mubr.f32.gmra.mrb[0].mxu0 %v743
      %v1104 = vpop.f32.mrb[0].mxu0
      %v1105 = vadd.f32 0.0, %v1104
      %v1106 = vpop.f32.mrb[0].mxu0
      %1107 = vmatprep.mubr.f32.mxu0 0.0
      %1108 = vmatmul.mubr.f32.gmra.mrb[0].mxu0 %v746
      %v1109 = vpop.f32.mrb[0].mxu0
      %v1110 = vadd.f32 0.0, %v1109
      %v1111 = vpop.f32.mrb[0].mxu0
      %1112 = vmatprep.mubr.f32.mxu0 0.0
      %1113 = vmatmul.mubr.f32.gmra.mrb[0].mxu0 %v749
      %v1114 = vpop.f32.mrb[0].mxu0
      %v1115 = vadd.f32 0.0, %v1114
      %v1116 = vpop.f32.mrb[0].mxu0
      %1117 = vmatprep.mubr.f32.mxu0 0.0
      %1118 = vmatmul.mubr.f32.gmra.mrb[0].mxu0 %v752
      %v1119 = vpop.f32.mrb[0].mxu0
      %v1120 = vadd.f32 0.0, %v1119
      %v1121 = vpop.f32.mrb[0].mxu0
      %1122 = vmatprep.mubr.f32.mxu0 0.0
      %1123 = vmatmul.mubr.f32.gmra.mrb[0].mxu0 %v755
      %v1124 = vpop.f32.mrb[0].mxu0
      %v1125 = vadd.f32 0.0, %v1124
      %v1126 = vpop.f32.mrb[0].mxu0
      %1127 = vmatprep.mubr.f32.mxu0 0.0
      %1128 = vmatmul.mubr.f32.gmra.mrb[0].mxu0 %v758
      %v1129 = vpop.f32.mrb[0].mxu0
      %v1130 = vadd.f32 0.0, %v1129
      %v1131 = vpop.f32.mrb[0].mxu0
      %1132 = vmatprep.mubr.f32.mxu0 0.0
      %1133 = vmatmul.mubr.f32.gmra.mrb[0].mxu0 %v761
      %v1134 = vpop.f32.mrb[0].mxu0
      %v1135 = vadd.f32 0.0, %v1134
      %v1136 = vpop.f32.mrb[0].mxu0
      %1137 = vmatprep.mubr.f32.mxu0 0.0
      %1138 = vmatmul.mubr.f32.gmra.mrb[0].mxu0 %v764
      %v1139 = vpop.f32.mrb[0].mxu0
      %v1140 = vadd.f32 0.0, %v1139
      %v1141 = vpop.f32.mrb[0].mxu0
      %1142 = vmatprep.mubr.f32.mxu0 0.0
      %1143 = vmatmul.mubr.f32.gmra.mrb[0].mxu0 %v767
      %v1144 = vpop.f32.mrb[0].mxu0
      %v1145 = vadd.f32 0.0, %v1144
      %v1146 = vpop.f32.mrb[0].mxu0
      %1147 = vmatprep.mubr.f32.mxu0 0.0
      %1148 = vmatmul.mubr.f32.gmra.mrb[0].mxu0 %v770
      %v1149 = vpop.f32.mrb[0].mxu0
      %v1150 = vadd.f32 0.0, %v1149
      %v1151 = vpop.f32.mrb[0].mxu0
      %1152 = vmatprep.mubr.f32.mxu0 0.0
      %1153 = vmatmul.mubr.f32.gmra.mrb[0].mxu0 %v773
      %v1154 = vpop.f32.mrb[0].mxu0
      %v1155 = vadd.f32 0.0, %v1154
      %v1156 = vpop.f32.mrb[0].mxu0
      %1157 = vmatprep.mubr.f32.mxu0 0.0
      %1158 = vmatmul.mubr.f32.gmra.mrb[0].mxu0 %v776
      %v1159 = vpop.f32.mrb[0].mxu0
      %v1160 = vadd.f32 0.0, %v1159
      %v1161 = vpop.f32.mrb[0].mxu0
      %1162 = vmatprep.mubr.f32.mxu0 0.0
      %1163 = vmatmul.mubr.f32.gmra.mrb[0].mxu0 %v779
      %v1164 = vpop.f32.mrb[0].mxu0
      %v1165 = vadd.f32 0.0, %v1164
      %v1166 = vpop.f32.mrb[0].mxu0
      %1167 = vmatprep.mubr.f32.mxu0 0.0
      %1168 = vmatmul.mubr.f32.gmra.mrb[0].mxu0 %v782
      %v1169 = vpop.f32.mrb[0].mxu0
      %v1170 = vadd.f32 0.0, %v1169
      %v1171 = vpop.f32.mrb[0].mxu0
      %1172 = vmatprep.mubr.f32.mxu0 0.0
      %1173 = vmatmul.mubr.f32.gmra.mrb[0].mxu0 %v785
      %v1174 = vpop.f32.mrb[0].mxu0
      %v1175 = vadd.f32 0.0, %v1174
      %v1176 = vpop.f32.mrb[0].mxu0
      %1177 = vmatprep.mubr.f32.mxu0 0.0
      %1178 = vmatmul.mubr.f32.gmra.mrb[0].mxu0 %v788
      %v1179 = vpop.f32.mrb[0].mxu0
      %v1180 = vadd.f32 0.0, %v1179
      %v1181 = vpop.f32.mrb[0].mxu0
      %1182 = vmatprep.mubr.f32.mxu0 0.0
      %1183 = vmatmul.mubr.f32.gmra.mrb[0].mxu0 %v791
      %v1184 = vpop.f32.mrb[0].mxu0
      %v1185 = vadd.f32 0.0, %v1184
      %v1186 = vpop.f32.mrb[0].mxu0
      %1187 = vmatprep.mubr.f32.mxu0 0.0
      %1188 = vmatmul.mubr.f32.gmra.mrb[0].mxu0 %v794
      %v1189 = vpop.f32.mrb[0].mxu0
      %v1190 = vadd.f32 0.0, %v1189
      %v1191 = vpop.f32.mrb[0].mxu0
      %1192 = vmatprep.mubr.f32.mxu0 0.0
      %1193 = vmatmul.mubr.f32.gmra.mrb[0].mxu0 %v797
      %v1194 = vpop.f32.mrb[0].mxu0
      %v1195 = vadd.f32 0.0, %v1194
      %v1196 = vpop.f32.mrb[0].mxu0
      %1197 = vmatprep.mubr.f32.mxu0 0.0
      %1198 = vmatmul.mubr.f32.gmra.mrb[0].mxu0 %v800
      %v1199 = vpop.f32.mrb[0].mxu0
      %v1200 = vadd.f32 0.0, %v1199
      %v1201 = vpop.f32.mrb[0].mxu0
      %1202 = vmatprep.mubr.f32.mxu0 0.0
      %1203 = vmatmul.mubr.f32.gmra.mrb[0].mxu0 %v803
      %v1204 = vpop.f32.mrb[0].mxu0
      %v1205 = vadd.f32 0.0, %v1204
      %v1206 = vpop.f32.mrb[0].mxu0
      %1207 = vmatprep.mubr.f32.mxu0 0.0
      %1208 = vmatmul.mubr.f32.gmra.mrb[0].mxu0 %v806
      %v1209 = vpop.f32.mrb[0].mxu0
      %v1210 = vadd.f32 0.0, %v1209
      %v1211 = vpop.f32.mrb[0].mxu0
      %1212 = vmatprep.mubr.f32.mxu0 0.0
      %1213 = vmatmul.mubr.f32.gmra.mrb[0].mxu0 %v809
      %v1214 = vpop.f32.mrb[0].mxu0
      %v1215 = vadd.f32 0.0, %v1214
      %v1216 = vpop.f32.mrb[0].mxu0
      %1217 = vmatprep.mubr.f32.mxu0 0.0
      %1218 = vmatmul.mubr.f32.gmra.mrb[0].mxu0 %v812
      %v1219 = vpop.f32.mrb[0].mxu0
      %v1220 = vadd.f32 0.0, %v1219
      %v1221 = vpop.f32.mrb[0].mxu0
      %1222 = vmatprep.mubr.f32.mxu0 0.0
      %1223 = vmatmul.mubr.f32.gmra.mrb[0].mxu0 %v815
      %v1224 = vpop.f32.mrb[0].mxu0
      %v1225 = vadd.f32 0.0, %v1224
      %v1226 = vpop.f32.mrb[0].mxu0
      %1227 = vmatprep.mubr.f32.mxu0 0.0
      %1228 = vmatmul.mubr.f32.gmra.mrb[0].mxu0 %v818
      %v1229 = vpop.f32.mrb[0].mxu0
      %v1230 = vadd.f32 0.0, %v1229
      %v1231 = vpop.f32.mrb[0].mxu0
      %1232 = vmatprep.mubr.f32.mxu0 0.0
      %1233 = vmatmul.mubr.f32.gmra.mrb[0].mxu0 %v821
      %v1234 = vpop.f32.mrb[0].mxu0
      %v1235 = vadd.f32 0.0, %v1234
      %v1236 = vpop.f32.mrb[0].mxu0
      %1237 = vmatprep.mubr.f32.mxu0 0.0
      %1238 = vmatmul.mubr.f32.gmra.mrb[0].mxu0 %v824
      %v1239 = vpop.f32.mrb[0].mxu0
      %v1240 = vadd.f32 0.0, %v1239
      %v1241 = vpop.f32.mrb[0].mxu0
      %1242 = vmatprep.mubr.f32.mxu0 0.0
      %1243 = vmatmul.mubr.f32.gmra.mrb[0].mxu0 %v827
      %v1244 = vpop.f32.mrb[0].mxu0
      %v1245 = vadd.f32 0.0, %v1244
      %v1246 = vpop.f32.mrb[0].mxu0
      %1247 = vmatprep.mubr.f32.mxu0 0.0
      %1248 = vmatmul.mubr.f32.gmra.mrb[0].mxu0 %v830
      %v1249 = vpop.f32.mrb[0].mxu0
      %v1250 = vadd.f32 0.0, %v1249
      %v1251 = vpop.f32.mrb[0].mxu0
      %1252 = vmatprep.mubr.f32.mxu0 0.0
      %1253 = vmatmul.mubr.f32.gmra.mrb[0].mxu0 %v833
      %v1254 = vpop.f32.mrb[0].mxu0
      %v1255 = vadd.f32 0.0, %v1254
      %v1256 = vpop.f32.mrb[0].mxu0
      %1257 = vmatprep.mubr.f32.mxu0 0.0
      %1258 = vmatmul.mubr.f32.gmra.mrb[0].mxu0 %v836
      %v1259 = vpop.f32.mrb[0].mxu0
      %v1260 = vadd.f32 0.0, %v1259
      %v1261 = vpop.f32.mrb[0].mxu0
      %1262 = vmatprep.mubr.f32.mxu0 0.0
      %1263 = vmatmul.mubr.f32.gmra.mrb[0].mxu0 %v839
      %v1264 = vpop.f32.mrb[0].mxu0
      %v1265 = vadd.f32 0.0, %v1264
      %v1266 = vpop.f32.mrb[0].mxu0
      %1267 = vmatprep.mubr.f32.mxu0 0.0
      %1268 = vmatmul.mubr.f32.gmra.mrb[0].mxu0 %v842
      %v1269 = vpop.f32.mrb[0].mxu0
      %v1270 = vadd.f32 0.0, %v1269
      %v1271 = vpop.f32.mrb[0].mxu0
      %1272 = vdwg.mxu0
      %v1273 = vld [vmem:[%s9] sm:$0x1]
      %v1275 = vlaneseq
      %v1276 = vshrl.u32 %v1275, 7
      %v1277 = vsub.s32 0, %v1276
      %v1278 = vrot.slane %v1273, %v1277
      %v1280 = vmul.f32 %v915, %v1278
      %v1281 = vmul.f32 %v920, %v1278
      %v1282 = vmul.f32 %v925, %v1278
      %v1283 = vmul.f32 %v930, %v1278
      %v1284 = vmul.f32 %v935, %v1278
      %v1285 = vmul.f32 %v940, %v1278
      %v1286 = vmul.f32 %v945, %v1278
      %v1287 = vmul.f32 %v950, %v1278
      %v1288 = vmul.f32 %v955, %v1278
      %v1289 = vmul.f32 %v960, %v1278
      %v1290 = vmul.f32 %v965, %v1278
      %v1291 = vmul.f32 %v970, %v1278
      %v1292 = vmul.f32 %v975, %v1278
      %v1293 = vmul.f32 %v980, %v1278
      %v1294 = vmul.f32 %v985, %v1278
      %v1295 = vmul.f32 %v990, %v1278
      %v1296 = vmul.f32 %v995, %v1278
      %v1297 = vmul.f32 %v1000, %v1278
      %v1298 = vmul.f32 %v1005, %v1278
      %v1299 = vmul.f32 %v1010, %v1278
      %v1300 = vmul.f32 %v1015, %v1278
      %v1301 = vmul.f32 %v1020, %v1278
      %v1302 = vmul.f32 %v1025, %v1278
      %v1303 = vmul.f32 %v1030, %v1278
      %v1304 = vmul.f32 %v1035, %v1278
      %v1305 = vmul.f32 %v1040, %v1278
      %v1306 = vmul.f32 %v1045, %v1278
      %v1307 = vmul.f32 %v1050, %v1278
      %v1308 = vmul.f32 %v1055, %v1278
      %v1309 = vmul.f32 %v1060, %v1278
      %v1310 = vmul.f32 %v1065, %v1278
      %v1311 = vmul.f32 %v1070, %v1278
      %v1312 = vmul.f32 %v1075, %v1278
      %v1313 = vmul.f32 %v1080, %v1278
      %v1314 = vmul.f32 %v1085, %v1278
      %v1315 = vmul.f32 %v1090, %v1278
      %v1316 = vmul.f32 %v1095, %v1278
      %v1317 = vmul.f32 %v1100, %v1278
      %v1318 = vmul.f32 %v1105, %v1278
      %v1319 = vmul.f32 %v1110, %v1278
      %v1320 = vmul.f32 %v1115, %v1278
      %v1321 = vmul.f32 %v1120, %v1278
      %v1322 = vmul.f32 %v1125, %v1278
      %v1323 = vmul.f32 %v1130, %v1278
      %v1324 = vmul.f32 %v1135, %v1278
      %v1325 = vmul.f32 %v1140, %v1278
      %v1326 = vmul.f32 %v1145, %v1278
      %v1327 = vmul.f32 %v1150, %v1278
      %v1328 = vmul.f32 %v1155, %v1278
      %v1329 = vmul.f32 %v1160, %v1278
      %v1330 = vmul.f32 %v1165, %v1278
      %v1331 = vmul.f32 %v1170, %v1278
      %v1332 = vmul.f32 %v1175, %v1278
      %v1333 = vmul.f32 %v1180, %v1278
      %v1334 = vmul.f32 %v1185, %v1278
      %v1335 = vmul.f32 %v1190, %v1278
      %v1336 = vmul.f32 %v1195, %v1278
      %v1337 = vmul.f32 %v1200, %v1278
      %v1338 = vmul.f32 %v1205, %v1278
      %v1339 = vmul.f32 %v1210, %v1278
      %v1340 = vmul.f32 %v1215, %v1278
      %v1341 = vmul.f32 %v1220, %v1278
      %v1342 = vmul.f32 %v1225, %v1278
      %v1343 = vmul.f32 %v1230, %v1278
      %v1344 = vmul.f32 %v1235, %v1278
      %v1345 = vmul.f32 %v1240, %v1278
      %v1346 = vmul.f32 %v1245, %v1278
      %v1347 = vmul.f32 %v1250, %v1278
      %v1348 = vmul.f32 %v1255, %v1278
      %v1349 = vmul.f32 %v1260, %v1278
      %v1350 = vmul.f32 %v1265, %v1278
      %v1351 = vmul.f32 %v1270, %v1278
      %v1352 = vld [vmem:[%s10] sm:$0x1]
      %v1354 = vlaneseq
      %v1355 = vshrl.u32 %v1354, 7
      %v1356 = vsub.s32 0, %v1355
      %v1357 = vrot.slane %v1352, %v1356
      %v1359 = vadd.f32 %v1280, %v1357
      %v1360 = vadd.f32 %v1281, %v1357
      %v1361 = vadd.f32 %v1282, %v1357
      %v1362 = vadd.f32 %v1283, %v1357
      %v1363 = vadd.f32 %v1284, %v1357
      %v1364 = vadd.f32 %v1285, %v1357
      %v1365 = vadd.f32 %v1286, %v1357
      %v1366 = vadd.f32 %v1287, %v1357
      %v1367 = vadd.f32 %v1288, %v1357
      %v1368 = vadd.f32 %v1289, %v1357
      %v1369 = vadd.f32 %v1290, %v1357
      %v1370 = vadd.f32 %v1291, %v1357
      %v1371 = vadd.f32 %v1292, %v1357
      %v1372 = vadd.f32 %v1293, %v1357
      %v1373 = vadd.f32 %v1294, %v1357
      %v1374 = vadd.f32 %v1295, %v1357
      %v1375 = vadd.f32 %v1296, %v1357
      %v1376 = vadd.f32 %v1297, %v1357
      %v1377 = vadd.f32 %v1298, %v1357
      %v1378 = vadd.f32 %v1299, %v1357
      %v1379 = vadd.f32 %v1300, %v1357
      %v1380 = vadd.f32 %v1301, %v1357
      %v1381 = vadd.f32 %v1302, %v1357
      %v1382 = vadd.f32 %v1303, %v1357
      %v1383 = vadd.f32 %v1304, %v1357
      %v1384 = vadd.f32 %v1305, %v1357
      %v1385 = vadd.f32 %v1306, %v1357
      %v1386 = vadd.f32 %v1307, %v1357
      %v1387 = vadd.f32 %v1308, %v1357
      %v1388 = vadd.f32 %v1309, %v1357
      %v1389 = vadd.f32 %v1310, %v1357
      %v1390 = vadd.f32 %v1311, %v1357
      %v1391 = vadd.f32 %v1312, %v1357
      %v1392 = vadd.f32 %v1313, %v1357
      %v1393 = vadd.f32 %v1314, %v1357
      %v1394 = vadd.f32 %v1315, %v1357
      %v1395 = vadd.f32 %v1316, %v1357
      %v1396 = vadd.f32 %v1317, %v1357
      %v1397 = vadd.f32 %v1318, %v1357
      %v1398 = vadd.f32 %v1319, %v1357
      %v1399 = vadd.f32 %v1320, %v1357
      %v1400 = vadd.f32 %v1321, %v1357
      %v1401 = vadd.f32 %v1322, %v1357
      %v1402 = vadd.f32 %v1323, %v1357
      %v1403 = vadd.f32 %v1324, %v1357
      %v1404 = vadd.f32 %v1325, %v1357
      %v1405 = vadd.f32 %v1326, %v1357
      %v1406 = vadd.f32 %v1327, %v1357
      %v1407 = vadd.f32 %v1328, %v1357
      %v1408 = vadd.f32 %v1329, %v1357
      %v1409 = vadd.f32 %v1330, %v1357
      %v1410 = vadd.f32 %v1331, %v1357
      %v1411 = vadd.f32 %v1332, %v1357
      %v1412 = vadd.f32 %v1333, %v1357
      %v1413 = vadd.f32 %v1334, %v1357
      %v1414 = vadd.f32 %v1335, %v1357
      %v1415 = vadd.f32 %v1336, %v1357
      %v1416 = vadd.f32 %v1337, %v1357
      %v1417 = vadd.f32 %v1338, %v1357
      %v1418 = vadd.f32 %v1339, %v1357
      %v1419 = vadd.f32 %v1340, %v1357
      %v1420 = vadd.f32 %v1341, %v1357
      %v1421 = vadd.f32 %v1342, %v1357
      %v1422 = vadd.f32 %v1343, %v1357
      %v1423 = vadd.f32 %v1344, %v1357
      %v1424 = vadd.f32 %v1345, %v1357
      %v1425 = vadd.f32 %v1346, %v1357
      %v1426 = vadd.f32 %v1347, %v1357
      %v1427 = vadd.f32 %v1348, %v1357
      %v1428 = vadd.f32 %v1349, %v1357
      %v1429 = vadd.f32 %v1350, %v1357
      %v1430 = vadd.f32 %v1351, %v1357
      %v1431 = vmax.f32 %v1359, 0.0
      %v1432 = vmax.f32 %v1360, 0.0
      %v1433 = vmax.f32 %v1361, 0.0
      %v1434 = vmax.f32 %v1362, 0.0
      %v1435 = vmax.f32 %v1363, 0.0
      %v1436 = vmax.f32 %v1364, 0.0
      %v1437 = vmax.f32 %v1365, 0.0
      %v1438 = vmax.f32 %v1366, 0.0
      %v1439 = vmax.f32 %v1367, 0.0
      %v1440 = vmax.f32 %v1368, 0.0
      %v1441 = vmax.f32 %v1369, 0.0
      %v1442 = vmax.f32 %v1370, 0.0
      %v1443 = vmax.f32 %v1371, 0.0
      %v1444 = vmax.f32 %v1372, 0.0
      %v1445 = vmax.f32 %v1373, 0.0
      %v1446 = vmax.f32 %v1374, 0.0
      %v1447 = vmax.f32 %v1375, 0.0
      %v1448 = vmax.f32 %v1376, 0.0
      %v1449 = vmax.f32 %v1377, 0.0
      %v1450 = vmax.f32 %v1378, 0.0
      %v1451 = vmax.f32 %v1379, 0.0
      %v1452 = vmax.f32 %v1380, 0.0
      %v1453 = vmax.f32 %v1381, 0.0
      %v1454 = vmax.f32 %v1382, 0.0
      %v1455 = vmax.f32 %v1383, 0.0
      %v1456 = vmax.f32 %v1384, 0.0
      %v1457 = vmax.f32 %v1385, 0.0
      %v1458 = vmax.f32 %v1386, 0.0
      %v1459 = vmax.f32 %v1387, 0.0
      %v1460 = vmax.f32 %v1388, 0.0
      %v1461 = vmax.f32 %v1389, 0.0
      %v1462 = vmax.f32 %v1390, 0.0
      %v1463 = vmax.f32 %v1391, 0.0
      %v1464 = vmax.f32 %v1392, 0.0
      %v1465 = vmax.f32 %v1393, 0.0
      %v1466 = vmax.f32 %v1394, 0.0
      %v1467 = vmax.f32 %v1395, 0.0
      %v1468 = vmax.f32 %v1396, 0.0
      %v1469 = vmax.f32 %v1397, 0.0
      %v1470 = vmax.f32 %v1398, 0.0
      %v1471 = vmax.f32 %v1399, 0.0
      %v1472 = vmax.f32 %v1400, 0.0
      %v1473 = vmax.f32 %v1401, 0.0
      %v1474 = vmax.f32 %v1402, 0.0
      %v1475 = vmax.f32 %v1403, 0.0
      %v1476 = vmax.f32 %v1404, 0.0
      %v1477 = vmax.f32 %v1405, 0.0
      %v1478 = vmax.f32 %v1406, 0.0
      %v1479 = vmax.f32 %v1407, 0.0
      %v1480 = vmax.f32 %v1408, 0.0
      %v1481 = vmax.f32 %v1409, 0.0
      %v1482 = vmax.f32 %v1410, 0.0
      %v1483 = vmax.f32 %v1411, 0.0
      %v1484 = vmax.f32 %v1412, 0.0
      %v1485 = vmax.f32 %v1413, 0.0
      %v1486 = vmax.f32 %v1414, 0.0
      %v1487 = vmax.f32 %v1415, 0.0
      %v1488 = vmax.f32 %v1416, 0.0
      %v1489 = vmax.f32 %v1417, 0.0
      %v1490 = vmax.f32 %v1418, 0.0
      %v1491 = vmax.f32 %v1419, 0.0
      %v1492 = vmax.f32 %v1420, 0.0
      %v1493 = vmax.f32 %v1421, 0.0
      %v1494 = vmax.f32 %v1422, 0.0
      %v1495 = vmax.f32 %v1423, 0.0
      %v1496 = vmax.f32 %v1424, 0.0
      %v1497 = vmax.f32 %v1425, 0.0
      %v1498 = vmax.f32 %v1426, 0.0
      %v1499 = vmax.f32 %v1427, 0.0
      %v1500 = vmax.f32 %v1428, 0.0
      %v1501 = vmax.f32 %v1429, 0.0
      %v1502 = vmax.f32 %v1430, 0.0
      %v1503 = vld [vmem:[%s1] sm:$0xff]
      %v1504 = vld [vmem:[%s1 + $0x8] sm:$0xff]
      %v1505 = vld [vmem:[%s1 + $0x10] sm:$0xff]
      %v1506 = vld [vmem:[%s1 + $0x18] sm:$0xff]
      %v1507 = vld [vmem:[%s1 + $0x20] sm:$0xff]
      %v1508 = vld [vmem:[%s1 + $0x28] sm:$0xff]
      %v1509 = vld [vmem:[%s1 + $0x30] sm:$0xff]
      %v1510 = vld [vmem:[%s1 + $0x38] sm:$0xff]
      %v1511 = vld [vmem:[%s1 + $0x40] sm:$0xff]
      %v1512 = vld [vmem:[%s1 + $0x48] sm:$0xff]
      %v1513 = vld [vmem:[%s1 + $0x50] sm:$0xff]
      %v1514 = vld [vmem:[%s1 + $0x58] sm:$0xff]
      %v1515 = vld [vmem:[%s1 + $0x60] sm:$0xff]
      %v1516 = vld [vmem:[%s1 + $0x68] sm:$0xff]
      %v1517 = vld [vmem:[%s1 + $0x70] sm:$0xff]
      %v1518 = vld [vmem:[%s1 + $0x78] sm:$0xff]
      %v1519 = vld [vmem:[%s1 + $0x80] sm:$0xff]
      %v1520 = vld [vmem:[%s1 + $0x88] sm:$0xff]
      %v1521 = vld [vmem:[%s1 + $0x90] sm:$0xff]
      %v1522 = vld [vmem:[%s1 + $0x98] sm:$0xff]
      %v1523 = vld [vmem:[%s1 + $0xa0] sm:$0xff]
      %v1524 = vld [vmem:[%s1 + $0xa8] sm:$0xff]
      %v1525 = vld [vmem:[%s1 + $0xb0] sm:$0xff]
      %v1526 = vld [vmem:[%s1 + $0xb8] sm:$0xff]
      %v1527 = vld [vmem:[%s1 + $0xc0] sm:$0xff]
      %v1528 = vld [vmem:[%s1 + $0xc8] sm:$0xff]
      %v1529 = vld [vmem:[%s1 + $0xd0] sm:$0xff]
      %v1530 = vld [vmem:[%s1 + $0xd8] sm:$0xff]
      %v1531 = vld [vmem:[%s1 + $0xe0] sm:$0xff]
      %v1532 = vld [vmem:[%s1 + $0xe8] sm:$0xff]
      %v1533 = vld [vmem:[%s1 + $0xf0] sm:$0xff]
      %v1534 = vld [vmem:[%s1 + $0xf8] sm:$0xff]
      %v1535 = vld [vmem:[%s1 + $0x100] sm:$0xff]
      %v1536 = vld [vmem:[%s1 + $0x108] sm:$0xff]
      %v1537 = vld [vmem:[%s1 + $0x110] sm:$0xff]
      %v1538 = vld [vmem:[%s1 + $0x118] sm:$0xff]
      %v1539 = vld [vmem:[%s1 + $0x120] sm:$0xff]
      %v1540 = vld [vmem:[%s1 + $0x128] sm:$0xff]
      %v1541 = vld [vmem:[%s1 + $0x130] sm:$0xff]
      %v1542 = vld [vmem:[%s1 + $0x138] sm:$0xff]
      %v1543 = vld [vmem:[%s1 + $0x140] sm:$0xff]
      %v1544 = vld [vmem:[%s1 + $0x148] sm:$0xff]
      %v1545 = vld [vmem:[%s1 + $0x150] sm:$0xff]
      %v1546 = vld [vmem:[%s1 + $0x158] sm:$0xff]
      %v1547 = vld [vmem:[%s1 + $0x160] sm:$0xff]
      %v1548 = vld [vmem:[%s1 + $0x168] sm:$0xff]
      %v1549 = vld [vmem:[%s1 + $0x170] sm:$0xff]
      %v1550 = vld [vmem:[%s1 + $0x178] sm:$0xff]
      %v1551 = vld [vmem:[%s1 + $0x180] sm:$0xff]
      %v1552 = vld [vmem:[%s1 + $0x188] sm:$0xff]
      %v1553 = vld [vmem:[%s1 + $0x190] sm:$0xff]
      %v1554 = vld [vmem:[%s1 + $0x198] sm:$0xff]
      %v1555 = vld [vmem:[%s1 + $0x1a0] sm:$0xff]
      %v1556 = vld [vmem:[%s1 + $0x1a8] sm:$0xff]
      %v1557 = vld [vmem:[%s1 + $0x1b0] sm:$0xff]
      %v1558 = vld [vmem:[%s1 + $0x1b8] sm:$0xff]
      %v1559 = vld [vmem:[%s1 + $0x1c0] sm:$0xff]
      %v1560 = vld [vmem:[%s1 + $0x1c8] sm:$0xff]
      %v1561 = vld [vmem:[%s1 + $0x1d0] sm:$0xff]
      %v1562 = vld [vmem:[%s1 + $0x1d8] sm:$0xff]
      %v1563 = vld [vmem:[%s1 + $0x1e0] sm:$0xff]
      %v1564 = vld [vmem:[%s1 + $0x1e8] sm:$0xff]
      %v1565 = vld [vmem:[%s1 + $0x1f0] sm:$0xff]
      %v1566 = vld [vmem:[%s1 + $0x1f8] sm:$0xff]
      %v1567 = vld [vmem:[%s1 + $0x200] sm:$0xff]
      %v1568 = vld [vmem:[%s1 + $0x208] sm:$0xff]
      %v1569 = vld [vmem:[%s1 + $0x210] sm:$0xff]
      %v1570 = vld [vmem:[%s1 + $0x218] sm:$0xff]
      %v1571 = vld [vmem:[%s1 + $0x220] sm:$0xff]
      %v1572 = vld [vmem:[%s1 + $0x228] sm:$0xff]
      %v1573 = vld [vmem:[%s1 + $0x230] sm:$0xff]
      %v1574 = vld [vmem:[%s1 + $0x238] sm:$0xff]
      %1576 = vset.pattern.permute.xlu0 0
      %1577 = vperm.xlu0 %1576, %v1503
      %v1578 = vpop.permute.xlu0 %1577
      %1581 = vset.pattern.permute.xlu0 0
      %1582 = vperm.xlu0 %1581, %v1504
      %v1583 = vpop.permute.xlu0 %1582
      %1586 = vset.pattern.permute.xlu0 0
      %1587 = vperm.xlu0 %1586, %v1505
      %v1588 = vpop.permute.xlu0 %1587
      %1591 = vset.pattern.permute.xlu0 0
      %1592 = vperm.xlu0 %1591, %v1506
      %v1593 = vpop.permute.xlu0 %1592
      %1596 = vset.pattern.permute.xlu0 0
      %1597 = vperm.xlu0 %1596, %v1507
      %v1598 = vpop.permute.xlu0 %1597
      %1601 = vset.pattern.permute.xlu0 0
      %1602 = vperm.xlu0 %1601, %v1508
      %v1603 = vpop.permute.xlu0 %1602
      %1606 = vset.pattern.permute.xlu0 0
      %1607 = vperm.xlu0 %1606, %v1509
      %v1608 = vpop.permute.xlu0 %1607
      %1611 = vset.pattern.permute.xlu0 0
      %1612 = vperm.xlu0 %1611, %v1510
      %v1613 = vpop.permute.xlu0 %1612
      %1616 = vset.pattern.permute.xlu0 0
      %1617 = vperm.xlu0 %1616, %v1511
      %v1618 = vpop.permute.xlu0 %1617
      %1621 = vset.pattern.permute.xlu0 0
      %1622 = vperm.xlu0 %1621, %v1512
      %v1623 = vpop.permute.xlu0 %1622
      %1626 = vset.pattern.permute.xlu0 0
      %1627 = vperm.xlu0 %1626, %v1513
      %v1628 = vpop.permute.xlu0 %1627
      %1631 = vset.pattern.permute.xlu0 0
      %1632 = vperm.xlu0 %1631, %v1514
      %v1633 = vpop.permute.xlu0 %1632
      %1636 = vset.pattern.permute.xlu0 0
      %1637 = vperm.xlu0 %1636, %v1515
      %v1638 = vpop.permute.xlu0 %1637
      %1641 = vset.pattern.permute.xlu0 0
      %1642 = vperm.xlu0 %1641, %v1516
      %v1643 = vpop.permute.xlu0 %1642
      %1646 = vset.pattern.permute.xlu0 0
      %1647 = vperm.xlu0 %1646, %v1517
      %v1648 = vpop.permute.xlu0 %1647
      %1651 = vset.pattern.permute.xlu0 0
      %1652 = vperm.xlu0 %1651, %v1518
      %v1653 = vpop.permute.xlu0 %1652
      %1656 = vset.pattern.permute.xlu0 0
      %1657 = vperm.xlu0 %1656, %v1519
      %v1658 = vpop.permute.xlu0 %1657
      %1661 = vset.pattern.permute.xlu0 0
      %1662 = vperm.xlu0 %1661, %v1520
      %v1663 = vpop.permute.xlu0 %1662
      %1666 = vset.pattern.permute.xlu0 0
      %1667 = vperm.xlu0 %1666, %v1521
      %v1668 = vpop.permute.xlu0 %1667
      %1671 = vset.pattern.permute.xlu0 0
      %1672 = vperm.xlu0 %1671, %v1522
      %v1673 = vpop.permute.xlu0 %1672
      %1676 = vset.pattern.permute.xlu0 0
      %1677 = vperm.xlu0 %1676, %v1523
      %v1678 = vpop.permute.xlu0 %1677
      %1681 = vset.pattern.permute.xlu0 0
      %1682 = vperm.xlu0 %1681, %v1524
      %v1683 = vpop.permute.xlu0 %1682
      %1686 = vset.pattern.permute.xlu0 0
      %1687 = vperm.xlu0 %1686, %v1525
      %v1688 = vpop.permute.xlu0 %1687
      %1691 = vset.pattern.permute.xlu0 0
      %1692 = vperm.xlu0 %1691, %v1526
      %v1693 = vpop.permute.xlu0 %1692
      %1696 = vset.pattern.permute.xlu0 0
      %1697 = vperm.xlu0 %1696, %v1527
      %v1698 = vpop.permute.xlu0 %1697
      %1701 = vset.pattern.permute.xlu0 0
      %1702 = vperm.xlu0 %1701, %v1528
      %v1703 = vpop.permute.xlu0 %1702
      %1706 = vset.pattern.permute.xlu0 0
      %1707 = vperm.xlu0 %1706, %v1529
      %v1708 = vpop.permute.xlu0 %1707
      %1711 = vset.pattern.permute.xlu0 0
      %1712 = vperm.xlu0 %1711, %v1530
      %v1713 = vpop.permute.xlu0 %1712
      %1716 = vset.pattern.permute.xlu0 0
      %1717 = vperm.xlu0 %1716, %v1531
      %v1718 = vpop.permute.xlu0 %1717
      %1721 = vset.pattern.permute.xlu0 0
      %1722 = vperm.xlu0 %1721, %v1532
      %v1723 = vpop.permute.xlu0 %1722
      %1726 = vset.pattern.permute.xlu0 0
      %1727 = vperm.xlu0 %1726, %v1533
      %v1728 = vpop.permute.xlu0 %1727
      %1731 = vset.pattern.permute.xlu0 0
      %1732 = vperm.xlu0 %1731, %v1534
      %v1733 = vpop.permute.xlu0 %1732
      %1736 = vset.pattern.permute.xlu0 0
      %1737 = vperm.xlu0 %1736, %v1535
      %v1738 = vpop.permute.xlu0 %1737
      %1741 = vset.pattern.permute.xlu0 0
      %1742 = vperm.xlu0 %1741, %v1536
      %v1743 = vpop.permute.xlu0 %1742
      %1746 = vset.pattern.permute.xlu0 0
      %1747 = vperm.xlu0 %1746, %v1537
      %v1748 = vpop.permute.xlu0 %1747
      %1751 = vset.pattern.permute.xlu0 0
      %1752 = vperm.xlu0 %1751, %v1538
      %v1753 = vpop.permute.xlu0 %1752
      %1756 = vset.pattern.permute.xlu0 0
      %1757 = vperm.xlu0 %1756, %v1539
      %v1758 = vpop.permute.xlu0 %1757
      %1761 = vset.pattern.permute.xlu0 0
      %1762 = vperm.xlu0 %1761, %v1540
      %v1763 = vpop.permute.xlu0 %1762
      %1766 = vset.pattern.permute.xlu0 0
      %1767 = vperm.xlu0 %1766, %v1541
      %v1768 = vpop.permute.xlu0 %1767
      %1771 = vset.pattern.permute.xlu0 0
      %1772 = vperm.xlu0 %1771, %v1542
      %v1773 = vpop.permute.xlu0 %1772
      %1776 = vset.pattern.permute.xlu0 0
      %1777 = vperm.xlu0 %1776, %v1543
      %v1778 = vpop.permute.xlu0 %1777
      %1781 = vset.pattern.permute.xlu0 0
      %1782 = vperm.xlu0 %1781, %v1544
      %v1783 = vpop.permute.xlu0 %1782
      %1786 = vset.pattern.permute.xlu0 0
      %1787 = vperm.xlu0 %1786, %v1545
      %v1788 = vpop.permute.xlu0 %1787
      %1791 = vset.pattern.permute.xlu0 0
      %1792 = vperm.xlu0 %1791, %v1546
      %v1793 = vpop.permute.xlu0 %1792
      %1796 = vset.pattern.permute.xlu0 0
      %1797 = vperm.xlu0 %1796, %v1547
      %v1798 = vpop.permute.xlu0 %1797
      %1801 = vset.pattern.permute.xlu0 0
      %1802 = vperm.xlu0 %1801, %v1548
      %v1803 = vpop.permute.xlu0 %1802
      %1806 = vset.pattern.permute.xlu0 0
      %1807 = vperm.xlu0 %1806, %v1549
      %v1808 = vpop.permute.xlu0 %1807
      %1811 = vset.pattern.permute.xlu0 0
      %1812 = vperm.xlu0 %1811, %v1550
      %v1813 = vpop.permute.xlu0 %1812
      %1816 = vset.pattern.permute.xlu0 0
      %1817 = vperm.xlu0 %1816, %v1551
      %v1818 = vpop.permute.xlu0 %1817
      %1821 = vset.pattern.permute.xlu0 0
      %1822 = vperm.xlu0 %1821, %v1552
      %v1823 = vpop.permute.xlu0 %1822
      %1826 = vset.pattern.permute.xlu0 0
      %1827 = vperm.xlu0 %1826, %v1553
      %v1828 = vpop.permute.xlu0 %1827
      %1831 = vset.pattern.permute.xlu0 0
      %1832 = vperm.xlu0 %1831, %v1554
      %v1833 = vpop.permute.xlu0 %1832
      %1836 = vset.pattern.permute.xlu0 0
      %1837 = vperm.xlu0 %1836, %v1555
      %v1838 = vpop.permute.xlu0 %1837
      %1841 = vset.pattern.permute.xlu0 0
      %1842 = vperm.xlu0 %1841, %v1556
      %v1843 = vpop.permute.xlu0 %1842
      %1846 = vset.pattern.permute.xlu0 0
      %1847 = vperm.xlu0 %1846, %v1557
      %v1848 = vpop.permute.xlu0 %1847
      %1851 = vset.pattern.permute.xlu0 0
      %1852 = vperm.xlu0 %1851, %v1558
      %v1853 = vpop.permute.xlu0 %1852
      %1856 = vset.pattern.permute.xlu0 0
      %1857 = vperm.xlu0 %1856, %v1559
      %v1858 = vpop.permute.xlu0 %1857
      %1861 = vset.pattern.permute.xlu0 0
      %1862 = vperm.xlu0 %1861, %v1560
      %v1863 = vpop.permute.xlu0 %1862
      %1866 = vset.pattern.permute.xlu0 0
      %1867 = vperm.xlu0 %1866, %v1561
      %v1868 = vpop.permute.xlu0 %1867
      %1871 = vset.pattern.permute.xlu0 0
      %1872 = vperm.xlu0 %1871, %v1562
      %v1873 = vpop.permute.xlu0 %1872
      %1876 = vset.pattern.permute.xlu0 0
      %1877 = vperm.xlu0 %1876, %v1563
      %v1878 = vpop.permute.xlu0 %1877
      %1881 = vset.pattern.permute.xlu0 0
      %1882 = vperm.xlu0 %1881, %v1564
      %v1883 = vpop.permute.xlu0 %1882
      %1886 = vset.pattern.permute.xlu0 0
      %1887 = vperm.xlu0 %1886, %v1565
      %v1888 = vpop.permute.xlu0 %1887
      %1891 = vset.pattern.permute.xlu0 0
      %1892 = vperm.xlu0 %1891, %v1566
      %v1893 = vpop.permute.xlu0 %1892
      %1896 = vset.pattern.permute.xlu0 0
      %1897 = vperm.xlu0 %1896, %v1567
      %v1898 = vpop.permute.xlu0 %1897
      %1901 = vset.pattern.permute.xlu0 0
      %1902 = vperm.xlu0 %1901, %v1568
      %v1903 = vpop.permute.xlu0 %1902
      %1906 = vset.pattern.permute.xlu0 0
      %1907 = vperm.xlu0 %1906, %v1569
      %v1908 = vpop.permute.xlu0 %1907
      %1911 = vset.pattern.permute.xlu0 0
      %1912 = vperm.xlu0 %1911, %v1570
      %v1913 = vpop.permute.xlu0 %1912
      %1916 = vset.pattern.permute.xlu0 0
      %1917 = vperm.xlu0 %1916, %v1571
      %v1918 = vpop.permute.xlu0 %1917
      %1921 = vset.pattern.permute.xlu0 0
      %1922 = vperm.xlu0 %1921, %v1572
      %v1923 = vpop.permute.xlu0 %1922
      %1926 = vset.pattern.permute.xlu0 0
      %1927 = vperm.xlu0 %1926, %v1573
      %v1928 = vpop.permute.xlu0 %1927
      %1931 = vset.pattern.permute.xlu0 0
      %1932 = vperm.xlu0 %1931, %v1574
      %v1933 = vpop.permute.xlu0 %1932
      %v1935 = vmul.f32 %v1431, %v1578
      %v1936 = vmul.f32 %v1432, %v1583
      %v1937 = vmul.f32 %v1433, %v1588
      %v1938 = vmul.f32 %v1434, %v1593
      %v1939 = vmul.f32 %v1435, %v1598
      %v1940 = vmul.f32 %v1436, %v1603
      %v1941 = vmul.f32 %v1437, %v1608
      %v1942 = vmul.f32 %v1438, %v1613
      %v1943 = vmul.f32 %v1439, %v1618
      %v1944 = vmul.f32 %v1440, %v1623
      %v1945 = vmul.f32 %v1441, %v1628
      %v1946 = vmul.f32 %v1442, %v1633
      %v1947 = vmul.f32 %v1443, %v1638
      %v1948 = vmul.f32 %v1444, %v1643
      %v1949 = vmul.f32 %v1445, %v1648
      %v1950 = vmul.f32 %v1446, %v1653
      %v1951 = vmul.f32 %v1447, %v1658
      %v1952 = vmul.f32 %v1448, %v1663
      %v1953 = vmul.f32 %v1449, %v1668
      %v1954 = vmul.f32 %v1450, %v1673
      %v1955 = vmul.f32 %v1451, %v1678
      %v1956 = vmul.f32 %v1452, %v1683
      %v1957 = vmul.f32 %v1453, %v1688
      %v1958 = vmul.f32 %v1454, %v1693
      %v1959 = vmul.f32 %v1455, %v1698
      %v1960 = vmul.f32 %v1456, %v1703
      %v1961 = vmul.f32 %v1457, %v1708
      %v1962 = vmul.f32 %v1458, %v1713
      %v1963 = vmul.f32 %v1459, %v1718
      %v1964 = vmul.f32 %v1460, %v1723
      %v1965 = vmul.f32 %v1461, %v1728
      %v1966 = vmul.f32 %v1462, %v1733
      %v1967 = vmul.f32 %v1463, %v1738
      %v1968 = vmul.f32 %v1464, %v1743
      %v1969 = vmul.f32 %v1465, %v1748
      %v1970 = vmul.f32 %v1466, %v1753
      %v1971 = vmul.f32 %v1467, %v1758
      %v1972 = vmul.f32 %v1468, %v1763
      %v1973 = vmul.f32 %v1469, %v1768
      %v1974 = vmul.f32 %v1470, %v1773
      %v1975 = vmul.f32 %v1471, %v1778
      %v1976 = vmul.f32 %v1472, %v1783
      %v1977 = vmul.f32 %v1473, %v1788
      %v1978 = vmul.f32 %v1474, %v1793
      %v1979 = vmul.f32 %v1475, %v1798
      %v1980 = vmul.f32 %v1476, %v1803
      %v1981 = vmul.f32 %v1477, %v1808
      %v1982 = vmul.f32 %v1478, %v1813
      %v1983 = vmul.f32 %v1479, %v1818
      %v1984 = vmul.f32 %v1480, %v1823
      %v1985 = vmul.f32 %v1481, %v1828
      %v1986 = vmul.f32 %v1482, %v1833
      %v1987 = vmul.f32 %v1483, %v1838
      %v1988 = vmul.f32 %v1484, %v1843
      %v1989 = vmul.f32 %v1485, %v1848
      %v1990 = vmul.f32 %v1486, %v1853
      %v1991 = vmul.f32 %v1487, %v1858
      %v1992 = vmul.f32 %v1488, %v1863
      %v1993 = vmul.f32 %v1489, %v1868
      %v1994 = vmul.f32 %v1490, %v1873
      %v1995 = vmul.f32 %v1491, %v1878
      %v1996 = vmul.f32 %v1492, %v1883
      %v1997 = vmul.f32 %v1493, %v1888
      %v1998 = vmul.f32 %v1494, %v1893
      %v1999 = vmul.f32 %v1495, %v1898
      %v2000 = vmul.f32 %v1496, %v1903
      %v2001 = vmul.f32 %v1497, %v1908
      %v2002 = vmul.f32 %v1498, %v1913
      %v2003 = vmul.f32 %v1499, %v1918
      %v2004 = vmul.f32 %v1500, %v1923
      %v2005 = vmul.f32 %v1501, %v1928
      %v2006 = vmul.f32 %v1502, %v1933
      %2007 = vst [vmem:[#allocation2] sm:$0xff] %v1935
      %2008 = vst [vmem:[#allocation2 + $0x8] sm:$0xff] %v1936
      %2009 = vst [vmem:[#allocation2 + $0x10] sm:$0xff] %v1937
      %2010 = vst [vmem:[#allocation2 + $0x18] sm:$0xff] %v1938
      %2011 = vst [vmem:[#allocation2 + $0x20] sm:$0xff] %v1939
      %2012 = vst [vmem:[#allocation2 + $0x28] sm:$0xff] %v1940
      %2013 = vst [vmem:[#allocation2 + $0x30] sm:$0xff] %v1941
      %2014 = vst [vmem:[#allocation2 + $0x38] sm:$0xff] %v1942
      %2015 = vst [vmem:[#allocation2 + $0x40] sm:$0xff] %v1943
      %2016 = vst [vmem:[#allocation2 + $0x48] sm:$0xff] %v1944
      %2017 = vst [vmem:[#allocation2 + $0x50] sm:$0xff] %v1945
      %2018 = vst [vmem:[#allocation2 + $0x58] sm:$0xff] %v1946
      %2019 = vst [vmem:[#allocation2 + $0x60] sm:$0xff] %v1947
      %2020 = vst [vmem:[#allocation2 + $0x68] sm:$0xff] %v1948
      %2021 = vst [vmem:[#allocation2 + $0x70] sm:$0xff] %v1949
      %2022 = vst [vmem:[#allocation2 + $0x78] sm:$0xff] %v1950
      %2023 = vst [vmem:[#allocation2 + $0x80] sm:$0xff] %v1951
      %2024 = vst [vmem:[#allocation2 + $0x88] sm:$0xff] %v1952
      %2025 = vst [vmem:[#allocation2 + $0x90] sm:$0xff] %v1953
      %2026 = vst [vmem:[#allocation2 + $0x98] sm:$0xff] %v1954
      %2027 = vst [vmem:[#allocation2 + $0xa0] sm:$0xff] %v1955
      %2028 = vst [vmem:[#allocation2 + $0xa8] sm:$0xff] %v1956
      %2029 = vst [vmem:[#allocation2 + $0xb0] sm:$0xff] %v1957
      %2030 = vst [vmem:[#allocation2 + $0xb8] sm:$0xff] %v1958
      %2031 = vst [vmem:[#allocation2 + $0xc0] sm:$0xff] %v1959
      %2032 = vst [vmem:[#allocation2 + $0xc8] sm:$0xff] %v1960
      %2033 = vst [vmem:[#allocation2 + $0xd0] sm:$0xff] %v1961
      %2034 = vst [vmem:[#allocation2 + $0xd8] sm:$0xff] %v1962
      %2035 = vst [vmem:[#allocation2 + $0xe0] sm:$0xff] %v1963
      %2036 = vst [vmem:[#allocation2 + $0xe8] sm:$0xff] %v1964
      %2037 = vst [vmem:[#allocation2 + $0xf0] sm:$0xff] %v1965
      %2038 = vst [vmem:[#allocation2 + $0xf8] sm:$0xff] %v1966
      %2039 = vst [vmem:[#allocation2 + $0x100] sm:$0xff] %v1967
      %2040 = vst [vmem:[#allocation2 + $0x108] sm:$0xff] %v1968
      %2041 = vst [vmem:[#allocation2 + $0x110] sm:$0xff] %v1969
      %2042 = vst [vmem:[#allocation2 + $0x118] sm:$0xff] %v1970
      %2043 = vst [vmem:[#allocation2 + $0x120] sm:$0xff] %v1971
      %2044 = vst [vmem:[#allocation2 + $0x128] sm:$0xff] %v1972
      %2045 = vst [vmem:[#allocation2 + $0x130] sm:$0xff] %v1973
      %2046 = vst [vmem:[#allocation2 + $0x138] sm:$0xff] %v1974
      %2047 = vst [vmem:[#allocation2 + $0x140] sm:$0xff] %v1975
      %2048 = vst [vmem:[#allocation2 + $0x148] sm:$0xff] %v1976
      %2049 = vst [vmem:[#allocation2 + $0x150] sm:$0xff] %v1977
      %2050 = vst [vmem:[#allocation2 + $0x158] sm:$0xff] %v1978
      %2051 = vst [vmem:[#allocation2 + $0x160] sm:$0xff] %v1979
      %2052 = vst [vmem:[#allocation2 + $0x168] sm:$0xff] %v1980
      %2053 = vst [vmem:[#allocation2 + $0x170] sm:$0xff] %v1981
      %2054 = vst [vmem:[#allocation2 + $0x178] sm:$0xff] %v1982
      %2055 = vst [vmem:[#allocation2 + $0x180] sm:$0xff] %v1983
      %2056 = vst [vmem:[#allocation2 + $0x188] sm:$0xff] %v1984
      %2057 = vst [vmem:[#allocation2 + $0x190] sm:$0xff] %v1985
      %2058 = vst [vmem:[#allocation2 + $0x198] sm:$0xff] %v1986
      %2059 = vst [vmem:[#allocation2 + $0x1a0] sm:$0xff] %v1987
      %2060 = vst [vmem:[#allocation2 + $0x1a8] sm:$0xff] %v1988
      %2061 = vst [vmem:[#allocation2 + $0x1b0] sm:$0xff] %v1989
      %2062 = vst [vmem:[#allocation2 + $0x1b8] sm:$0xff] %v1990
      %2063 = vst [vmem:[#allocation2 + $0x1c0] sm:$0xff] %v1991
      %2064 = vst [vmem:[#allocation2 + $0x1c8] sm:$0xff] %v1992
      %2065 = vst [vmem:[#allocation2 + $0x1d0] sm:$0xff] %v1993
      %2066 = vst [vmem:[#allocation2 + $0x1d8] sm:$0xff] %v1994
      %2067 = vst [vmem:[#allocation2 + $0x1e0] sm:$0xff] %v1995
      %2068 = vst [vmem:[#allocation2 + $0x1e8] sm:$0xff] %v1996
      %2069 = vst [vmem:[#allocation2 + $0x1f0] sm:$0xff] %v1997
      %2070 = vst [vmem:[#allocation2 + $0x1f8] sm:$0xff] %v1998
      %2071 = vst [vmem:[#allocation2 + $0x200] sm:$0xff] %v1999
      %2072 = vst [vmem:[#allocation2 + $0x208] sm:$0xff] %v2000
      %2073 = vst [vmem:[#allocation2 + $0x210] sm:$0xff] %v2001
      %2074 = vst [vmem:[#allocation2 + $0x218] sm:$0xff] %v2002
      %2075 = vst [vmem:[#allocation2 + $0x220] sm:$0xff] %v2003
      %2076 = vst [vmem:[#allocation2 + $0x228] sm:$0xff] %v2004
      %2077 = vst [vmem:[#allocation2 + $0x230] sm:$0xff] %v2005
      %2078 = vst [vmem:[#allocation2 + $0x238] sm:$0xff] %v2006
      %v2079 = vld [vmem:[%s547] sm:$0xff]
      %v2080 = vld [vmem:[%s547 + $0x10] sm:$0xff]
      %v2081 = vld [vmem:[%s547 + $0x20] sm:$0xff]
      %v2082 = vld [vmem:[%s547 + $0x30] sm:$0xff]
      %v2083 = vld [vmem:[%s547 + $0x40] sm:$0xff]
      %v2084 = vld [vmem:[%s547 + $0x50] sm:$0xff]
      %v2085 = vld [vmem:[%s547 + $0x60] sm:$0xff]
      %v2086 = vld [vmem:[%s547 + $0x70] sm:$0xff]
      %v2087 = vld [vmem:[%s2] sm:$0x1]
      %v2089 = vlaneseq
      %v2090 = vshrl.u32 %v2089, 7
      %v2091 = vsub.s32 0, %v2090
      %v2092 = vrot.slane %v2087, %v2091
      %v2094 = vmul.f32 %v2079, %v2092
      %v2095 = vmul.f32 %v2080, %v2092
      %v2096 = vmul.f32 %v2081, %v2092
      %v2097 = vmul.f32 %v2082, %v2092
      %v2098 = vmul.f32 %v2083, %v2092
      %v2099 = vmul.f32 %v2084, %v2092
      %v2100 = vmul.f32 %v2085, %v2092
      %v2101 = vmul.f32 %v2086, %v2092
      %s2102 = scalar_lea.vmem %s547, 144
      %v2103 = vld [vmem:[%s2102] sm:$0xff]
      %v2104 = vld [vmem:[%s2102 + $0x10] sm:$0xff]
      %v2105 = vld [vmem:[%s2102 + $0x20] sm:$0xff]
      %v2106 = vld [vmem:[%s2102 + $0x30] sm:$0xff]
      %v2107 = vld [vmem:[%s2102 + $0x40] sm:$0xff]
      %v2108 = vld [vmem:[%s2102 + $0x50] sm:$0xff]
      %v2109 = vld [vmem:[%s2102 + $0x60] sm:$0xff]
      %v2110 = vld [vmem:[%s2102 + $0x70] sm:$0xff]
      %s2111 = scalar_lea.vmem %s2, 1
      %v2112 = vld [vmem:[%s2111] sm:$0x1]
      %v2114 = vlaneseq
      %v2115 = vshrl.u32 %v2114, 7
      %v2116 = vsub.s32 0, %v2115
      %v2117 = vrot.slane %v2112, %v2116
      %v2119 = vmul.f32 %v2103, %v2117
      %v2120 = vmul.f32 %v2104, %v2117
      %v2121 = vmul.f32 %v2105, %v2117
      %v2122 = vmul.f32 %v2106, %v2117
      %v2123 = vmul.f32 %v2107, %v2117
      %v2124 = vmul.f32 %v2108, %v2117
      %v2125 = vmul.f32 %v2109, %v2117
      %v2126 = vmul.f32 %v2110, %v2117
      %v2127 = vadd.f32 %v2094, %v2119
      %v2128 = vadd.f32 %v2095, %v2120
      %v2129 = vadd.f32 %v2096, %v2121
      %v2130 = vadd.f32 %v2097, %v2122
      %v2131 = vadd.f32 %v2098, %v2123
      %v2132 = vadd.f32 %v2099, %v2124
      %v2133 = vadd.f32 %v2100, %v2125
      %v2134 = vadd.f32 %v2101, %v2126
      %v2135 = vld [vmem:[%s547 + $0x1] sm:$0xff]
      %v2136 = vld [vmem:[%s547 + $0x11] sm:$0xff]
      %v2137 = vld [vmem:[%s547 + $0x21] sm:$0xff]
      %v2138 = vld [vmem:[%s547 + $0x31] sm:$0xff]
      %v2139 = vld [vmem:[%s547 + $0x41] sm:$0xff]
      %v2140 = vld [vmem:[%s547 + $0x51] sm:$0xff]
      %v2141 = vld [vmem:[%s547 + $0x61] sm:$0xff]
      %v2142 = vld [vmem:[%s547 + $0x71] sm:$0xff]
      %s2143 = scalar_lea.vmem %s2, 2
      %v2144 = vld [vmem:[%s2143] sm:$0x1]
      %v2146 = vlaneseq
      %v2147 = vshrl.u32 %v2146, 7
      %v2148 = vsub.s32 0, %v2147
      %v2149 = vrot.slane %v2144, %v2148
      %v2151 = vmul.f32 %v2135, %v2149
      %v2152 = vmul.f32 %v2136, %v2149
      %v2153 = vmul.f32 %v2137, %v2149
      %v2154 = vmul.f32 %v2138, %v2149
      %v2155 = vmul.f32 %v2139, %v2149
      %v2156 = vmul.f32 %v2140, %v2149
      %v2157 = vmul.f32 %v2141, %v2149
      %v2158 = vmul.f32 %v2142, %v2149
      %v2159 = vadd.f32 %v2127, %v2151
      %v2160 = vadd.f32 %v2128, %v2152
      %v2161 = vadd.f32 %v2129, %v2153
      %v2162 = vadd.f32 %v2130, %v2154
      %v2163 = vadd.f32 %v2131, %v2155
      %v2164 = vadd.f32 %v2132, %v2156
      %v2165 = vadd.f32 %v2133, %v2157
      %v2166 = vadd.f32 %v2134, %v2158
      %s2167 = scalar_lea.vmem %s547, 288
      %v2168 = vld [vmem:[%s2167] sm:$0xff]
      %v2169 = vld [vmem:[%s2167 + $0x10] sm:$0xff]
      %v2170 = vld [vmem:[%s2167 + $0x20] sm:$0xff]
      %v2171 = vld [vmem:[%s2167 + $0x30] sm:$0xff]
      %v2172 = vld [vmem:[%s2167 + $0x40] sm:$0xff]
      %v2173 = vld [vmem:[%s2167 + $0x50] sm:$0xff]
      %v2174 = vld [vmem:[%s2167 + $0x60] sm:$0xff]
      %v2175 = vld [vmem:[%s2167 + $0x70] sm:$0xff]
      %s2176 = scalar_lea.vmem %s2, 3
      %v2177 = vld [vmem:[%s2176] sm:$0x1]
      %v2179 = vlaneseq
      %v2180 = vshrl.u32 %v2179, 7
      %v2181 = vsub.s32 0, %v2180
      %v2182 = vrot.slane %v2177, %v2181
      %v2184 = vmul.f32 %v2168, %v2182
      %v2185 = vmul.f32 %v2169, %v2182
      %v2186 = vmul.f32 %v2170, %v2182
      %v2187 = vmul.f32 %v2171, %v2182
      %v2188 = vmul.f32 %v2172, %v2182
      %v2189 = vmul.f32 %v2173, %v2182
      %v2190 = vmul.f32 %v2174, %v2182
      %v2191 = vmul.f32 %v2175, %v2182
      %v2192 = vadd.f32 %v2159, %v2184
      %v2193 = vadd.f32 %v2160, %v2185
      %v2194 = vadd.f32 %v2161, %v2186
      %v2195 = vadd.f32 %v2162, %v2187
      %v2196 = vadd.f32 %v2163, %v2188
      %v2197 = vadd.f32 %v2164, %v2189
      %v2198 = vadd.f32 %v2165, %v2190
      %v2199 = vadd.f32 %v2166, %v2191
      %s2200 = scalar_lea.vmem %s547, 432
      %v2201 = vld [vmem:[%s2200] sm:$0xff]
      %v2202 = vld [vmem:[%s2200 + $0x10] sm:$0xff]
      %v2203 = vld [vmem:[%s2200 + $0x20] sm:$0xff]
      %v2204 = vld [vmem:[%s2200 + $0x30] sm:$0xff]
      %v2205 = vld [vmem:[%s2200 + $0x40] sm:$0xff]
      %v2206 = vld [vmem:[%s2200 + $0x50] sm:$0xff]
      %v2207 = vld [vmem:[%s2200 + $0x60] sm:$0xff]
      %v2208 = vld [vmem:[%s2200 + $0x70] sm:$0xff]
      %s2209 = scalar_lea.vmem %s2, 4
      %v2210 = vld [vmem:[%s2209] sm:$0x1]
      %v2212 = vlaneseq
      %v2213 = vshrl.u32 %v2212, 7
      %v2214 = vsub.s32 0, %v2213
      %v2215 = vrot.slane %v2210, %v2214
      %v2217 = vmul.f32 %v2201, %v2215
      %v2218 = vmul.f32 %v2202, %v2215
      %v2219 = vmul.f32 %v2203, %v2215
      %v2220 = vmul.f32 %v2204, %v2215
      %v2221 = vmul.f32 %v2205, %v2215
      %v2222 = vmul.f32 %v2206, %v2215
      %v2223 = vmul.f32 %v2207, %v2215
      %v2224 = vmul.f32 %v2208, %v2215
      %v2225 = vadd.f32 %v2192, %v2217
      %v2226 = vadd.f32 %v2193, %v2218
      %v2227 = vadd.f32 %v2194, %v2219
      %v2228 = vadd.f32 %v2195, %v2220
      %v2229 = vadd.f32 %v2196, %v2221
      %v2230 = vadd.f32 %v2197, %v2222
      %v2231 = vadd.f32 %v2198, %v2223
      %v2232 = vadd.f32 %v2199, %v2224
      %v2233 = vld [vmem:[%s2167 + $0x1] sm:$0xff]
      %v2234 = vld [vmem:[%s2167 + $0x11] sm:$0xff]
      %v2235 = vld [vmem:[%s2167 + $0x21] sm:$0xff]
      %v2236 = vld [vmem:[%s2167 + $0x31] sm:$0xff]
      %v2237 = vld [vmem:[%s2167 + $0x41] sm:$0xff]
      %v2238 = vld [vmem:[%s2167 + $0x51] sm:$0xff]
      %v2239 = vld [vmem:[%s2167 + $0x61] sm:$0xff]
      %v2240 = vld [vmem:[%s2167 + $0x71] sm:$0xff]
      %s2241 = scalar_lea.vmem %s2, 5
      %v2242 = vld [vmem:[%s2241] sm:$0x1]
      %v2244 = vlaneseq
      %v2245 = vshrl.u32 %v2244, 7
      %v2246 = vsub.s32 0, %v2245
      %v2247 = vrot.slane %v2242, %v2246
      %v2249 = vmul.f32 %v2233, %v2247
      %v2250 = vmul.f32 %v2234, %v2247
      %v2251 = vmul.f32 %v2235, %v2247
      %v2252 = vmul.f32 %v2236, %v2247
      %v2253 = vmul.f32 %v2237, %v2247
      %v2254 = vmul.f32 %v2238, %v2247
      %v2255 = vmul.f32 %v2239, %v2247
      %v2256 = vmul.f32 %v2240, %v2247
      %v2257 = vadd.f32 %v2225, %v2249
      %v2258 = vadd.f32 %v2226, %v2250
      %v2259 = vadd.f32 %v2227, %v2251
      %v2260 = vadd.f32 %v2228, %v2252
      %v2261 = vadd.f32 %v2229, %v2253
      %v2262 = vadd.f32 %v2230, %v2254
      %v2263 = vadd.f32 %v2231, %v2255
      %v2264 = vadd.f32 %v2232, %v2256
      %s2265 = scalar_lea.vmem %s547, 16
      %v2266 = vld [vmem:[%s2265] sm:$0xff]
      %v2267 = vld [vmem:[%s2265 + $0x10] sm:$0xff]
      %v2268 = vld [vmem:[%s2265 + $0x20] sm:$0xff]
      %v2269 = vld [vmem:[%s2265 + $0x30] sm:$0xff]
      %v2270 = vld [vmem:[%s2265 + $0x40] sm:$0xff]
      %v2271 = vld [vmem:[%s2265 + $0x50] sm:$0xff]
      %v2272 = vld [vmem:[%s2265 + $0x60] sm:$0xff]
      %v2273 = vld [vmem:[%s2265 + $0x70] sm:$0xff]
      %s2274 = scalar_lea.vmem %s2, 6
      %v2275 = vld [vmem:[%s2274] sm:$0x1]
      %v2277 = vlaneseq
      %v2278 = vshrl.u32 %v2277, 7
      %v2279 = vsub.s32 0, %v2278
      %v2280 = vrot.slane %v2275, %v2279
      %v2282 = vmul.f32 %v2266, %v2280
      %v2283 = vmul.f32 %v2267, %v2280
      %v2284 = vmul.f32 %v2268, %v2280
      %v2285 = vmul.f32 %v2269, %v2280
      %v2286 = vmul.f32 %v2270, %v2280
      %v2287 = vmul.f32 %v2271, %v2280
      %v2288 = vmul.f32 %v2272, %v2280
      %v2289 = vmul.f32 %v2273, %v2280
      %v2290 = vadd.f32 %v2257, %v2282
      %v2291 = vadd.f32 %v2258, %v2283
      %v2292 = vadd.f32 %v2259, %v2284
      %v2293 = vadd.f32 %v2260, %v2285
      %v2294 = vadd.f32 %v2261, %v2286
      %v2295 = vadd.f32 %v2262, %v2287
      %v2296 = vadd.f32 %v2263, %v2288
      %v2297 = vadd.f32 %v2264, %v2289
      %s2298 = scalar_lea.vmem %s547, 160
      %v2299 = vld [vmem:[%s2298] sm:$0xff]
      %v2300 = vld [vmem:[%s2298 + $0x10] sm:$0xff]
      %v2301 = vld [vmem:[%s2298 + $0x20] sm:$0xff]
      %v2302 = vld [vmem:[%s2298 + $0x30] sm:$0xff]
      %v2303 = vld [vmem:[%s2298 + $0x40] sm:$0xff]
      %v2304 = vld [vmem:[%s2298 + $0x50] sm:$0xff]
      %v2305 = vld [vmem:[%s2298 + $0x60] sm:$0xff]
      %v2306 = vld [vmem:[%s2298 + $0x70] sm:$0xff]
      %s2307 = scalar_lea.vmem %s2, 7
      %v2308 = vld [vmem:[%s2307] sm:$0x1]
      %v2310 = vlaneseq
      %v2311 = vshrl.u32 %v2310, 7
      %v2312 = vsub.s32 0, %v2311
      %v2313 = vrot.slane %v2308, %v2312
      %v2315 = vmul.f32 %v2299, %v2313
      %v2316 = vmul.f32 %v2300, %v2313
      %v2317 = vmul.f32 %v2301, %v2313
      %v2318 = vmul.f32 %v2302, %v2313
      %v2319 = vmul.f32 %v2303, %v2313
      %v2320 = vmul.f32 %v2304, %v2313
      %v2321 = vmul.f32 %v2305, %v2313
      %v2322 = vmul.f32 %v2306, %v2313
      %v2323 = vadd.f32 %v2290, %v2315
      %v2324 = vadd.f32 %v2291, %v2316
      %v2325 = vadd.f32 %v2292, %v2317
      %v2326 = vadd.f32 %v2293, %v2318
      %v2327 = vadd.f32 %v2294, %v2319
      %v2328 = vadd.f32 %v2295, %v2320
      %v2329 = vadd.f32 %v2296, %v2321
      %v2330 = vadd.f32 %v2297, %v2322
      %v2331 = vld [vmem:[%s2265 + $0x1] sm:$0xff]
      %v2332 = vld [vmem:[%s2265 + $0x11] sm:$0xff]
      %v2333 = vld [vmem:[%s2265 + $0x21] sm:$0xff]
      %v2334 = vld [vmem:[%s2265 + $0x31] sm:$0xff]
      %v2335 = vld [vmem:[%s2265 + $0x41] sm:$0xff]
      %v2336 = vld [vmem:[%s2265 + $0x51] sm:$0xff]
      %v2337 = vld [vmem:[%s2265 + $0x61] sm:$0xff]
      %v2338 = vld [vmem:[%s2265 + $0x71] sm:$0xff]
      %s2339 = scalar_lea.vmem %s2, 8
      %v2340 = vld [vmem:[%s2339] sm:$0x1]
      %v2342 = vlaneseq
      %v2343 = vshrl.u32 %v2342, 7
      %v2344 = vsub.s32 0, %v2343
      %v2345 = vrot.slane %v2340, %v2344
      %v2347 = vmul.f32 %v2331, %v2345
      %v2348 = vmul.f32 %v2332, %v2345
      %v2349 = vmul.f32 %v2333, %v2345
      %v2350 = vmul.f32 %v2334, %v2345
      %v2351 = vmul.f32 %v2335, %v2345
      %v2352 = vmul.f32 %v2336, %v2345
      %v2353 = vmul.f32 %v2337, %v2345
      %v2354 = vmul.f32 %v2338, %v2345
      %v2355 = vadd.f32 %v2323, %v2347
      %v2356 = vadd.f32 %v2324, %v2348
      %v2357 = vadd.f32 %v2325, %v2349
      %v2358 = vadd.f32 %v2326, %v2350
      %v2359 = vadd.f32 %v2327, %v2351
      %v2360 = vadd.f32 %v2328, %v2352
      %v2361 = vadd.f32 %v2329, %v2353
      %v2362 = vadd.f32 %v2330, %v2354
      %v2363 = vld [vmem:[%s3] sm:$0x1]
      %v2365 = vlaneseq
      %v2366 = vshrl.u32 %v2365, 7
      %v2367 = vsub.s32 0, %v2366
      %v2368 = vrot.slane %v2363, %v2367
      %v2370 = vmul.f32 %v2355, %v2368
      %v2371 = vmul.f32 %v2356, %v2368
      %v2372 = vmul.f32 %v2357, %v2368
      %v2373 = vmul.f32 %v2358, %v2368
      %v2374 = vmul.f32 %v2359, %v2368
      %v2375 = vmul.f32 %v2360, %v2368
      %v2376 = vmul.f32 %v2361, %v2368
      %v2377 = vmul.f32 %v2362, %v2368
      %v2378 = vld [vmem:[%s4] sm:$0x1]
      %v2380 = vlaneseq
      %v2381 = vshrl.u32 %v2380, 7
      %v2382 = vsub.s32 0, %v2381
      %v2383 = vrot.slane %v2378, %v2382
      %v2385 = vadd.f32 %v2370, %v2383
      %v2386 = vadd.f32 %v2371, %v2383
      %v2387 = vadd.f32 %v2372, %v2383
      %v2388 = vadd.f32 %v2373, %v2383
      %v2389 = vadd.f32 %v2374, %v2383
      %v2390 = vadd.f32 %v2375, %v2383
      %v2391 = vadd.f32 %v2376, %v2383
      %v2392 = vadd.f32 %v2377, %v2383
      %v2393 = vld [vmem:[%s5] sm:$0xf]
      %v2395 = vsel %vm627, %v2385, 0
      %v2398 = vsel %vm627, %v2386, 0
      %v2401 = vsel %vm627, %v2387, 0
      %v2404 = vsel %vm627, %v2388, 0
      %v2407 = vsel %vm627, %v2389, 0
      %v2410 = vsel %vm627, %v2390, 0
      %v2413 = vsel %vm627, %v2391, 0
      %v2416 = vsel %vm627, %v2392, 0
      %v2419 = vsel %vm844, %v2393, 0
      %2421 = vmatprep.subr.mxu0 0.0
      %2422 = vmatpush1.msra.mxu0 %v2419
      %2423 = vmatprep.subr.mxu0 0.0
      %2424 = vmatpush1.msra.mxu0 0.0
      %2425 = vmatprep.subr.mxu0 0.0
      %2426 = vmatpush1.msra.mxu0 0.0
      %2427 = vmatprep.subr.mxu0 0.0
      %2428 = vmatpush1.msra.mxu0 0.0
      %2429 = vmatprep.subr.mxu0 0.0
      %2430 = vmatpush1.msra.mxu0 0.0
      %2431 = vmatprep.subr.mxu0 0.0
      %2432 = vmatpush1.msra.mxu0 0.0
      %2433 = vmatprep.subr.mxu0 0.0
      %2434 = vmatpush1.msra.mxu0 0.0
      %2435 = vmatprep.subr.mxu0 0.0
      %2436 = vmatpush1.msra.mxu0 0.0
      %2437 = vmatprep.subr.mxu0 0.0
      %2438 = vmatpush1.msra.mxu0 0.0
      %2439 = vmatprep.subr.mxu0 0.0
      %2440 = vmatpush1.msra.mxu0 0.0
      %2441 = vmatprep.subr.mxu0 0.0
      %2442 = vmatpush1.msra.mxu0 0.0
      %2443 = vmatprep.subr.mxu0 0.0
      %2444 = vmatpush1.msra.mxu0 0.0
      %2445 = vmatprep.subr.mxu0 0.0
      %2446 = vmatpush1.msra.mxu0 0.0
      %2447 = vmatprep.subr.mxu0 0.0
      %2448 = vmatpush1.msra.mxu0 0.0
      %2449 = vmatprep.subr.mxu0 0.0
      %2450 = vmatpush1.msra.mxu0 0.0
      %2451 = vmatprep.subr.mxu0 0.0
      %2452 = vmatpush1.msra.mxu0 0.0
      %2453 = vmatprep.subr.mxu0 0.0
      %2454 = vmatpush1.msra.mxu0 0.0
      %2455 = vmatprep.subr.mxu0 0.0
      %2456 = vmatpush1.msra.mxu0 0.0
      %2457 = vmatprep.subr.mxu0 0.0
      %2458 = vmatpush1.msra.mxu0 0.0
      %2459 = vmatprep.subr.mxu0 0.0
      %2460 = vmatpush1.msra.mxu0 0.0
      %2461 = vmatprep.subr.mxu0 0.0
      %2462 = vmatpush1.msra.mxu0 0.0
      %2463 = vmatprep.subr.mxu0 0.0
      %2464 = vmatpush1.msra.mxu0 0.0
      %2465 = vmatprep.subr.mxu0 0.0
      %2466 = vmatpush1.msra.mxu0 0.0
      %2467 = vmatprep.subr.mxu0 0.0
      %2468 = vmatpush1.msra.mxu0 0.0
      %2469 = vmatprep.subr.mxu0 0.0
      %2470 = vmatpush1.msra.mxu0 0.0
      %2471 = vmatprep.subr.mxu0 0.0
      %2472 = vmatpush1.msra.mxu0 0.0
      %2473 = vmatprep.subr.mxu0 0.0
      %2474 = vmatpush1.msra.mxu0 0.0
      %2475 = vmatprep.subr.mxu0 0.0
      %2476 = vmatpush1.msra.mxu0 0.0
      %2477 = vmatprep.subr.mxu0 0.0
      %2478 = vmatpush1.msra.mxu0 0.0
      %2479 = vmatprep.subr.mxu0 0.0
      %2480 = vmatpush1.msra.mxu0 0.0
      %2481 = vmatprep.subr.mxu0 0.0
      %2482 = vmatpush1.msra.mxu0 0.0
      %2483 = vmatprep.subr.mxu0 0.0
      %2484 = vmatpush1.msra.mxu0 0.0
      %2485 = vmatprep.mubr.f32.mxu0 0.0
      %2486 = vmatmul.mubr.f32.gmra.mrb[0].mxu0 %v2395
      %v2487 = vpop.f32.mrb[0].mxu0
      %v2488 = vadd.f32 0.0, %v2487
      %v2489 = vpop.f32.mrb[0].mxu0
      %2490 = vmatprep.mubr.f32.mxu0 0.0
      %2491 = vmatmul.mubr.f32.gmra.mrb[0].mxu0 %v2398
      %v2492 = vpop.f32.mrb[0].mxu0
      %v2493 = vadd.f32 0.0, %v2492
      %v2494 = vpop.f32.mrb[0].mxu0
      %2495 = vmatprep.mubr.f32.mxu0 0.0
      %2496 = vmatmul.mubr.f32.gmra.mrb[0].mxu0 %v2401
      %v2497 = vpop.f32.mrb[0].mxu0
      %v2498 = vadd.f32 0.0, %v2497
      %v2499 = vpop.f32.mrb[0].mxu0
      %2500 = vmatprep.mubr.f32.mxu0 0.0
      %2501 = vmatmul.mubr.f32.gmra.mrb[0].mxu0 %v2404
      %v2502 = vpop.f32.mrb[0].mxu0
      %v2503 = vadd.f32 0.0, %v2502
      %v2504 = vpop.f32.mrb[0].mxu0
      %2505 = vmatprep.mubr.f32.mxu0 0.0
      %2506 = vmatmul.mubr.f32.gmra.mrb[0].mxu0 %v2407
      %v2507 = vpop.f32.mrb[0].mxu0
      %v2508 = vadd.f32 0.0, %v2507
      %v2509 = vpop.f32.mrb[0].mxu0
      %2510 = vmatprep.mubr.f32.mxu0 0.0
      %2511 = vmatmul.mubr.f32.gmra.mrb[0].mxu0 %v2410
      %v2512 = vpop.f32.mrb[0].mxu0
      %v2513 = vadd.f32 0.0, %v2512
      %v2514 = vpop.f32.mrb[0].mxu0
      %2515 = vmatprep.mubr.f32.mxu0 0.0
      %2516 = vmatmul.mubr.f32.gmra.mrb[0].mxu0 %v2413
      %v2517 = vpop.f32.mrb[0].mxu0
      %v2518 = vadd.f32 0.0, %v2517
      %v2519 = vpop.f32.mrb[0].mxu0
      %2520 = vmatprep.mubr.f32.mxu0 0.0
      %2521 = vmatmul.mubr.f32.gmra.mrb[0].mxu0 %v2416
      %v2522 = vpop.f32.mrb[0].mxu0
      %v2523 = vadd.f32 0.0, %v2522
      %v2524 = vpop.f32.mrb[0].mxu0
      %2525 = vdwg.mxu0
      %v2526 = vld [vmem:[%s6] sm:$0x1]
      %v2528 = vlaneseq
      %v2529 = vshrl.u32 %v2528, 7
      %v2530 = vsub.s32 0, %v2529
      %v2531 = vrot.slane %v2526, %v2530
      %v2533 = vmul.f32 %v2488, %v2531
      %v2534 = vmul.f32 %v2493, %v2531
      %v2535 = vmul.f32 %v2498, %v2531
      %v2536 = vmul.f32 %v2503, %v2531
      %v2537 = vmul.f32 %v2508, %v2531
      %v2538 = vmul.f32 %v2513, %v2531
      %v2539 = vmul.f32 %v2518, %v2531
      %v2540 = vmul.f32 %v2523, %v2531
      %v2541 = vld [vmem:[%s7] sm:$0x1]
      %v2543 = vlaneseq
      %v2544 = vshrl.u32 %v2543, 7
      %v2545 = vsub.s32 0, %v2544
      %v2546 = vrot.slane %v2541, %v2545
      %v2548 = vadd.f32 %v2533, %v2546
      %v2549 = vadd.f32 %v2534, %v2546
      %v2550 = vadd.f32 %v2535, %v2546
      %v2551 = vadd.f32 %v2536, %v2546
      %v2552 = vadd.f32 %v2537, %v2546
      %v2553 = vadd.f32 %v2538, %v2546
      %v2554 = vadd.f32 %v2539, %v2546
      %v2555 = vadd.f32 %v2540, %v2546
      %v2556 = vmax.f32 %v2548, 0.0
      %v2557 = vmax.f32 %v2549, 0.0
      %v2558 = vmax.f32 %v2550, 0.0
      %v2559 = vmax.f32 %v2551, 0.0
      %v2560 = vmax.f32 %v2552, 0.0
      %v2561 = vmax.f32 %v2553, 0.0
      %v2562 = vmax.f32 %v2554, 0.0
      %v2563 = vmax.f32 %v2555, 0.0
      %v2564 = vld [vmem:[#allocation2] sm:$0xff]
      %v2565 = vld [vmem:[#allocation2 + $0x10] sm:$0xff]
      %v2566 = vld [vmem:[#allocation2 + $0x20] sm:$0xff]
      %v2567 = vld [vmem:[#allocation2 + $0x30] sm:$0xff]
      %v2568 = vld [vmem:[#allocation2 + $0x40] sm:$0xff]
      %v2569 = vld [vmem:[#allocation2 + $0x50] sm:$0xff]
      %v2570 = vld [vmem:[#allocation2 + $0x60] sm:$0xff]
      %v2571 = vld [vmem:[#allocation2 + $0x70] sm:$0xff]
      %v2572 = vld [vmem:[%s11] sm:$0x1]
      %v2574 = vlaneseq
      %v2575 = vshrl.u32 %v2574, 7
      %v2576 = vsub.s32 0, %v2575
      %v2577 = vrot.slane %v2572, %v2576
      %v2579 = vmul.f32 %v2564, %v2577
      %v2580 = vmul.f32 %v2565, %v2577
      %v2581 = vmul.f32 %v2566, %v2577
      %v2582 = vmul.f32 %v2567, %v2577
      %v2583 = vmul.f32 %v2568, %v2577
      %v2584 = vmul.f32 %v2569, %v2577
      %v2585 = vmul.f32 %v2570, %v2577
      %v2586 = vmul.f32 %v2571, %v2577
      %s2587 = scalar_lea.vmem [#allocation2], 144
      %v2588 = vld [vmem:[%s2587] sm:$0xff]
      %v2589 = vld [vmem:[%s2587 + $0x10] sm:$0xff]
      %v2590 = vld [vmem:[%s2587 + $0x20] sm:$0xff]
      %v2591 = vld [vmem:[%s2587 + $0x30] sm:$0xff]
      %v2592 = vld [vmem:[%s2587 + $0x40] sm:$0xff]
      %v2593 = vld [vmem:[%s2587 + $0x50] sm:$0xff]
      %v2594 = vld [vmem:[%s2587 + $0x60] sm:$0xff]
      %v2595 = vld [vmem:[%s2587 + $0x70] sm:$0xff]
      %s2596 = scalar_lea.vmem %s11, 1
      %v2597 = vld [vmem:[%s2596] sm:$0x1]
      %v2599 = vlaneseq
      %v2600 = vshrl.u32 %v2599, 7
      %v2601 = vsub.s32 0, %v2600
      %v2602 = vrot.slane %v2597, %v2601
      %v2604 = vmul.f32 %v2588, %v2602
      %v2605 = vmul.f32 %v2589, %v2602
      %v2606 = vmul.f32 %v2590, %v2602
      %v2607 = vmul.f32 %v2591, %v2602
      %v2608 = vmul.f32 %v2592, %v2602
      %v2609 = vmul.f32 %v2593, %v2602
      %v2610 = vmul.f32 %v2594, %v2602
      %v2611 = vmul.f32 %v2595, %v2602
      %v2612 = vadd.f32 %v2579, %v2604
      %v2613 = vadd.f32 %v2580, %v2605
      %v2614 = vadd.f32 %v2581, %v2606
      %v2615 = vadd.f32 %v2582, %v2607
      %v2616 = vadd.f32 %v2583, %v2608
      %v2617 = vadd.f32 %v2584, %v2609
      %v2618 = vadd.f32 %v2585, %v2610
      %v2619 = vadd.f32 %v2586, %v2611
      %v2620 = vld [vmem:[#allocation2 + $0x1] sm:$0xff]
      %v2621 = vld [vmem:[#allocation2 + $0x11] sm:$0xff]
      %v2622 = vld [vmem:[#allocation2 + $0x21] sm:$0xff]
      %v2623 = vld [vmem:[#allocation2 + $0x31] sm:$0xff]
      %v2624 = vld [vmem:[#allocation2 + $0x41] sm:$0xff]
      %v2625 = vld [vmem:[#allocation2 + $0x51] sm:$0xff]
      %v2626 = vld [vmem:[#allocation2 + $0x61] sm:$0xff]
      %v2627 = vld [vmem:[#allocation2 + $0x71] sm:$0xff]
      %s2628 = scalar_lea.vmem %s11, 2
      %v2629 = vld [vmem:[%s2628] sm:$0x1]
      %v2631 = vlaneseq
      %v2632 = vshrl.u32 %v2631, 7
      %v2633 = vsub.s32 0, %v2632
      %v2634 = vrot.slane %v2629, %v2633
      %v2636 = vmul.f32 %v2620, %v2634
      %v2637 = vmul.f32 %v2621, %v2634
      %v2638 = vmul.f32 %v2622, %v2634
      %v2639 = vmul.f32 %v2623, %v2634
      %v2640 = vmul.f32 %v2624, %v2634
      %v2641 = vmul.f32 %v2625, %v2634
      %v2642 = vmul.f32 %v2626, %v2634
      %v2643 = vmul.f32 %v2627, %v2634
      %v2644 = vadd.f32 %v2612, %v2636
      %v2645 = vadd.f32 %v2613, %v2637
      %v2646 = vadd.f32 %v2614, %v2638
      %v2647 = vadd.f32 %v2615, %v2639
      %v2648 = vadd.f32 %v2616, %v2640
      %v2649 = vadd.f32 %v2617, %v2641
      %v2650 = vadd.f32 %v2618, %v2642
      %v2651 = vadd.f32 %v2619, %v2643
      %s2652 = scalar_lea.vmem [#allocation2], 288
      %v2653 = vld [vmem:[%s2652] sm:$0xff]
      %v2654 = vld [vmem:[%s2652 + $0x10] sm:$0xff]
      %v2655 = vld [vmem:[%s2652 + $0x20] sm:$0xff]
      %v2656 = vld [vmem:[%s2652 + $0x30] sm:$0xff]
      %v2657 = vld [vmem:[%s2652 + $0x40] sm:$0xff]
      %v2658 = vld [vmem:[%s2652 + $0x50] sm:$0xff]
      %v2659 = vld [vmem:[%s2652 + $0x60] sm:$0xff]
      %v2660 = vld [vmem:[%s2652 + $0x70] sm:$0xff]
      %s2661 = scalar_lea.vmem %s11, 3
      %v2662 = vld [vmem:[%s2661] sm:$0x1]
      %v2664 = vlaneseq
      %v2665 = vshrl.u32 %v2664, 7
      %v2666 = vsub.s32 0, %v2665
      %v2667 = vrot.slane %v2662, %v2666
      %v2669 = vmul.f32 %v2653, %v2667
      %v2670 = vmul.f32 %v2654, %v2667
      %v2671 = vmul.f32 %v2655, %v2667
      %v2672 = vmul.f32 %v2656, %v2667
      %v2673 = vmul.f32 %v2657, %v2667
      %v2674 = vmul.f32 %v2658, %v2667
      %v2675 = vmul.f32 %v2659, %v2667
      %v2676 = vmul.f32 %v2660, %v2667
      %v2677 = vadd.f32 %v2644, %v2669
      %v2678 = vadd.f32 %v2645, %v2670
      %v2679 = vadd.f32 %v2646, %v2671
      %v2680 = vadd.f32 %v2647, %v2672
      %v2681 = vadd.f32 %v2648, %v2673
      %v2682 = vadd.f32 %v2649, %v2674
      %v2683 = vadd.f32 %v2650, %v2675
      %v2684 = vadd.f32 %v2651, %v2676
      %s2685 = scalar_lea.vmem [#allocation2], 432
      %v2686 = vld [vmem:[%s2685] sm:$0xff]
      %v2687 = vld [vmem:[%s2685 + $0x10] sm:$0xff]
      %v2688 = vld [vmem:[%s2685 + $0x20] sm:$0xff]
      %v2689 = vld [vmem:[%s2685 + $0x30] sm:$0xff]
      %v2690 = vld [vmem:[%s2685 + $0x40] sm:$0xff]
      %v2691 = vld [vmem:[%s2685 + $0x50] sm:$0xff]
      %v2692 = vld [vmem:[%s2685 + $0x60] sm:$0xff]
      %v2693 = vld [vmem:[%s2685 + $0x70] sm:$0xff]
      %s2694 = scalar_lea.vmem %s11, 4
      %v2695 = vld [vmem:[%s2694] sm:$0x1]
      %v2697 = vlaneseq
      %v2698 = vshrl.u32 %v2697, 7
      %v2699 = vsub.s32 0, %v2698
      %v2700 = vrot.slane %v2695, %v2699
      %v2702 = vmul.f32 %v2686, %v2700
      %v2703 = vmul.f32 %v2687, %v2700
      %v2704 = vmul.f32 %v2688, %v2700
      %v2705 = vmul.f32 %v2689, %v2700
      %v2706 = vmul.f32 %v2690, %v2700
      %v2707 = vmul.f32 %v2691, %v2700
      %v2708 = vmul.f32 %v2692, %v2700
      %v2709 = vmul.f32 %v2693, %v2700
      %v2710 = vadd.f32 %v2677, %v2702
      %v2711 = vadd.f32 %v2678, %v2703
      %v2712 = vadd.f32 %v2679, %v2704
      %v2713 = vadd.f32 %v2680, %v2705
      %v2714 = vadd.f32 %v2681, %v2706
      %v2715 = vadd.f32 %v2682, %v2707
      %v2716 = vadd.f32 %v2683, %v2708
      %v2717 = vadd.f32 %v2684, %v2709
      %v2718 = vld [vmem:[%s2652 + $0x1] sm:$0xff]
      %v2719 = vld [vmem:[%s2652 + $0x11] sm:$0xff]
      %v2720 = vld [vmem:[%s2652 + $0x21] sm:$0xff]
      %v2721 = vld [vmem:[%s2652 + $0x31] sm:$0xff]
      %v2722 = vld [vmem:[%s2652 + $0x41] sm:$0xff]
      %v2723 = vld [vmem:[%s2652 + $0x51] sm:$0xff]
      %v2724 = vld [vmem:[%s2652 + $0x61] sm:$0xff]
      %v2725 = vld [vmem:[%s2652 + $0x71] sm:$0xff]
      %s2726 = scalar_lea.vmem %s11, 5
      %v2727 = vld [vmem:[%s2726] sm:$0x1]
      %v2729 = vlaneseq
      %v2730 = vshrl.u32 %v2729, 7
      %v2731 = vsub.s32 0, %v2730
      %v2732 = vrot.slane %v2727, %v2731
      %v2734 = vmul.f32 %v2718, %v2732
      %v2735 = vmul.f32 %v2719, %v2732
      %v2736 = vmul.f32 %v2720, %v2732
      %v2737 = vmul.f32 %v2721, %v2732
      %v2738 = vmul.f32 %v2722, %v2732
      %v2739 = vmul.f32 %v2723, %v2732
      %v2740 = vmul.f32 %v2724, %v2732
      %v2741 = vmul.f32 %v2725, %v2732
      %v2742 = vadd.f32 %v2710, %v2734
      %v2743 = vadd.f32 %v2711, %v2735
      %v2744 = vadd.f32 %v2712, %v2736
      %v2745 = vadd.f32 %v2713, %v2737
      %v2746 = vadd.f32 %v2714, %v2738
      %v2747 = vadd.f32 %v2715, %v2739
      %v2748 = vadd.f32 %v2716, %v2740
      %v2749 = vadd.f32 %v2717, %v2741
      %s2750 = scalar_lea.vmem [#allocation2], 16
      %v2751 = vld [vmem:[%s2750] sm:$0xff]
      %v2752 = vld [vmem:[%s2750 + $0x10] sm:$0xff]
      %v2753 = vld [vmem:[%s2750 + $0x20] sm:$0xff]
      %v2754 = vld [vmem:[%s2750 + $0x30] sm:$0xff]
      %v2755 = vld [vmem:[%s2750 + $0x40] sm:$0xff]
      %v2756 = vld [vmem:[%s2750 + $0x50] sm:$0xff]
      %v2757 = vld [vmem:[%s2750 + $0x60] sm:$0xff]
      %v2758 = vld [vmem:[%s2750 + $0x70] sm:$0xff]
      %s2759 = scalar_lea.vmem %s11, 6
      %v2760 = vld [vmem:[%s2759] sm:$0x1]
      %v2762 = vlaneseq
      %v2763 = vshrl.u32 %v2762, 7
      %v2764 = vsub.s32 0, %v2763
      %v2765 = vrot.slane %v2760, %v2764
      %v2767 = vmul.f32 %v2751, %v2765
      %v2768 = vmul.f32 %v2752, %v2765
      %v2769 = vmul.f32 %v2753, %v2765
      %v2770 = vmul.f32 %v2754, %v2765
      %v2771 = vmul.f32 %v2755, %v2765
      %v2772 = vmul.f32 %v2756, %v2765
      %v2773 = vmul.f32 %v2757, %v2765
      %v2774 = vmul.f32 %v2758, %v2765
      %v2775 = vadd.f32 %v2742, %v2767
      %v2776 = vadd.f32 %v2743, %v2768
      %v2777 = vadd.f32 %v2744, %v2769
      %v2778 = vadd.f32 %v2745, %v2770
      %v2779 = vadd.f32 %v2746, %v2771
      %v2780 = vadd.f32 %v2747, %v2772
      %v2781 = vadd.f32 %v2748, %v2773
      %v2782 = vadd.f32 %v2749, %v2774
      %s2783 = scalar_lea.vmem [#allocation2], 160
      %v2784 = vld [vmem:[%s2783] sm:$0xff]
      %v2785 = vld [vmem:[%s2783 + $0x10] sm:$0xff]
      %v2786 = vld [vmem:[%s2783 + $0x20] sm:$0xff]
      %v2787 = vld [vmem:[%s2783 + $0x30] sm:$0xff]
      %v2788 = vld [vmem:[%s2783 + $0x40] sm:$0xff]
      %v2789 = vld [vmem:[%s2783 + $0x50] sm:$0xff]
      %v2790 = vld [vmem:[%s2783 + $0x60] sm:$0xff]
      %v2791 = vld [vmem:[%s2783 + $0x70] sm:$0xff]
      %s2792 = scalar_lea.vmem %s11, 7
      %v2793 = vld [vmem:[%s2792] sm:$0x1]
      %v2795 = vlaneseq
      %v2796 = vshrl.u32 %v2795, 7
      %v2797 = vsub.s32 0, %v2796
      %v2798 = vrot.slane %v2793, %v2797
      %v2800 = vmul.f32 %v2784, %v2798
      %v2801 = vmul.f32 %v2785, %v2798
      %v2802 = vmul.f32 %v2786, %v2798
      %v2803 = vmul.f32 %v2787, %v2798
      %v2804 = vmul.f32 %v2788, %v2798
      %v2805 = vmul.f32 %v2789, %v2798
      %v2806 = vmul.f32 %v2790, %v2798
      %v2807 = vmul.f32 %v2791, %v2798
      %v2808 = vadd.f32 %v2775, %v2800
      %v2809 = vadd.f32 %v2776, %v2801
      %v2810 = vadd.f32 %v2777, %v2802
      %v2811 = vadd.f32 %v2778, %v2803
      %v2812 = vadd.f32 %v2779, %v2804
      %v2813 = vadd.f32 %v2780, %v2805
      %v2814 = vadd.f32 %v2781, %v2806
      %v2815 = vadd.f32 %v2782, %v2807
      %v2816 = vld [vmem:[%s2750 + $0x1] sm:$0xff]
      %v2817 = vld [vmem:[%s2750 + $0x11] sm:$0xff]
      %v2818 = vld [vmem:[%s2750 + $0x21] sm:$0xff]
      %v2819 = vld [vmem:[%s2750 + $0x31] sm:$0xff]
      %v2820 = vld [vmem:[%s2750 + $0x41] sm:$0xff]
      %v2821 = vld [vmem:[%s2750 + $0x51] sm:$0xff]
      %v2822 = vld [vmem:[%s2750 + $0x61] sm:$0xff]
      %v2823 = vld [vmem:[%s2750 + $0x71] sm:$0xff]
      %s2824 = scalar_lea.vmem %s11, 8
      %v2825 = vld [vmem:[%s2824] sm:$0x1]
      %v2827 = vlaneseq
      %v2828 = vshrl.u32 %v2827, 7
      %v2829 = vsub.s32 0, %v2828
      %v2830 = vrot.slane %v2825, %v2829
      %v2832 = vmul.f32 %v2816, %v2830
      %v2833 = vmul.f32 %v2817, %v2830
      %v2834 = vmul.f32 %v2818, %v2830
      %v2835 = vmul.f32 %v2819, %v2830
      %v2836 = vmul.f32 %v2820, %v2830
      %v2837 = vmul.f32 %v2821, %v2830
      %v2838 = vmul.f32 %v2822, %v2830
      %v2839 = vmul.f32 %v2823, %v2830
      %v2840 = vadd.f32 %v2808, %v2832
      %v2841 = vadd.f32 %v2809, %v2833
      %v2842 = vadd.f32 %v2810, %v2834
      %v2843 = vadd.f32 %v2811, %v2835
      %v2844 = vadd.f32 %v2812, %v2836
      %v2845 = vadd.f32 %v2813, %v2837
      %v2846 = vadd.f32 %v2814, %v2838
      %v2847 = vadd.f32 %v2815, %v2839
      %v2848 = vld [vmem:[%s12] sm:$0x1]
      %v2850 = vlaneseq
      %v2851 = vshrl.u32 %v2850, 7
      %v2852 = vsub.s32 0, %v2851
      %v2853 = vrot.slane %v2848, %v2852
      %v2855 = vmul.f32 %v2840, %v2853
      %v2856 = vmul.f32 %v2841, %v2853
      %v2857 = vmul.f32 %v2842, %v2853
      %v2858 = vmul.f32 %v2843, %v2853
      %v2859 = vmul.f32 %v2844, %v2853
      %v2860 = vmul.f32 %v2845, %v2853
      %v2861 = vmul.f32 %v2846, %v2853
      %v2862 = vmul.f32 %v2847, %v2853
      %v2863 = vld [vmem:[%s13] sm:$0x1]
      %v2865 = vlaneseq
      %v2866 = vshrl.u32 %v2865, 7
      %v2867 = vsub.s32 0, %v2866
      %v2868 = vrot.slane %v2863, %v2867
      %v2870 = vadd.f32 %v2855, %v2868
      %v2871 = vadd.f32 %v2856, %v2868
      %v2872 = vadd.f32 %v2857, %v2868
      %v2873 = vadd.f32 %v2858, %v2868
      %v2874 = vadd.f32 %v2859, %v2868
      %v2875 = vadd.f32 %v2860, %v2868
      %v2876 = vadd.f32 %v2861, %v2868
      %v2877 = vadd.f32 %v2862, %v2868
      %v2878 = vld [vmem:[%s14] sm:$0xff]
      %v2879 = vld [vmem:[%s14 + $0x8] sm:$0xff]
      %v2880 = vld [vmem:[%s14 + $0x10] sm:$0xff]
      %v2881 = vld [vmem:[%s14 + $0x18] sm:$0xff]
      %v2882 = vld [vmem:[%s14 + $0x20] sm:$0xff]
      %v2883 = vld [vmem:[%s14 + $0x28] sm:$0xff]
      %v2884 = vld [vmem:[%s14 + $0x30] sm:$0xff]
      %v2885 = vld [vmem:[%s14 + $0x38] sm:$0xff]
      %v2886 = vld [vmem:[%s14 + $0x40] sm:$0xff]
      %v2887 = vld [vmem:[%s14 + $0x48] sm:$0xff]
      %v2888 = vld [vmem:[%s14 + $0x50] sm:$0xff]
      %v2889 = vld [vmem:[%s14 + $0x58] sm:$0xff]
      %v2890 = vld [vmem:[%s14 + $0x60] sm:$0xff]
      %v2891 = vld [vmem:[%s14 + $0x68] sm:$0xff]
      %v2892 = vld [vmem:[%s14 + $0x70] sm:$0xff]
      %v2893 = vld [vmem:[%s14 + $0x78] sm:$0xff]
      %2894 = vmatprep.subr.mxu0 0.0
      %2895 = vmatpush1.msra.mxu0 %v2878
      %2896 = vmatprep.subr.mxu0 0.0
      %2897 = vmatpush1.msra.mxu0 %v2879
      %2898 = vmatprep.subr.mxu0 0.0
      %2899 = vmatpush1.msra.mxu0 %v2880
      %2900 = vmatprep.subr.mxu0 0.0
      %2901 = vmatpush1.msra.mxu0 %v2881
      %2902 = vmatprep.subr.mxu0 0.0
      %2903 = vmatpush1.msra.mxu0 %v2882
      %2904 = vmatprep.subr.mxu0 0.0
      %2905 = vmatpush1.msra.mxu0 %v2883
      %2906 = vmatprep.subr.mxu0 0.0
      %2907 = vmatpush1.msra.mxu0 %v2884
      %2908 = vmatprep.subr.mxu0 0.0
      %2909 = vmatpush1.msra.mxu0 %v2885
      %2910 = vmatprep.subr.mxu0 0.0
      %2911 = vmatpush1.msra.mxu0 %v2886
      %2912 = vmatprep.subr.mxu0 0.0
      %2913 = vmatpush1.msra.mxu0 %v2887
      %2914 = vmatprep.subr.mxu0 0.0
      %2915 = vmatpush1.msra.mxu0 %v2888
      %2916 = vmatprep.subr.mxu0 0.0
      %2917 = vmatpush1.msra.mxu0 %v2889
      %2918 = vmatprep.subr.mxu0 0.0
      %2919 = vmatpush1.msra.mxu0 %v2890
      %2920 = vmatprep.subr.mxu0 0.0
      %2921 = vmatpush1.msra.mxu0 %v2891
      %2922 = vmatprep.subr.mxu0 0.0
      %2923 = vmatpush1.msra.mxu0 %v2892
      %2924 = vmatprep.subr.mxu0 0.0
      %2925 = vmatpush1.msra.mxu0 %v2893
      %2926 = vmatprep.subr.mxu0 0.0
      %2927 = vmatpush1.msra.mxu0 0.0
      %2928 = vmatprep.subr.mxu0 0.0
      %2929 = vmatpush1.msra.mxu0 0.0
      %2930 = vmatprep.subr.mxu0 0.0
      %2931 = vmatpush1.msra.mxu0 0.0
      %2932 = vmatprep.subr.mxu0 0.0
      %2933 = vmatpush1.msra.mxu0 0.0
      %2934 = vmatprep.subr.mxu0 0.0
      %2935 = vmatpush1.msra.mxu0 0.0
      %2936 = vmatprep.subr.mxu0 0.0
      %2937 = vmatpush1.msra.mxu0 0.0
      %2938 = vmatprep.subr.mxu0 0.0
      %2939 = vmatpush1.msra.mxu0 0.0
      %2940 = vmatprep.subr.mxu0 0.0
      %2941 = vmatpush1.msra.mxu0 0.0
      %2942 = vmatprep.subr.mxu0 0.0
      %2943 = vmatpush1.msra.mxu0 0.0
      %2944 = vmatprep.subr.mxu0 0.0
      %2945 = vmatpush1.msra.mxu0 0.0
      %2946 = vmatprep.subr.mxu0 0.0
      %2947 = vmatpush1.msra.mxu0 0.0
      %2948 = vmatprep.subr.mxu0 0.0
      %2949 = vmatpush1.msra.mxu0 0.0
      %2950 = vmatprep.subr.mxu0 0.0
      %2951 = vmatpush1.msra.mxu0 0.0
      %2952 = vmatprep.subr.mxu0 0.0
      %2953 = vmatpush1.msra.mxu0 0.0
      %2954 = vmatprep.subr.mxu0 0.0
      %2955 = vmatpush1.msra.mxu0 0.0
      %2956 = vmatprep.subr.mxu0 0.0
      %2957 = vmatpush1.msra.mxu0 0.0
      %2958 = vmatprep.mubr.f32.mxu0 0.0
      %2959 = vmatmul.mubr.f32.gmra.mrb[0].mxu0 %v2870
      %v2960 = vpop.f32.mrb[0].mxu0
      %v2961 = vadd.f32 0.0, %v2960
      %v2962 = vpop.f32.mrb[0].mxu0
      %2963 = vmatprep.mubr.f32.mxu0 0.0
      %2964 = vmatmul.mubr.f32.gmra.mrb[0].mxu0 %v2871
      %v2965 = vpop.f32.mrb[0].mxu0
      %v2966 = vadd.f32 0.0, %v2965
      %v2967 = vpop.f32.mrb[0].mxu0
      %2968 = vmatprep.mubr.f32.mxu0 0.0
      %2969 = vmatmul.mubr.f32.gmra.mrb[0].mxu0 %v2872
      %v2970 = vpop.f32.mrb[0].mxu0
      %v2971 = vadd.f32 0.0, %v2970
      %v2972 = vpop.f32.mrb[0].mxu0
      %2973 = vmatprep.mubr.f32.mxu0 0.0
      %2974 = vmatmul.mubr.f32.gmra.mrb[0].mxu0 %v2873
      %v2975 = vpop.f32.mrb[0].mxu0
      %v2976 = vadd.f32 0.0, %v2975
      %v2977 = vpop.f32.mrb[0].mxu0
      %2978 = vmatprep.mubr.f32.mxu0 0.0
      %2979 = vmatmul.mubr.f32.gmra.mrb[0].mxu0 %v2874
      %v2980 = vpop.f32.mrb[0].mxu0
      %v2981 = vadd.f32 0.0, %v2980
      %v2982 = vpop.f32.mrb[0].mxu0
      %2983 = vmatprep.mubr.f32.mxu0 0.0
      %2984 = vmatmul.mubr.f32.gmra.mrb[0].mxu0 %v2875
      %v2985 = vpop.f32.mrb[0].mxu0
      %v2986 = vadd.f32 0.0, %v2985
      %v2987 = vpop.f32.mrb[0].mxu0
      %2988 = vmatprep.mubr.f32.mxu0 0.0
      %2989 = vmatmul.mubr.f32.gmra.mrb[0].mxu0 %v2876
      %v2990 = vpop.f32.mrb[0].mxu0
      %v2991 = vadd.f32 0.0, %v2990
      %v2992 = vpop.f32.mrb[0].mxu0
      %2993 = vmatprep.mubr.f32.mxu0 0.0
      %2994 = vmatmul.mubr.f32.gmra.mrb[0].mxu0 %v2877
      %v2995 = vpop.f32.mrb[0].mxu0
      %v2996 = vadd.f32 0.0, %v2995
      %v2997 = vpop.f32.mrb[0].mxu0
      %2998 = vdwg.mxu0
      %v2999 = vld [vmem:[%s15] sm:$0x1]
      %v3001 = vlaneseq
      %v3002 = vshrl.u32 %v3001, 7
      %v3003 = vsub.s32 0, %v3002
      %v3004 = vrot.slane %v2999, %v3003
      %v3006 = vmul.f32 %v2961, %v3004
      %v3007 = vmul.f32 %v2966, %v3004
      %v3008 = vmul.f32 %v2971, %v3004
      %v3009 = vmul.f32 %v2976, %v3004
      %v3010 = vmul.f32 %v2981, %v3004
      %v3011 = vmul.f32 %v2986, %v3004
      %v3012 = vmul.f32 %v2991, %v3004
      %v3013 = vmul.f32 %v2996, %v3004
      %v3014 = vld [vmem:[%s16] sm:$0x1]
      %v3016 = vlaneseq
      %v3017 = vshrl.u32 %v3016, 7
      %v3018 = vsub.s32 0, %v3017
      %v3019 = vrot.slane %v3014, %v3018
      %v3021 = vadd.f32 %v3006, %v3019
      %v3022 = vadd.f32 %v3007, %v3019
      %v3023 = vadd.f32 %v3008, %v3019
      %v3024 = vadd.f32 %v3009, %v3019
      %v3025 = vadd.f32 %v3010, %v3019
      %v3026 = vadd.f32 %v3011, %v3019
      %v3027 = vadd.f32 %v3012, %v3019
      %v3028 = vadd.f32 %v3013, %v3019
      %v3029 = vmax.f32 %v3021, 0.0
      %v3030 = vmax.f32 %v3022, 0.0
      %v3031 = vmax.f32 %v3023, 0.0
      %v3032 = vmax.f32 %v3024, 0.0
      %v3033 = vmax.f32 %v3025, 0.0
      %v3034 = vmax.f32 %v3026, 0.0
      %v3035 = vmax.f32 %v3027, 0.0
      %v3036 = vmax.f32 %v3028, 0.0
      %3037 = vst [vmem:[%s553] sm:$0xff] %v2556
      %3038 = vst [vmem:[%s553 + $0x10] sm:$0xff] %v2557
      %3039 = vst [vmem:[%s553 + $0x20] sm:$0xff] %v2558
      %3040 = vst [vmem:[%s553 + $0x30] sm:$0xff] %v2559
      %3041 = vst [vmem:[%s553 + $0x40] sm:$0xff] %v2560
      %3042 = vst [vmem:[%s553 + $0x50] sm:$0xff] %v2561
      %3043 = vst [vmem:[%s553 + $0x60] sm:$0xff] %v2562
      %3044 = vst [vmem:[%s553 + $0x70] sm:$0xff] %v2563
      %3045 = vst [vmem:[%s553 + $0x8] sm:$0xff] %v3029
      %3046 = vst [vmem:[%s553 + $0x18] sm:$0xff] %v3030
      %3047 = vst [vmem:[%s553 + $0x28] sm:$0xff] %v3031
      %3048 = vst [vmem:[%s553 + $0x38] sm:$0xff] %v3032
      %3049 = vst [vmem:[%s553 + $0x48] sm:$0xff] %v3033
      %3050 = vst [vmem:[%s553 + $0x58] sm:$0xff] %v3034
      %3051 = vst [vmem:[%s553 + $0x68] sm:$0xff] %v3035
      %3052 = vst [vmem:[%s553 + $0x78] sm:$0xff] %v3036
      %p3053 = scmp.lt.s32.totalorder %s28, 1
      %s3054 = scalar_select %p3053, %s28, 1
      %s3055 = smul.addr %s3054, 16
      %s3056 = smul.addr %s3055, 8
      %s3057 = scalar_lea.vmem %s17, %s3056
      // Predicated region
      $region89: #{downblock_forward.1} parent=87 // pred_check
        %p3058 = pneg %p408
      $region90: #{downblock_forward.1} parent=87 // pred_check_branch
        %3060 = sbr.rel (%p3058) target = $region92
      $region91: #{downblock_forward.1} parent=87 // pred_region
        _
      $region92: #{downblock_forward.1} parent=87 // pred_fallthru
        _
    $region88: #{downblock_forward.1} parent=5 // pred_fallthru
      _
    %p3061 = scmp.le.s32.totalorder 2, %s23
    // Predicated region
    $region93: #{downblock_forward.1} parent=5 // pred_check
      %p3062 = pneg %p3061
    $region94: #{downblock_forward.1} parent=5 // pred_check_branch
      %3064 = sbr.rel (%p3062) target = $region96
    $region95: #{downblock_forward.1} parent=5 // pred_region
      %s3065 = ssub.s32 %s23, 2
      // Predicated region
      $region97: #{downblock_forward.1} parent=95 // pred_check
        %p3066 = pneg %p414
      $region98: #{downblock_forward.1} parent=95 // pred_check_branch
        %3068 = sbr.rel (%p3066) target = $region100
      $region99: #{downblock_forward.1} parent=95 // pred_region
        %p3069 = scmp.lt.s32.totalorder %s29, 1
        %s3070 = scalar_select %p3069, %s29, 1
        %s3071 = smul.addr %s3070, 16
        %s3072 = smul.addr %s3071, 8
        %s3073 = scalar_lea.vmem %s17, %s3072
      $region100: #{downblock_forward.1} parent=95 // pred_fallthru
        _
    $region96: #{downblock_forward.1} parent=5 // pred_fallthru
      _
  $region6: #{downblock_forward.1} parent=0 // loop_footer
    %s27 = sadd.s32 1, %s23
  $region7: #{downblock_forward.1} parent=0 // loop_footer_branch
    %22 = sbr.rel target = $region3
  $region8: #{downblock_forward.1} parent=0 // loop_exit
    _

</llo_original>
